<compile_context>
chip_gen: v7x
topology: tpu7x:2x2x1
jax: 0.10.0
libtpu: 0.0.40
codegen_flags: <defaults>
</compile_context>

<pallas_src>
import functools

import jax
import jax.numpy as jnp
from jax.experimental import pallas as pl
from jax.experimental.pallas import tpu as pltpu

# ----------------------------- config -------------------------------------
INPUT_DIM = 48
HIDDEN = 32
LAYERS = 2
NCLASS = 4
ALPHA = 0.1          # LeakyReLU slope inside RGAT
NEG_INF = -9e15      # matches torch's -9000000000000000.0


# --------------------------- fused Pallas kernel ----------------------------
def _perc_fused_kernel(x_ref, adj_ref, smask_ref, sfeat_ref, sadjp_ref,
                       gslab_ref, layA_ref, layB_ref,
                       logits_ref, psim_ref,
                       *, layers, hidden, nclass, in_dim, n_nodes, n_spk,
                       bb, alpha):
    f32 = jnp.float32
    dot = lambda a, b: jnp.dot(a, b, preferred_element_type=f32)
    # a @ b^T  (contract the last dim of both operands) -- native MXU NT form.
    dot_nt = lambda a, b: jax.lax.dot_general(
        a, b, (((1,), (1,)), ((), ())), preferred_element_type=f32)

    D, N, M, Bb, C = hidden, n_nodes, n_spk, bb, nclass

    # ---------------- unpack the single global weight slab ----------------
    fc1_w = gslab_ref[0:in_dim, :]                          # (in_dim, D)
    fc2_w = gslab_ref[in_dim:2 * in_dim, :]                 # (in_dim, D)
    out_w = gslab_ref[2 * in_dim:2 * in_dim + D, :]         # (D, D), cols >= C are 0
    bias_grp = gslab_ref[2 * in_dim + D:2 * in_dim + D + 8, :]
    fc1_b = bias_grp[0:1, :]
    fc2_b = bias_grp[1:2, :]
    out_b = bias_grp[2:3, :]                                # lanes >= C are 0

    # -------- fold the per-step batch into the matmul row dimension --------
    x2 = x_ref[...].reshape(Bb * N, in_dim)
    sf2 = sfeat_ref[...].reshape(Bb * M, in_dim)
    H = jnp.maximum(dot(x2, fc1_w) + fc1_b, 0.0)            # (Bb*N, D)
    P = jnp.maximum(dot(sf2, fc2_w) + fc2_b, 0.0)           # (Bb*M, D)

    for l in range(layers):
        W_l    = layA_ref[l, 0:D, :]                        # (D, D)
        agg_w1 = layA_ref[l, D:2 * D, :]
        agg_w2 = layA_ref[l, 2 * D:3 * D, :]
        agg_w3 = layA_ref[l, 3 * D:4 * D, :]
        wa1    = layA_ref[l, 4 * D:5 * D, 0:1]              # (D, 1) = W @ a1
        extras = layA_ref[l, 5 * D:5 * D + 8, :]            # (8, D)
        wa2_row  = extras[0:1, :]                           # (1, D) = (W @ a2)^T
        agg_b    = extras[1:2, :]                           # (1, D)
        rel_same = extras[2:3, 0:1]                         # (1, 1)
        rel_diff = extras[2:3, 1:2]                         # (1, 1)
        gru_wx = layB_ref[l, 0:D, :]                        # (D, 3D) = [wz|wr|w]
        gru_uc = layB_ref[l, D:2 * D, :]                    # (D, 3D) = [uz|ur|u]

        # Row-batched node transform; f1/f2 depend only on H (a1/a2 folded
        # through W at pack time), so they are off the h -> attention chain.
        h2     = dot(H, W_l)                                # (Bb*N, D)
        f1_all = dot(H, wa1)                                # (Bb*N, 1)
        f2_all = dot_nt(wa2_row, H)                         # (1, Bb*N)

        agg_parts, pl1_parts, pc_parts = [], [], []
        for b in range(Bb):                                 # Bb tiny & static
            r0, p0 = b * N, b * M
            adj_b = adj_ref[b]                              # (N, N)
            sm_b = smask_ref[b]                             # (N, N) int32

            e = f1_all[r0:r0 + N, :] + f2_all[:, r0:r0 + N]
            e = e + jnp.where(sm_b == 0, rel_same, rel_diff)
            e = jnp.where(e > 0, e, alpha * e)              # LeakyReLU
            e = jnp.where(adj_b > 0, e, NEG_INF)
            e = e - jnp.max(e, axis=-1, keepdims=True)      # stable softmax
            pe = jnp.exp(e)
            attn = pe * pl.reciprocal(jnp.sum(pe, axis=-1, keepdims=True),
                                      approx=True)
            hp = dot(attn, h2[r0:r0 + N, :])                # (N, D)
            agg_parts.append(                               # ELU
                jnp.where(hp > 0, hp, jnp.exp(jnp.minimum(hp, 0.0)) - 1.0))

            sp_b = sadjp_ref[b]                             # (M+N, N) packed
            sadj_b = sp_b[0:M, :]                           # (M, N)
            sadjT_b = sp_b[M:M + N, 0:M]                    # (N, M)
            pl1_parts.append(dot(sadjT_b, P[p0:p0 + M, :])) # (N, D)
            pc_parts.append(dot(sadj_b, H[r0:r0 + N, :]))   # (M, D)

        Agg = jnp.concatenate(agg_parts, axis=0)            # (Bb*N, D)
        P_l_1 = jnp.concatenate(pl1_parts, axis=0)          # (Bb*N, D)
        P_c = jnp.concatenate(pc_parts, axis=0)             # (Bb*M, D)

        # aggregation linear: three accumulating dots, no lane-dim concat.
        H_new = jnp.maximum(dot(H, agg_w1) + dot(P_l_1, agg_w2)
                            + dot(Agg, agg_w3) + agg_b, 0.0)

        # GRU3d update of P (packed [z|r|h] projections -> two dots).
        xW = dot(P, gru_wx)                                 # (Bb*M, 3D)
        cU = dot(P_c, gru_uc)                               # (Bb*M, 3D)
        z = jax.nn.sigmoid(xW[:, 0:D] + cU[:, 0:D])
        r = jax.nn.sigmoid(xW[:, D:2 * D] + cU[:, D:2 * D])
        h_hat = jnp.tanh(xW[:, 2 * D:3 * D] + r * cU[:, 2 * D:3 * D])
        P = (1.0 - z) * P + z * h_hat
        H = H_new

    # ---------------- output head ----------------
    # out_w / out_b are zero beyond lane C, so the padded dot is exact.
    logits = (dot(H, out_w) + out_b)[:, 0:C]                # (Bb*N, C)
    for b in range(Bb):
        logits_ref[b] = logits[b * N:(b + 1) * N, :].astype(logits_ref.dtype)

    # ---- sim loss:  (||sum_m P_m||^2 - sum_m ||P_m||^2) / M^2  per batch ----
    inv_m2 = 1.0 / float(M * M)
    for b in range(Bb):
        Pb = P[b * M:(b + 1) * M, :]
        cs = jnp.sum(Pb, axis=0, keepdims=True)             # (1, D)
        t1 = jnp.sum(cs * cs, axis=-1, keepdims=True)       # (1, 1)
        t2 = jnp.sum(jnp.sum(Pb * Pb, axis=-1, keepdims=True),
                     axis=0, keepdims=True)                 # (1, 1)
        psim_ref[b] = ((t1 - t2) * inv_m2).astype(psim_ref.dtype)


# ---------------------- trace-time weight packing ---------------------------
def _pack_global_slab(params):
    D = HIDDEN
    out_w_pad = jnp.zeros((D, D), jnp.float32).at[:, :NCLASS].set(params['out_w'])
    bias = jnp.zeros((8, D), jnp.float32)
    bias = bias.at[0, :].set(params['fc1_b'][0])
    bias = bias.at[1, :].set(params['fc2_b'][0])
    bias = bias.at[2, :NCLASS].set(params['out_b'][0])
    # rows: [0:in) fc1_w | [in:2in) fc2_w | [2in:2in+D) out_w | 8-row bias group
    return jnp.concatenate(
        [params['fc1_w'], params['fc2_w'], out_w_pad, bias], axis=0)


def _pack_layer_slabs(params):
    D = HIDDEN
    slab_a, slab_b = [], []
    for lp in params['layers']:
        a = lp['rgat_a']
        wa1 = lp['rgat_W'] @ a[0:D].reshape(D, 1)               # (D, 1)
        wa2 = lp['rgat_W'] @ a[D:2 * D]                         # (D,)
        rel = lp['rel_emb'] @ a[2 * D:3 * D]                    # (2,)
        wa1_pad = jnp.zeros((D, D), jnp.float32).at[:, 0:1].set(wa1)
        extras = jnp.zeros((8, D), jnp.float32)
        extras = extras.at[0, :].set(wa2)
        extras = extras.at[1, :].set(lp['agg_b'][0])
        extras = extras.at[2, 0].set(rel[0])
        extras = extras.at[2, 1].set(rel[1])
        # rows: W | agg_w1 | agg_w2 | agg_w3 | Wa1(col) | extras(Wa2 row, agg_b, rel)
        slab_a.append(jnp.concatenate(
            [lp['rgat_W'], lp['agg_w1'], lp['agg_w2'], lp['agg_w3'],
             wa1_pad, extras], axis=0))                          # (5D+8, D)
        slab_b.append(jnp.concatenate([
            jnp.concatenate([lp['gru_wz'], lp['gru_wr'], lp['gru_w']], axis=1),
            jnp.concatenate([lp['gru_uz'], lp['gru_ur'], lp['gru_u']], axis=1),
        ], axis=0))                                              # (2D, 3D)
    return jnp.stack(slab_a), jnp.stack(slab_b)


# ------------------------------ PERC forward -------------------------------
@jax.jit
def perc_forward(params, x, adj, s_mask, s_feature, s_adj, speaker_id=None):
    del speaker_id                        # unused by the torch forward as well
    B, N, _ = x.shape
    M = s_feature.shape[1]                # assumes M <= N (speakers <= nodes)
    D = HIDDEN

    # Two "parallel" grid steps so v7x's two TensorCores split the batch;
    # each step row-batches Bb = B // 2 graphs through every matmul.
    G = 2 if (B % 2 == 0 and B >= 2) else 1
    Bb = B // G

    gslab = _pack_global_slab(params)
    laya, layb = _pack_layer_slabs(params)

    # Pack s_adj and s_adj^T into ONE input (single DMA descriptor; both
    # matmuls that use them stay in native NN MXU form inside the kernel).
    sadjT = jnp.transpose(s_adj, (0, 2, 1))                      # (B, N, M)
    sadjT = jnp.pad(sadjT, ((0, 0), (0, 0), (0, N - M)))         # (B, N, N)
    sadj_pack = jnp.concatenate([s_adj, sadjT], axis=1)          # (B, M+N, N)

    kernel = functools.partial(
        _perc_fused_kernel, layers=LAYERS, hidden=D, nclass=NCLASS,
        in_dim=INPUT_DIM, n_nodes=N, n_spk=M, bb=Bb, alpha=ALPHA)

    batch3 = lambda shape: pl.BlockSpec(shape, lambda i: (i, 0, 0))
    const2 = lambda shape: pl.BlockSpec(shape, lambda i: (0, 0))
    const3 = lambda shape: pl.BlockSpec(shape, lambda i: (0, 0, 0))

    logits, psim = pl.pallas_call(
        kernel,
        out_shape=(jax.ShapeDtypeStruct((B, N, NCLASS), jnp.float32),
                   jax.ShapeDtypeStruct((B, 1, 1), jnp.float32)),
        grid=(G,),
        in_specs=[
            batch3((Bb, N, INPUT_DIM)),     # x
            batch3((Bb, N, N)),             # adj
            batch3((Bb, N, N)),             # s_mask (int32 relation ids)
            batch3((Bb, M, INPUT_DIM)),     # s_feature
            batch3((Bb, M + N, N)),         # [s_adj ; s_adj^T (lane-padded)]
            const2(gslab.shape),            # global weight slab
            const3(laya.shape),             # per-layer slab A (RGAT + agg)
            const3(layb.shape),             # per-layer slab B (GRU)
        ],
        out_specs=(batch3((Bb, N, NCLASS)), batch3((Bb, 1, 1))),
        compiler_params=pltpu.CompilerParams(
            dimension_semantics=("parallel",)),
    )(x, adj, s_mask, s_feature, sadj_pack, gslab, laya, layb)

    p_sim = jnp.mean(psim)                  # mean over batch -> scalar
    return logits, p_sim
    # TODO(synk): Multi_Head_Attention aggregation path (config.att_agg=True)
    # and init_way in {'random','local'} are not exercised in this config.


# --------------------------- pure-JAX reference -----------------------------
def perc_reference(params, x, adj, s_mask, s_feature, s_adj):
    relu = jax.nn.relu
    H = [relu(x @ params['fc1_w'] + params['fc1_b'])]
    P = [relu(s_feature @ params['fc2_w'] + params['fc2_b'])]
    for l in range(LAYERS):
        lp = params['layers'][l]
        P_l_1 = jnp.einsum('bmn,bmd->bnd', s_adj, P[l])
        h = H[l] @ lp['rgat_W']
        D = HIDDEN
        a1, a2, a3 = (lp['rgat_a'][0:D], lp['rgat_a'][D:2 * D],
                      lp['rgat_a'][2 * D:3 * D])
        f1 = h @ a1
        f2 = h @ a2
        rel_scores = lp['rel_emb'] @ a3
        e = f1[:, :, None] + f2[:, None, :] + rel_scores[s_mask]
        e = jnp.where(e > 0, e, ALPHA * e)
        e = jnp.where(adj > 0, e, NEG_INF)
        attn = jax.nn.softmax(e, axis=-1)
        Agg = attn @ h
        Agg = jnp.where(Agg > 0, Agg, jnp.exp(Agg) - 1.0)
        H_l = relu(H[l] @ lp['agg_w1'] + P_l_1 @ lp['agg_w2']
                   + Agg @ lp['agg_w3'] + lp['agg_b'])
        H.append(H_l)
        P_l = jnp.einsum('bmn,bnd->bmd', s_adj, H[l])
        xg, cg = P[l], P_l
        z = jax.nn.sigmoid(xg @ lp['gru_wz'] + cg @ lp['gru_uz'])
        r = jax.nn.sigmoid(xg @ lp['gru_wr'] + cg @ lp['gru_ur'])
        h_hat = jnp.tanh(xg @ lp['gru_w'] + r * (cg @ lp['gru_u']))
        P.append((1 - z) * xg + z * h_hat)
    p = P[-1]
    sim = jnp.einsum('bmd,bkd->bmk', p, p)
    m = sim.shape[-1]
    sim = sim * (1.0 - jnp.eye(m))
    p_sim = jnp.mean(jnp.mean(jnp.mean(sim, axis=-1), axis=-1), axis=-1)
    logits = H[-1] @ params['out_w'] + params['out_b']
    return logits, p_sim


# ------------------------------ param init ---------------------------------
def init_params(key):
    n_keys = 6 + LAYERS * 13
    ks = iter(jax.random.split(key, n_keys))

    def nrm(shape, std=0.1):
        return std * jax.random.normal(next(ks), shape, jnp.float32)

    params = {
        'fc1_w': nrm((INPUT_DIM, HIDDEN)), 'fc1_b': nrm((1, HIDDEN)),
        'fc2_w': nrm((INPUT_DIM, HIDDEN)), 'fc2_b': nrm((1, HIDDEN)),
        'out_w': nrm((HIDDEN, NCLASS)),    'out_b': nrm((1, NCLASS)),
        'layers': [],
    }
    for _ in range(LAYERS):
        params['layers'].append({
            'rgat_W': nrm((HIDDEN, HIDDEN)),
            'rgat_a': nrm((3 * HIDDEN,)),
            'rel_emb': nrm((2, HIDDEN), std=1.0),
            'agg_w1': nrm((HIDDEN, HIDDEN)),
            'agg_w2': nrm((HIDDEN, HIDDEN)),
            'agg_w3': nrm((HIDDEN, HIDDEN)),
            'agg_b': nrm((1, HIDDEN)),
            'gru_wz': nrm((HIDDEN, HIDDEN)), 'gru_uz': nrm((HIDDEN, HIDDEN)),
            'gru_wr': nrm((HIDDEN, HIDDEN)), 'gru_ur': nrm((HIDDEN, HIDDEN)),
            'gru_w': nrm((HIDDEN, HIDDEN)),  'gru_u': nrm((HIDDEN, HIDDEN)),
        })
    return params


# --------------------------------- main -------------------------------------
if __name__ == "__main__":
    B, N, M = 4, 16, 4      # B=4 -> grid=(2,) parallel steps, 2 graphs/step
    key = jax.random.PRNGKey(0)
    k_data, k_param = jax.random.split(key)
    kd = jax.random.split(k_data, 6)

    x = jax.random.normal(kd[0], (B, N, INPUT_DIM), jnp.float32)
    adj = (jax.random.uniform(kd[1], (B, N, N)) > 0.5).astype(jnp.float32)
    adj = jnp.maximum(adj, jnp.eye(N, dtype=jnp.float32)[None])  # self loops
    s_mask = (jax.random.uniform(kd[2], (B, N, N)) > 0.5).astype(jnp.int32)
    s_feature = jax.random.normal(kd[3], (B, M, INPUT_DIM), jnp.float32)
    s_adj = jax.random.uniform(kd[4], (B, M, N), jnp.float32)
    speaker_id = jnp.zeros((B, N), jnp.int32)  # unused by forward

    params = init_params(k_param)

    logits, p_sim = perc_forward(params, x, adj, s_mask, s_feature, s_adj,
                                 speaker_id)
    logits = jax.block_until_ready(logits)
    p_sim = jax.block_until_ready(p_sim)

    ref_logits, ref_psim = perc_reference(params, x, adj, s_mask, s_feature,
                                          s_adj)
    if not (jnp.allclose(logits, ref_logits, atol=1e-3, rtol=1e-3)
            and jnp.allclose(p_sim, ref_psim, atol=1e-3, rtol=1e-3)):
        raise RuntimeError("Pallas output does not match JAX reference")

    print("KERNEL_OK")
</pallas_src>

<mosaic_0001>
module attributes {stable_mosaic.version = 11 : i64} {
  func.func @_perc_fused_kernel(%arg0: i32, %arg1: memref<2x16x48xf32, #tpu.memory_space<vmem>>, %arg2: memref<2x16x16xf32, #tpu.memory_space<vmem>>, %arg3: memref<2x16x16xi32, #tpu.memory_space<vmem>>, %arg4: memref<2x4x48xf32, #tpu.memory_space<vmem>>, %arg5: memref<2x20x16xf32, #tpu.memory_space<vmem>>, %arg6: memref<136x32xf32, #tpu.memory_space<vmem>>, %arg7: memref<2x168x32xf32, #tpu.memory_space<vmem>>, %arg8: memref<2x64x96xf32, #tpu.memory_space<vmem>>, %arg9: memref<2x16x4xf32, #tpu.memory_space<vmem>>, %arg10: memref<2x1x1xf32, #tpu.memory_space<vmem>>) attributes {dimension_semantics = [#tpu.dimension_semantics<parallel>], iteration_bounds = array<i64: 2>, scalar_prefetch = 0 : i64, scratch_operands = 0 : i64, tpu.core_type = #tpu.core_type<tc>, window_params = [{transform_indices = @transform_0, window_bounds = array<i64: 2, 16, 48>}, {transform_indices = @transform_1, window_bounds = array<i64: 2, 16, 16>}, {transform_indices = @transform_2, window_bounds = array<i64: 2, 16, 16>}, {transform_indices = @transform_3, window_bounds = array<i64: 2, 4, 48>}, {transform_indices = @transform_4, window_bounds = array<i64: 2, 20, 16>}, {pipeline_mode = #tpu.pipeline_mode<synchronous>, transform_indices = @transform_5, window_bounds = array<i64: 136, 32>}, {pipeline_mode = #tpu.pipeline_mode<synchronous>, transform_indices = @transform_6, window_bounds = array<i64: 2, 168, 32>}, {pipeline_mode = #tpu.pipeline_mode<synchronous>, transform_indices = @transform_7, window_bounds = array<i64: 2, 64, 96>}, {transform_indices = @transform_8, window_bounds = array<i64: 2, 16, 4>}, {transform_indices = @transform_9, window_bounds = array<i64: 2, 1, 1>}]} {
    %c0 = arith.constant 0 : index
    %c0_0 = arith.constant 0 : index
    %0 = vector.load %arg6[%c0, %c0_0] : memref<136x32xf32, #tpu.memory_space<vmem>>, vector<48x32xf32>
    %c48 = arith.constant 48 : index
    %c0_1 = arith.constant 0 : index
    %1 = vector.load %arg6[%c48, %c0_1] : memref<136x32xf32, #tpu.memory_space<vmem>>, vector<48x32xf32>
    %c96 = arith.constant 96 : index
    %c0_2 = arith.constant 0 : index
    %2 = vector.load %arg6[%c96, %c0_2] : memref<136x32xf32, #tpu.memory_space<vmem>>, vector<32x32xf32>
    %c128 = arith.constant 128 : index
    %c0_3 = arith.constant 0 : index
    %3 = vector.load %arg6[%c128, %c0_3] : memref<136x32xf32, #tpu.memory_space<vmem>>, vector<8x32xf32>
    %4 = vector.extract_strided_slice %3 {offsets = [0, 0], sizes = [1, 32], strides = [1, 1]} : vector<8x32xf32> to vector<1x32xf32>
    %5 = vector.extract_strided_slice %3 {offsets = [1, 0], sizes = [1, 32], strides = [1, 1]} : vector<8x32xf32> to vector<1x32xf32>
    %6 = vector.extract_strided_slice %3 {offsets = [2, 0], sizes = [1, 32], strides = [1, 1]} : vector<8x32xf32> to vector<1x32xf32>
    %c0_4 = arith.constant 0 : index
    %c0_5 = arith.constant 0 : index
    %c0_6 = arith.constant 0 : index
    %7 = vector.load %arg1[%c0_4, %c0_5, %c0_6] : memref<2x16x48xf32, #tpu.memory_space<vmem>>, vector<2x16x48xf32>
    %8 = vector.shape_cast %7 : vector<2x16x48xf32> to vector<32x48xf32>
    %c0_7 = arith.constant 0 : index
    %c0_8 = arith.constant 0 : index
    %c0_9 = arith.constant 0 : index
    %9 = vector.load %arg4[%c0_7, %c0_8, %c0_9] : memref<2x4x48xf32, #tpu.memory_space<vmem>>, vector<2x4x48xf32>
    %10 = vector.shape_cast %9 : vector<2x4x48xf32> to vector<8x48xf32>
    %cst = arith.constant dense<0.000000e+00> : vector<32x32xf32>
    %11 = tpu.matmul %8, %0, %cst {dimension_numbers = #tpu.dot_dimension_numbers<[1], [0], [0], [1], [0, 0, 1, 1], [], []>} : vector<32x48xf32>, vector<48x32xf32>, vector<32x32xf32> -> vector<32x32xf32>
    %12 = vector.broadcast %4 : vector<1x32xf32> to vector<32x32xf32>
    %13 = arith.addf %11, %12 : vector<32x32xf32>
    %cst_10 = arith.constant 0.000000e+00 : f32
    %14 = vector.broadcast %cst_10 : f32 to vector<32x32xf32>
    %15 = arith.maximumf %13, %14 : vector<32x32xf32>
    %cst_11 = arith.constant dense<0.000000e+00> : vector<8x32xf32>
    %16 = tpu.matmul %10, %1, %cst_11 {dimension_numbers = #tpu.dot_dimension_numbers<[1], [0], [0], [1], [0, 0, 1, 1], [], []>} : vector<8x48xf32>, vector<48x32xf32>, vector<8x32xf32> -> vector<8x32xf32>
    %17 = vector.broadcast %5 : vector<1x32xf32> to vector<8x32xf32>
    %18 = arith.addf %16, %17 : vector<8x32xf32>
    %cst_12 = arith.constant 0.000000e+00 : f32
    %19 = vector.broadcast %cst_12 : f32 to vector<8x32xf32>
    %20 = arith.maximumf %18, %19 : vector<8x32xf32>
    %c0_13 = arith.constant 0 : index
    %c0_14 = arith.constant 0 : index
    %c0_15 = arith.constant 0 : index
    %21 = vector.load %arg7[%c0_13, %c0_14, %c0_15] : memref<2x168x32xf32, #tpu.memory_space<vmem>>, vector<1x32x32xf32>
    %22 = vector.shape_cast %21 : vector<1x32x32xf32> to vector<32x32xf32>
    %c0_16 = arith.constant 0 : index
    %c32 = arith.constant 32 : index
    %c0_17 = arith.constant 0 : index
    %23 = vector.load %arg7[%c0_16, %c32, %c0_17] : memref<2x168x32xf32, #tpu.memory_space<vmem>>, vector<1x32x32xf32>
    %24 = vector.shape_cast %23 : vector<1x32x32xf32> to vector<32x32xf32>
    %c0_18 = arith.constant 0 : index
    %c64 = arith.constant 64 : index
    %c0_19 = arith.constant 0 : index
    %25 = vector.load %arg7[%c0_18, %c64, %c0_19] : memref<2x168x32xf32, #tpu.memory_space<vmem>>, vector<1x32x32xf32>
    %26 = vector.shape_cast %25 : vector<1x32x32xf32> to vector<32x32xf32>
    %c0_20 = arith.constant 0 : index
    %c96_21 = arith.constant 96 : index
    %c0_22 = arith.constant 0 : index
    %27 = vector.load %arg7[%c0_20, %c96_21, %c0_22] : memref<2x168x32xf32, #tpu.memory_space<vmem>>, vector<1x32x32xf32>
    %28 = vector.shape_cast %27 : vector<1x32x32xf32> to vector<32x32xf32>
    %c0_23 = arith.constant 0 : index
    %c128_24 = arith.constant 128 : index
    %c0_25 = arith.constant 0 : index
    %29 = vector.load %arg7[%c0_23, %c128_24, %c0_25] : memref<2x168x32xf32, #tpu.memory_space<vmem>>, vector<1x32x1xf32>
    %30 = vector.shape_cast %29 : vector<1x32x1xf32> to vector<32x1xf32>
    %c0_26 = arith.constant 0 : index
    %c160 = arith.constant 160 : index
    %c0_27 = arith.constant 0 : index
    %31 = vector.load %arg7[%c0_26, %c160, %c0_27] : memref<2x168x32xf32, #tpu.memory_space<vmem>>, vector<1x8x32xf32>
    %32 = vector.shape_cast %31 : vector<1x8x32xf32> to vector<8x32xf32>
    %33 = vector.extract_strided_slice %32 {offsets = [0, 0], sizes = [1, 32], strides = [1, 1]} : vector<8x32xf32> to vector<1x32xf32>
    %34 = vector.extract_strided_slice %32 {offsets = [1, 0], sizes = [1, 32], strides = [1, 1]} : vector<8x32xf32> to vector<1x32xf32>
    %35 = vector.extract_strided_slice %32 {offsets = [2, 0], sizes = [1, 1], strides = [1, 1]} : vector<8x32xf32> to vector<1x1xf32>
    %36 = vector.extract_strided_slice %32 {offsets = [2, 1], sizes = [1, 1], strides = [1, 1]} : vector<8x32xf32> to vector<1x1xf32>
    %c0_28 = arith.constant 0 : index
    %c0_29 = arith.constant 0 : index
    %c0_30 = arith.constant 0 : index
    %37 = vector.load %arg8[%c0_28, %c0_29, %c0_30] : memref<2x64x96xf32, #tpu.memory_space<vmem>>, vector<1x32x96xf32>
    %38 = vector.shape_cast %37 : vector<1x32x96xf32> to vector<32x96xf32>
    %c0_31 = arith.constant 0 : index
    %c32_32 = arith.constant 32 : index
    %c0_33 = arith.constant 0 : index
    %39 = vector.load %arg8[%c0_31, %c32_32, %c0_33] : memref<2x64x96xf32, #tpu.memory_space<vmem>>, vector<1x32x96xf32>
    %40 = vector.shape_cast %39 : vector<1x32x96xf32> to vector<32x96xf32>
    %cst_34 = arith.constant dense<0.000000e+00> : vector<32x32xf32>
    %41 = tpu.matmul %15, %22, %cst_34 {dimension_numbers = #tpu.dot_dimension_numbers<[1], [0], [0], [1], [0, 0, 1, 1], [], []>} : vector<32x32xf32>, vector<32x32xf32>, vector<32x32xf32> -> vector<32x32xf32>
    %cst_35 = arith.constant dense<0.000000e+00> : vector<32x1xf32>
    %42 = tpu.matmul %15, %30, %cst_35 {dimension_numbers = #tpu.dot_dimension_numbers<[1], [0], [0], [1], [0, 0, 1, 1], [], []>} : vector<32x32xf32>, vector<32x1xf32>, vector<32x1xf32> -> vector<32x1xf32>
    %cst_36 = arith.constant dense<0.000000e+00> : vector<1x32xf32>
    %43 = tpu.matmul %33, %15, %cst_36 {dimension_numbers = #tpu.dot_dimension_numbers<[1], [1], [0], [0], [0, 0, 1, 0], [], []>} : vector<1x32xf32>, vector<32x32xf32>, vector<1x32xf32> -> vector<1x32xf32>
    %c0_37 = arith.constant 0 : index
    %c0_38 = arith.constant 0 : index
    %c0_39 = arith.constant 0 : index
    %44 = vector.load %arg2[%c0_37, %c0_38, %c0_39] : memref<2x16x16xf32, #tpu.memory_space<vmem>>, vector<1x16x16xf32>
    %45 = vector.shape_cast %44 : vector<1x16x16xf32> to vector<16x16xf32>
    %c0_40 = arith.constant 0 : index
    %c0_41 = arith.constant 0 : index
    %c0_42 = arith.constant 0 : index
    %46 = vector.load %arg3[%c0_40, %c0_41, %c0_42] : memref<2x16x16xi32, #tpu.memory_space<vmem>>, vector<1x16x16xi32>
    %47 = vector.shape_cast %46 : vector<1x16x16xi32> to vector<16x16xi32>
    %48 = vector.extract_strided_slice %42 {offsets = [0, 0], sizes = [16, 1], strides = [1, 1]} : vector<32x1xf32> to vector<16x1xf32>
    %49 = vector.extract_strided_slice %43 {offsets = [0, 0], sizes = [1, 16], strides = [1, 1]} : vector<1x32xf32> to vector<1x16xf32>
    %50 = vector.broadcast %48 : vector<16x1xf32> to vector<16x16xf32>
    %51 = vector.broadcast %49 : vector<1x16xf32> to vector<16x16xf32>
    %52 = arith.addf %50, %51 : vector<16x16xf32>
    %c0_i32 = arith.constant 0 : i32
    %53 = vector.broadcast %c0_i32 : i32 to vector<16x16xi32>
    %54 = arith.cmpi eq, %47, %53 : vector<16x16xi32>
    %55 = vector.shape_cast %35 : vector<1x1xf32> to vector<1x1xf32>
    %56 = vector.broadcast %55 : vector<1x1xf32> to vector<16x16xf32>
    %57 = vector.shape_cast %36 : vector<1x1xf32> to vector<1x1xf32>
    %58 = vector.broadcast %57 : vector<1x1xf32> to vector<16x16xf32>
    %59 = arith.select %54, %56, %58 : vector<16x16xi1>, vector<16x16xf32>
    %60 = arith.addf %52, %59 : vector<16x16xf32>
    %cst_43 = arith.constant 0.000000e+00 : f32
    %61 = vector.broadcast %cst_43 : f32 to vector<16x16xf32>
    %62 = arith.cmpf ogt, %60, %61 : vector<16x16xf32>
    %cst_44 = arith.constant 1.000000e-01 : f32
    %63 = vector.broadcast %cst_44 : f32 to vector<16x16xf32>
    %64 = arith.mulf %63, %60 : vector<16x16xf32>
    %65 = arith.select %62, %60, %64 : vector<16x16xi1>, vector<16x16xf32>
    %cst_45 = arith.constant 0.000000e+00 : f32
    %66 = vector.broadcast %cst_45 : f32 to vector<16x16xf32>
    %67 = arith.cmpf ogt, %45, %66 : vector<16x16xf32>
    %cst_46 = arith.constant -9.000000e+15 : f32
    %68 = vector.broadcast %cst_46 : f32 to vector<16x16xf32>
    %69 = arith.select %67, %65, %68 : vector<16x16xi1>, vector<16x16xf32>
    %cst_47 = arith.constant dense<0xFF800000> : vector<16xf32>
    %70 = vector.multi_reduction <maximumf>, %69, %cst_47 [1] : vector<16x16xf32> to vector<16xf32>
    %71 = vector.shape_cast %70 : vector<16xf32> to vector<16x1xf32>
    %72 = vector.broadcast %71 : vector<16x1xf32> to vector<16x16xf32>
    %73 = arith.subf %69, %72 : vector<16x16xf32>
    %74 = math.exp %73 : vector<16x16xf32>
    %cst_48 = arith.constant dense<0.000000e+00> : vector<16xf32>
    %75 = vector.multi_reduction <add>, %74, %cst_48 [1] : vector<16x16xf32> to vector<16xf32>
    %76 = vector.shape_cast %75 : vector<16xf32> to vector<16x1xf32>
    %77 = tpu.reciprocal %76 {approx = true} : vector<16x1xf32> -> vector<16x1xf32>
    %78 = vector.broadcast %77 : vector<16x1xf32> to vector<16x16xf32>
    %79 = arith.mulf %74, %78 : vector<16x16xf32>
    %80 = vector.extract_strided_slice %41 {offsets = [0, 0], sizes = [16, 32], strides = [1, 1]} : vector<32x32xf32> to vector<16x32xf32>
    %cst_49 = arith.constant dense<0.000000e+00> : vector<16x32xf32>
    %81 = tpu.matmul %79, %80, %cst_49 {dimension_numbers = #tpu.dot_dimension_numbers<[1], [0], [0], [1], [0, 0, 1, 1], [], []>} : vector<16x16xf32>, vector<16x32xf32>, vector<16x32xf32> -> vector<16x32xf32>
    %cst_50 = arith.constant 0.000000e+00 : f32
    %82 = vector.broadcast %cst_50 : f32 to vector<16x32xf32>
    %83 = arith.cmpf ogt, %81, %82 : vector<16x32xf32>
    %cst_51 = arith.constant 0.000000e+00 : f32
    %84 = vector.broadcast %cst_51 : f32 to vector<16x32xf32>
    %85 = arith.minimumf %81, %84 : vector<16x32xf32>
    %86 = math.exp %85 : vector<16x32xf32>
    %cst_52 = arith.constant 1.000000e+00 : f32
    %87 = vector.broadcast %cst_52 : f32 to vector<16x32xf32>
    %88 = arith.subf %86, %87 : vector<16x32xf32>
    %89 = arith.select %83, %81, %88 : vector<16x32xi1>, vector<16x32xf32>
    %c0_53 = arith.constant 0 : index
    %c0_54 = arith.constant 0 : index
    %c0_55 = arith.constant 0 : index
    %90 = vector.load %arg5[%c0_53, %c0_54, %c0_55] : memref<2x20x16xf32, #tpu.memory_space<vmem>>, vector<1x20x16xf32>
    %91 = vector.shape_cast %90 : vector<1x20x16xf32> to vector<20x16xf32>
    %92 = vector.extract_strided_slice %91 {offsets = [0, 0], sizes = [4, 16], strides = [1, 1]} : vector<20x16xf32> to vector<4x16xf32>
    %93 = vector.extract_strided_slice %91 {offsets = [4, 0], sizes = [16, 4], strides = [1, 1]} : vector<20x16xf32> to vector<16x4xf32>
    %94 = vector.extract_strided_slice %20 {offsets = [0, 0], sizes = [4, 32], strides = [1, 1]} : vector<8x32xf32> to vector<4x32xf32>
    %cst_56 = arith.constant dense<0.000000e+00> : vector<16x32xf32>
    %95 = tpu.matmul %93, %94, %cst_56 {dimension_numbers = #tpu.dot_dimension_numbers<[1], [0], [0], [1], [0, 0, 1, 1], [], []>} : vector<16x4xf32>, vector<4x32xf32>, vector<16x32xf32> -> vector<16x32xf32>
    %96 = vector.extract_strided_slice %15 {offsets = [0, 0], sizes = [16, 32], strides = [1, 1]} : vector<32x32xf32> to vector<16x32xf32>
    %cst_57 = arith.constant dense<0.000000e+00> : vector<4x32xf32>
    %97 = tpu.matmul %92, %96, %cst_57 {dimension_numbers = #tpu.dot_dimension_numbers<[1], [0], [0], [1], [0, 0, 1, 1], [], []>} : vector<4x16xf32>, vector<16x32xf32>, vector<4x32xf32> -> vector<4x32xf32>
    %c1 = arith.constant 1 : index
    %c0_58 = arith.constant 0 : index
    %c0_59 = arith.constant 0 : index
    %98 = vector.load %arg2[%c1, %c0_58, %c0_59] : memref<2x16x16xf32, #tpu.memory_space<vmem>>, vector<1x16x16xf32>
    %99 = vector.shape_cast %98 : vector<1x16x16xf32> to vector<16x16xf32>
    %c1_60 = arith.constant 1 : index
    %c0_61 = arith.constant 0 : index
    %c0_62 = arith.constant 0 : index
    %100 = vector.load %arg3[%c1_60, %c0_61, %c0_62] : memref<2x16x16xi32, #tpu.memory_space<vmem>>, vector<1x16x16xi32>
    %101 = vector.shape_cast %100 : vector<1x16x16xi32> to vector<16x16xi32>
    %102 = vector.extract_strided_slice %42 {offsets = [16, 0], sizes = [16, 1], strides = [1, 1]} : vector<32x1xf32> to vector<16x1xf32>
    %103 = vector.extract_strided_slice %43 {offsets = [0, 16], sizes = [1, 16], strides = [1, 1]} : vector<1x32xf32> to vector<1x16xf32>
    %104 = vector.broadcast %102 : vector<16x1xf32> to vector<16x16xf32>
    %105 = vector.broadcast %103 : vector<1x16xf32> to vector<16x16xf32>
    %106 = arith.addf %104, %105 : vector<16x16xf32>
    %c0_i32_63 = arith.constant 0 : i32
    %107 = vector.broadcast %c0_i32_63 : i32 to vector<16x16xi32>
    %108 = arith.cmpi eq, %101, %107 : vector<16x16xi32>
    %109 = vector.shape_cast %35 : vector<1x1xf32> to vector<1x1xf32>
    %110 = vector.broadcast %109 : vector<1x1xf32> to vector<16x16xf32>
    %111 = vector.shape_cast %36 : vector<1x1xf32> to vector<1x1xf32>
    %112 = vector.broadcast %111 : vector<1x1xf32> to vector<16x16xf32>
    %113 = arith.select %108, %110, %112 : vector<16x16xi1>, vector<16x16xf32>
    %114 = arith.addf %106, %113 : vector<16x16xf32>
    %cst_64 = arith.constant 0.000000e+00 : f32
    %115 = vector.broadcast %cst_64 : f32 to vector<16x16xf32>
    %116 = arith.cmpf ogt, %114, %115 : vector<16x16xf32>
    %cst_65 = arith.constant 1.000000e-01 : f32
    %117 = vector.broadcast %cst_65 : f32 to vector<16x16xf32>
    %118 = arith.mulf %117, %114 : vector<16x16xf32>
    %119 = arith.select %116, %114, %118 : vector<16x16xi1>, vector<16x16xf32>
    %cst_66 = arith.constant 0.000000e+00 : f32
    %120 = vector.broadcast %cst_66 : f32 to vector<16x16xf32>
    %121 = arith.cmpf ogt, %99, %120 : vector<16x16xf32>
    %cst_67 = arith.constant -9.000000e+15 : f32
    %122 = vector.broadcast %cst_67 : f32 to vector<16x16xf32>
    %123 = arith.select %121, %119, %122 : vector<16x16xi1>, vector<16x16xf32>
    %cst_68 = arith.constant dense<0xFF800000> : vector<16xf32>
    %124 = vector.multi_reduction <maximumf>, %123, %cst_68 [1] : vector<16x16xf32> to vector<16xf32>
    %125 = vector.shape_cast %124 : vector<16xf32> to vector<16x1xf32>
    %126 = vector.broadcast %125 : vector<16x1xf32> to vector<16x16xf32>
    %127 = arith.subf %123, %126 : vector<16x16xf32>
    %128 = math.exp %127 : vector<16x16xf32>
    %cst_69 = arith.constant dense<0.000000e+00> : vector<16xf32>
    %129 = vector.multi_reduction <add>, %128, %cst_69 [1] : vector<16x16xf32> to vector<16xf32>
    %130 = vector.shape_cast %129 : vector<16xf32> to vector<16x1xf32>
    %131 = tpu.reciprocal %130 {approx = true} : vector<16x1xf32> -> vector<16x1xf32>
    %132 = vector.broadcast %131 : vector<16x1xf32> to vector<16x16xf32>
    %133 = arith.mulf %128, %132 : vector<16x16xf32>
    %134 = vector.extract_strided_slice %41 {offsets = [16, 0], sizes = [16, 32], strides = [1, 1]} : vector<32x32xf32> to vector<16x32xf32>
    %cst_70 = arith.constant dense<0.000000e+00> : vector<16x32xf32>
    %135 = tpu.matmul %133, %134, %cst_70 {dimension_numbers = #tpu.dot_dimension_numbers<[1], [0], [0], [1], [0, 0, 1, 1], [], []>} : vector<16x16xf32>, vector<16x32xf32>, vector<16x32xf32> -> vector<16x32xf32>
    %cst_71 = arith.constant 0.000000e+00 : f32
    %136 = vector.broadcast %cst_71 : f32 to vector<16x32xf32>
    %137 = arith.cmpf ogt, %135, %136 : vector<16x32xf32>
    %cst_72 = arith.constant 0.000000e+00 : f32
    %138 = vector.broadcast %cst_72 : f32 to vector<16x32xf32>
    %139 = arith.minimumf %135, %138 : vector<16x32xf32>
    %140 = math.exp %139 : vector<16x32xf32>
    %cst_73 = arith.constant 1.000000e+00 : f32
    %141 = vector.broadcast %cst_73 : f32 to vector<16x32xf32>
    %142 = arith.subf %140, %141 : vector<16x32xf32>
    %143 = arith.select %137, %135, %142 : vector<16x32xi1>, vector<16x32xf32>
    %c1_74 = arith.constant 1 : index
    %c0_75 = arith.constant 0 : index
    %c0_76 = arith.constant 0 : index
    %144 = vector.load %arg5[%c1_74, %c0_75, %c0_76] : memref<2x20x16xf32, #tpu.memory_space<vmem>>, vector<1x20x16xf32>
    %145 = vector.shape_cast %144 : vector<1x20x16xf32> to vector<20x16xf32>
    %146 = vector.extract_strided_slice %145 {offsets = [0, 0], sizes = [4, 16], strides = [1, 1]} : vector<20x16xf32> to vector<4x16xf32>
    %147 = vector.extract_strided_slice %145 {offsets = [4, 0], sizes = [16, 4], strides = [1, 1]} : vector<20x16xf32> to vector<16x4xf32>
    %148 = vector.extract_strided_slice %20 {offsets = [4, 0], sizes = [4, 32], strides = [1, 1]} : vector<8x32xf32> to vector<4x32xf32>
    %cst_77 = arith.constant dense<0.000000e+00> : vector<16x32xf32>
    %149 = tpu.matmul %147, %148, %cst_77 {dimension_numbers = #tpu.dot_dimension_numbers<[1], [0], [0], [1], [0, 0, 1, 1], [], []>} : vector<16x4xf32>, vector<4x32xf32>, vector<16x32xf32> -> vector<16x32xf32>
    %150 = vector.extract_strided_slice %15 {offsets = [16, 0], sizes = [16, 32], strides = [1, 1]} : vector<32x32xf32> to vector<16x32xf32>
    %cst_78 = arith.constant dense<0.000000e+00> : vector<4x32xf32>
    %151 = tpu.matmul %146, %150, %cst_78 {dimension_numbers = #tpu.dot_dimension_numbers<[1], [0], [0], [1], [0, 0, 1, 1], [], []>} : vector<4x16xf32>, vector<16x32xf32>, vector<4x32xf32> -> vector<4x32xf32>
    %152 = tpu.concatenate %89, %143 in 0 : vector<16x32xf32>, vector<16x32xf32> -> vector<32x32xf32>
    %153 = tpu.concatenate %95, %149 in 0 : vector<16x32xf32>, vector<16x32xf32> -> vector<32x32xf32>
    %154 = tpu.concatenate %97, %151 in 0 : vector<4x32xf32>, vector<4x32xf32> -> vector<8x32xf32>
    %cst_79 = arith.constant dense<0.000000e+00> : vector<32x32xf32>
    %155 = tpu.matmul %15, %24, %cst_79 {dimension_numbers = #tpu.dot_dimension_numbers<[1], [0], [0], [1], [0, 0, 1, 1], [], []>} : vector<32x32xf32>, vector<32x32xf32>, vector<32x32xf32> -> vector<32x32xf32>
    %cst_80 = arith.constant dense<0.000000e+00> : vector<32x32xf32>
    %156 = tpu.matmul %153, %26, %cst_80 {dimension_numbers = #tpu.dot_dimension_numbers<[1], [0], [0], [1], [0, 0, 1, 1], [], []>} : vector<32x32xf32>, vector<32x32xf32>, vector<32x32xf32> -> vector<32x32xf32>
    %157 = arith.addf %155, %156 : vector<32x32xf32>
    %cst_81 = arith.constant dense<0.000000e+00> : vector<32x32xf32>
    %158 = tpu.matmul %152, %28, %cst_81 {dimension_numbers = #tpu.dot_dimension_numbers<[1], [0], [0], [1], [0, 0, 1, 1], [], []>} : vector<32x32xf32>, vector<32x32xf32>, vector<32x32xf32> -> vector<32x32xf32>
    %159 = arith.addf %157, %158 : vector<32x32xf32>
    %160 = vector.broadcast %34 : vector<1x32xf32> to vector<32x32xf32>
    %161 = arith.addf %159, %160 : vector<32x32xf32>
    %cst_82 = arith.constant 0.000000e+00 : f32
    %162 = vector.broadcast %cst_82 : f32 to vector<32x32xf32>
    %163 = arith.maximumf %161, %162 : vector<32x32xf32>
    %cst_83 = arith.constant dense<0.000000e+00> : vector<8x96xf32>
    %164 = tpu.matmul %20, %38, %cst_83 {dimension_numbers = #tpu.dot_dimension_numbers<[1], [0], [0], [1], [0, 0, 1, 1], [], []>} : vector<8x32xf32>, vector<32x96xf32>, vector<8x96xf32> -> vector<8x96xf32>
    %cst_84 = arith.constant dense<0.000000e+00> : vector<8x96xf32>
    %165 = tpu.matmul %154, %40, %cst_84 {dimension_numbers = #tpu.dot_dimension_numbers<[1], [0], [0], [1], [0, 0, 1, 1], [], []>} : vector<8x32xf32>, vector<32x96xf32>, vector<8x96xf32> -> vector<8x96xf32>
    %166 = vector.extract_strided_slice %164 {offsets = [0, 0], sizes = [8, 32], strides = [1, 1]} : vector<8x96xf32> to vector<8x32xf32>
    %167 = vector.extract_strided_slice %165 {offsets = [0, 0], sizes = [8, 32], strides = [1, 1]} : vector<8x96xf32> to vector<8x32xf32>
    %168 = arith.addf %166, %167 : vector<8x32xf32>
    %169 = arith.negf %168 : vector<8x32xf32>
    %170 = math.exp %169 : vector<8x32xf32>
    %cst_85 = arith.constant 1.000000e+00 : f32
    %171 = vector.broadcast %cst_85 : f32 to vector<8x32xf32>
    %172 = arith.addf %171, %170 : vector<8x32xf32>
    %173 = arith.divf %171, %172 : vector<8x32xf32>
    %174 = vector.extract_strided_slice %164 {offsets = [0, 32], sizes = [8, 32], strides = [1, 1]} : vector<8x96xf32> to vector<8x32xf32>
    %175 = vector.extract_strided_slice %165 {offsets = [0, 32], sizes = [8, 32], strides = [1, 1]} : vector<8x96xf32> to vector<8x32xf32>
    %176 = arith.addf %174, %175 : vector<8x32xf32>
    %177 = arith.negf %176 : vector<8x32xf32>
    %178 = math.exp %177 : vector<8x32xf32>
    %cst_86 = arith.constant 1.000000e+00 : f32
    %179 = vector.broadcast %cst_86 : f32 to vector<8x32xf32>
    %180 = arith.addf %179, %178 : vector<8x32xf32>
    %181 = arith.divf %179, %180 : vector<8x32xf32>
    %182 = vector.extract_strided_slice %164 {offsets = [0, 64], sizes = [8, 32], strides = [1, 1]} : vector<8x96xf32> to vector<8x32xf32>
    %183 = vector.extract_strided_slice %165 {offsets = [0, 64], sizes = [8, 32], strides = [1, 1]} : vector<8x96xf32> to vector<8x32xf32>
    %184 = arith.mulf %181, %183 : vector<8x32xf32>
    %185 = arith.addf %182, %184 : vector<8x32xf32>
    %186 = math.tanh %185 : vector<8x32xf32>
    %cst_87 = arith.constant 1.000000e+00 : f32
    %187 = vector.broadcast %cst_87 : f32 to vector<8x32xf32>
    %188 = arith.subf %187, %173 : vector<8x32xf32>
    %189 = arith.mulf %188, %20 : vector<8x32xf32>
    %190 = arith.mulf %173, %186 : vector<8x32xf32>
    %191 = arith.addf %189, %190 : vector<8x32xf32>
    %c1_88 = arith.constant 1 : index
    %c0_89 = arith.constant 0 : index
    %c0_90 = arith.constant 0 : index
    %192 = vector.load %arg7[%c1_88, %c0_89, %c0_90] : memref<2x168x32xf32, #tpu.memory_space<vmem>>, vector<1x32x32xf32>
    %193 = vector.shape_cast %192 : vector<1x32x32xf32> to vector<32x32xf32>
    %c1_91 = arith.constant 1 : index
    %c32_92 = arith.constant 32 : index
    %c0_93 = arith.constant 0 : index
    %194 = vector.load %arg7[%c1_91, %c32_92, %c0_93] : memref<2x168x32xf32, #tpu.memory_space<vmem>>, vector<1x32x32xf32>
    %195 = vector.shape_cast %194 : vector<1x32x32xf32> to vector<32x32xf32>
    %c1_94 = arith.constant 1 : index
    %c64_95 = arith.constant 64 : index
    %c0_96 = arith.constant 0 : index
    %196 = vector.load %arg7[%c1_94, %c64_95, %c0_96] : memref<2x168x32xf32, #tpu.memory_space<vmem>>, vector<1x32x32xf32>
    %197 = vector.shape_cast %196 : vector<1x32x32xf32> to vector<32x32xf32>
    %c1_97 = arith.constant 1 : index
    %c96_98 = arith.constant 96 : index
    %c0_99 = arith.constant 0 : index
    %198 = vector.load %arg7[%c1_97, %c96_98, %c0_99] : memref<2x168x32xf32, #tpu.memory_space<vmem>>, vector<1x32x32xf32>
    %199 = vector.shape_cast %198 : vector<1x32x32xf32> to vector<32x32xf32>
    %c1_100 = arith.constant 1 : index
    %c128_101 = arith.constant 128 : index
    %c0_102 = arith.constant 0 : index
    %200 = vector.load %arg7[%c1_100, %c128_101, %c0_102] : memref<2x168x32xf32, #tpu.memory_space<vmem>>, vector<1x32x1xf32>
    %201 = vector.shape_cast %200 : vector<1x32x1xf32> to vector<32x1xf32>
    %c1_103 = arith.constant 1 : index
    %c160_104 = arith.constant 160 : index
    %c0_105 = arith.constant 0 : index
    %202 = vector.load %arg7[%c1_103, %c160_104, %c0_105] : memref<2x168x32xf32, #tpu.memory_space<vmem>>, vector<1x8x32xf32>
    %203 = vector.shape_cast %202 : vector<1x8x32xf32> to vector<8x32xf32>
    %204 = vector.extract_strided_slice %203 {offsets = [0, 0], sizes = [1, 32], strides = [1, 1]} : vector<8x32xf32> to vector<1x32xf32>
    %205 = vector.extract_strided_slice %203 {offsets = [1, 0], sizes = [1, 32], strides = [1, 1]} : vector<8x32xf32> to vector<1x32xf32>
    %206 = vector.extract_strided_slice %203 {offsets = [2, 0], sizes = [1, 1], strides = [1, 1]} : vector<8x32xf32> to vector<1x1xf32>
    %207 = vector.extract_strided_slice %203 {offsets = [2, 1], sizes = [1, 1], strides = [1, 1]} : vector<8x32xf32> to vector<1x1xf32>
    %c1_106 = arith.constant 1 : index
    %c0_107 = arith.constant 0 : index
    %c0_108 = arith.constant 0 : index
    %208 = vector.load %arg8[%c1_106, %c0_107, %c0_108] : memref<2x64x96xf32, #tpu.memory_space<vmem>>, vector<1x32x96xf32>
    %209 = vector.shape_cast %208 : vector<1x32x96xf32> to vector<32x96xf32>
    %c1_109 = arith.constant 1 : index
    %c32_110 = arith.constant 32 : index
    %c0_111 = arith.constant 0 : index
    %210 = vector.load %arg8[%c1_109, %c32_110, %c0_111] : memref<2x64x96xf32, #tpu.memory_space<vmem>>, vector<1x32x96xf32>
    %211 = vector.shape_cast %210 : vector<1x32x96xf32> to vector<32x96xf32>
    %cst_112 = arith.constant dense<0.000000e+00> : vector<32x32xf32>
    %212 = tpu.matmul %163, %193, %cst_112 {dimension_numbers = #tpu.dot_dimension_numbers<[1], [0], [0], [1], [0, 0, 1, 1], [], []>} : vector<32x32xf32>, vector<32x32xf32>, vector<32x32xf32> -> vector<32x32xf32>
    %cst_113 = arith.constant dense<0.000000e+00> : vector<32x1xf32>
    %213 = tpu.matmul %163, %201, %cst_113 {dimension_numbers = #tpu.dot_dimension_numbers<[1], [0], [0], [1], [0, 0, 1, 1], [], []>} : vector<32x32xf32>, vector<32x1xf32>, vector<32x1xf32> -> vector<32x1xf32>
    %cst_114 = arith.constant dense<0.000000e+00> : vector<1x32xf32>
    %214 = tpu.matmul %204, %163, %cst_114 {dimension_numbers = #tpu.dot_dimension_numbers<[1], [1], [0], [0], [0, 0, 1, 0], [], []>} : vector<1x32xf32>, vector<32x32xf32>, vector<1x32xf32> -> vector<1x32xf32>
    %c0_115 = arith.constant 0 : index
    %c0_116 = arith.constant 0 : index
    %c0_117 = arith.constant 0 : index
    %215 = vector.load %arg2[%c0_115, %c0_116, %c0_117] : memref<2x16x16xf32, #tpu.memory_space<vmem>>, vector<1x16x16xf32>
    %216 = vector.shape_cast %215 : vector<1x16x16xf32> to vector<16x16xf32>
    %c0_118 = arith.constant 0 : index
    %c0_119 = arith.constant 0 : index
    %c0_120 = arith.constant 0 : index
    %217 = vector.load %arg3[%c0_118, %c0_119, %c0_120] : memref<2x16x16xi32, #tpu.memory_space<vmem>>, vector<1x16x16xi32>
    %218 = vector.shape_cast %217 : vector<1x16x16xi32> to vector<16x16xi32>
    %219 = vector.extract_strided_slice %213 {offsets = [0, 0], sizes = [16, 1], strides = [1, 1]} : vector<32x1xf32> to vector<16x1xf32>
    %220 = vector.extract_strided_slice %214 {offsets = [0, 0], sizes = [1, 16], strides = [1, 1]} : vector<1x32xf32> to vector<1x16xf32>
    %221 = vector.broadcast %219 : vector<16x1xf32> to vector<16x16xf32>
    %222 = vector.broadcast %220 : vector<1x16xf32> to vector<16x16xf32>
    %223 = arith.addf %221, %222 : vector<16x16xf32>
    %c0_i32_121 = arith.constant 0 : i32
    %224 = vector.broadcast %c0_i32_121 : i32 to vector<16x16xi32>
    %225 = arith.cmpi eq, %218, %224 : vector<16x16xi32>
    %226 = vector.shape_cast %206 : vector<1x1xf32> to vector<1x1xf32>
    %227 = vector.broadcast %226 : vector<1x1xf32> to vector<16x16xf32>
    %228 = vector.shape_cast %207 : vector<1x1xf32> to vector<1x1xf32>
    %229 = vector.broadcast %228 : vector<1x1xf32> to vector<16x16xf32>
    %230 = arith.select %225, %227, %229 : vector<16x16xi1>, vector<16x16xf32>
    %231 = arith.addf %223, %230 : vector<16x16xf32>
    %cst_122 = arith.constant 0.000000e+00 : f32
    %232 = vector.broadcast %cst_122 : f32 to vector<16x16xf32>
    %233 = arith.cmpf ogt, %231, %232 : vector<16x16xf32>
    %cst_123 = arith.constant 1.000000e-01 : f32
    %234 = vector.broadcast %cst_123 : f32 to vector<16x16xf32>
    %235 = arith.mulf %234, %231 : vector<16x16xf32>
    %236 = arith.select %233, %231, %235 : vector<16x16xi1>, vector<16x16xf32>
    %cst_124 = arith.constant 0.000000e+00 : f32
    %237 = vector.broadcast %cst_124 : f32 to vector<16x16xf32>
    %238 = arith.cmpf ogt, %216, %237 : vector<16x16xf32>
    %cst_125 = arith.constant -9.000000e+15 : f32
    %239 = vector.broadcast %cst_125 : f32 to vector<16x16xf32>
    %240 = arith.select %238, %236, %239 : vector<16x16xi1>, vector<16x16xf32>
    %cst_126 = arith.constant dense<0xFF800000> : vector<16xf32>
    %241 = vector.multi_reduction <maximumf>, %240, %cst_126 [1] : vector<16x16xf32> to vector<16xf32>
    %242 = vector.shape_cast %241 : vector<16xf32> to vector<16x1xf32>
    %243 = vector.broadcast %242 : vector<16x1xf32> to vector<16x16xf32>
    %244 = arith.subf %240, %243 : vector<16x16xf32>
    %245 = math.exp %244 : vector<16x16xf32>
    %cst_127 = arith.constant dense<0.000000e+00> : vector<16xf32>
    %246 = vector.multi_reduction <add>, %245, %cst_127 [1] : vector<16x16xf32> to vector<16xf32>
    %247 = vector.shape_cast %246 : vector<16xf32> to vector<16x1xf32>
    %248 = tpu.reciprocal %247 {approx = true} : vector<16x1xf32> -> vector<16x1xf32>
    %249 = vector.broadcast %248 : vector<16x1xf32> to vector<16x16xf32>
    %250 = arith.mulf %245, %249 : vector<16x16xf32>
    %251 = vector.extract_strided_slice %212 {offsets = [0, 0], sizes = [16, 32], strides = [1, 1]} : vector<32x32xf32> to vector<16x32xf32>
    %cst_128 = arith.constant dense<0.000000e+00> : vector<16x32xf32>
    %252 = tpu.matmul %250, %251, %cst_128 {dimension_numbers = #tpu.dot_dimension_numbers<[1], [0], [0], [1], [0, 0, 1, 1], [], []>} : vector<16x16xf32>, vector<16x32xf32>, vector<16x32xf32> -> vector<16x32xf32>
    %cst_129 = arith.constant 0.000000e+00 : f32
    %253 = vector.broadcast %cst_129 : f32 to vector<16x32xf32>
    %254 = arith.cmpf ogt, %252, %253 : vector<16x32xf32>
    %cst_130 = arith.constant 0.000000e+00 : f32
    %255 = vector.broadcast %cst_130 : f32 to vector<16x32xf32>
    %256 = arith.minimumf %252, %255 : vector<16x32xf32>
    %257 = math.exp %256 : vector<16x32xf32>
    %cst_131 = arith.constant 1.000000e+00 : f32
    %258 = vector.broadcast %cst_131 : f32 to vector<16x32xf32>
    %259 = arith.subf %257, %258 : vector<16x32xf32>
    %260 = arith.select %254, %252, %259 : vector<16x32xi1>, vector<16x32xf32>
    %c0_132 = arith.constant 0 : index
    %c0_133 = arith.constant 0 : index
    %c0_134 = arith.constant 0 : index
    %261 = vector.load %arg5[%c0_132, %c0_133, %c0_134] : memref<2x20x16xf32, #tpu.memory_space<vmem>>, vector<1x20x16xf32>
    %262 = vector.shape_cast %261 : vector<1x20x16xf32> to vector<20x16xf32>
    %263 = vector.extract_strided_slice %262 {offsets = [0, 0], sizes = [4, 16], strides = [1, 1]} : vector<20x16xf32> to vector<4x16xf32>
    %264 = vector.extract_strided_slice %262 {offsets = [4, 0], sizes = [16, 4], strides = [1, 1]} : vector<20x16xf32> to vector<16x4xf32>
    %265 = vector.extract_strided_slice %191 {offsets = [0, 0], sizes = [4, 32], strides = [1, 1]} : vector<8x32xf32> to vector<4x32xf32>
    %cst_135 = arith.constant dense<0.000000e+00> : vector<16x32xf32>
    %266 = tpu.matmul %264, %265, %cst_135 {dimension_numbers = #tpu.dot_dimension_numbers<[1], [0], [0], [1], [0, 0, 1, 1], [], []>} : vector<16x4xf32>, vector<4x32xf32>, vector<16x32xf32> -> vector<16x32xf32>
    %267 = vector.extract_strided_slice %163 {offsets = [0, 0], sizes = [16, 32], strides = [1, 1]} : vector<32x32xf32> to vector<16x32xf32>
    %cst_136 = arith.constant dense<0.000000e+00> : vector<4x32xf32>
    %268 = tpu.matmul %263, %267, %cst_136 {dimension_numbers = #tpu.dot_dimension_numbers<[1], [0], [0], [1], [0, 0, 1, 1], [], []>} : vector<4x16xf32>, vector<16x32xf32>, vector<4x32xf32> -> vector<4x32xf32>
    %c1_137 = arith.constant 1 : index
    %c0_138 = arith.constant 0 : index
    %c0_139 = arith.constant 0 : index
    %269 = vector.load %arg2[%c1_137, %c0_138, %c0_139] : memref<2x16x16xf32, #tpu.memory_space<vmem>>, vector<1x16x16xf32>
    %270 = vector.shape_cast %269 : vector<1x16x16xf32> to vector<16x16xf32>
    %c1_140 = arith.constant 1 : index
    %c0_141 = arith.constant 0 : index
    %c0_142 = arith.constant 0 : index
    %271 = vector.load %arg3[%c1_140, %c0_141, %c0_142] : memref<2x16x16xi32, #tpu.memory_space<vmem>>, vector<1x16x16xi32>
    %272 = vector.shape_cast %271 : vector<1x16x16xi32> to vector<16x16xi32>
    %273 = vector.extract_strided_slice %213 {offsets = [16, 0], sizes = [16, 1], strides = [1, 1]} : vector<32x1xf32> to vector<16x1xf32>
    %274 = vector.extract_strided_slice %214 {offsets = [0, 16], sizes = [1, 16], strides = [1, 1]} : vector<1x32xf32> to vector<1x16xf32>
    %275 = vector.broadcast %273 : vector<16x1xf32> to vector<16x16xf32>
    %276 = vector.broadcast %274 : vector<1x16xf32> to vector<16x16xf32>
    %277 = arith.addf %275, %276 : vector<16x16xf32>
    %c0_i32_143 = arith.constant 0 : i32
    %278 = vector.broadcast %c0_i32_143 : i32 to vector<16x16xi32>
    %279 = arith.cmpi eq, %272, %278 : vector<16x16xi32>
    %280 = vector.shape_cast %206 : vector<1x1xf32> to vector<1x1xf32>
    %281 = vector.broadcast %280 : vector<1x1xf32> to vector<16x16xf32>
    %282 = vector.shape_cast %207 : vector<1x1xf32> to vector<1x1xf32>
    %283 = vector.broadcast %282 : vector<1x1xf32> to vector<16x16xf32>
    %284 = arith.select %279, %281, %283 : vector<16x16xi1>, vector<16x16xf32>
    %285 = arith.addf %277, %284 : vector<16x16xf32>
    %cst_144 = arith.constant 0.000000e+00 : f32
    %286 = vector.broadcast %cst_144 : f32 to vector<16x16xf32>
    %287 = arith.cmpf ogt, %285, %286 : vector<16x16xf32>
    %cst_145 = arith.constant 1.000000e-01 : f32
    %288 = vector.broadcast %cst_145 : f32 to vector<16x16xf32>
    %289 = arith.mulf %288, %285 : vector<16x16xf32>
    %290 = arith.select %287, %285, %289 : vector<16x16xi1>, vector<16x16xf32>
    %cst_146 = arith.constant 0.000000e+00 : f32
    %291 = vector.broadcast %cst_146 : f32 to vector<16x16xf32>
    %292 = arith.cmpf ogt, %270, %291 : vector<16x16xf32>
    %cst_147 = arith.constant -9.000000e+15 : f32
    %293 = vector.broadcast %cst_147 : f32 to vector<16x16xf32>
    %294 = arith.select %292, %290, %293 : vector<16x16xi1>, vector<16x16xf32>
    %cst_148 = arith.constant dense<0xFF800000> : vector<16xf32>
    %295 = vector.multi_reduction <maximumf>, %294, %cst_148 [1] : vector<16x16xf32> to vector<16xf32>
    %296 = vector.shape_cast %295 : vector<16xf32> to vector<16x1xf32>
    %297 = vector.broadcast %296 : vector<16x1xf32> to vector<16x16xf32>
    %298 = arith.subf %294, %297 : vector<16x16xf32>
    %299 = math.exp %298 : vector<16x16xf32>
    %cst_149 = arith.constant dense<0.000000e+00> : vector<16xf32>
    %300 = vector.multi_reduction <add>, %299, %cst_149 [1] : vector<16x16xf32> to vector<16xf32>
    %301 = vector.shape_cast %300 : vector<16xf32> to vector<16x1xf32>
    %302 = tpu.reciprocal %301 {approx = true} : vector<16x1xf32> -> vector<16x1xf32>
    %303 = vector.broadcast %302 : vector<16x1xf32> to vector<16x16xf32>
    %304 = arith.mulf %299, %303 : vector<16x16xf32>
    %305 = vector.extract_strided_slice %212 {offsets = [16, 0], sizes = [16, 32], strides = [1, 1]} : vector<32x32xf32> to vector<16x32xf32>
    %cst_150 = arith.constant dense<0.000000e+00> : vector<16x32xf32>
    %306 = tpu.matmul %304, %305, %cst_150 {dimension_numbers = #tpu.dot_dimension_numbers<[1], [0], [0], [1], [0, 0, 1, 1], [], []>} : vector<16x16xf32>, vector<16x32xf32>, vector<16x32xf32> -> vector<16x32xf32>
    %cst_151 = arith.constant 0.000000e+00 : f32
    %307 = vector.broadcast %cst_151 : f32 to vector<16x32xf32>
    %308 = arith.cmpf ogt, %306, %307 : vector<16x32xf32>
    %cst_152 = arith.constant 0.000000e+00 : f32
    %309 = vector.broadcast %cst_152 : f32 to vector<16x32xf32>
    %310 = arith.minimumf %306, %309 : vector<16x32xf32>
    %311 = math.exp %310 : vector<16x32xf32>
    %cst_153 = arith.constant 1.000000e+00 : f32
    %312 = vector.broadcast %cst_153 : f32 to vector<16x32xf32>
    %313 = arith.subf %311, %312 : vector<16x32xf32>
    %314 = arith.select %308, %306, %313 : vector<16x32xi1>, vector<16x32xf32>
    %c1_154 = arith.constant 1 : index
    %c0_155 = arith.constant 0 : index
    %c0_156 = arith.constant 0 : index
    %315 = vector.load %arg5[%c1_154, %c0_155, %c0_156] : memref<2x20x16xf32, #tpu.memory_space<vmem>>, vector<1x20x16xf32>
    %316 = vector.shape_cast %315 : vector<1x20x16xf32> to vector<20x16xf32>
    %317 = vector.extract_strided_slice %316 {offsets = [0, 0], sizes = [4, 16], strides = [1, 1]} : vector<20x16xf32> to vector<4x16xf32>
    %318 = vector.extract_strided_slice %316 {offsets = [4, 0], sizes = [16, 4], strides = [1, 1]} : vector<20x16xf32> to vector<16x4xf32>
    %319 = vector.extract_strided_slice %191 {offsets = [4, 0], sizes = [4, 32], strides = [1, 1]} : vector<8x32xf32> to vector<4x32xf32>
    %cst_157 = arith.constant dense<0.000000e+00> : vector<16x32xf32>
    %320 = tpu.matmul %318, %319, %cst_157 {dimension_numbers = #tpu.dot_dimension_numbers<[1], [0], [0], [1], [0, 0, 1, 1], [], []>} : vector<16x4xf32>, vector<4x32xf32>, vector<16x32xf32> -> vector<16x32xf32>
    %321 = vector.extract_strided_slice %163 {offsets = [16, 0], sizes = [16, 32], strides = [1, 1]} : vector<32x32xf32> to vector<16x32xf32>
    %cst_158 = arith.constant dense<0.000000e+00> : vector<4x32xf32>
    %322 = tpu.matmul %317, %321, %cst_158 {dimension_numbers = #tpu.dot_dimension_numbers<[1], [0], [0], [1], [0, 0, 1, 1], [], []>} : vector<4x16xf32>, vector<16x32xf32>, vector<4x32xf32> -> vector<4x32xf32>
    %323 = tpu.concatenate %260, %314 in 0 : vector<16x32xf32>, vector<16x32xf32> -> vector<32x32xf32>
    %324 = tpu.concatenate %266, %320 in 0 : vector<16x32xf32>, vector<16x32xf32> -> vector<32x32xf32>
    %325 = tpu.concatenate %268, %322 in 0 : vector<4x32xf32>, vector<4x32xf32> -> vector<8x32xf32>
    %cst_159 = arith.constant dense<0.000000e+00> : vector<32x32xf32>
    %326 = tpu.matmul %163, %195, %cst_159 {dimension_numbers = #tpu.dot_dimension_numbers<[1], [0], [0], [1], [0, 0, 1, 1], [], []>} : vector<32x32xf32>, vector<32x32xf32>, vector<32x32xf32> -> vector<32x32xf32>
    %cst_160 = arith.constant dense<0.000000e+00> : vector<32x32xf32>
    %327 = tpu.matmul %324, %197, %cst_160 {dimension_numbers = #tpu.dot_dimension_numbers<[1], [0], [0], [1], [0, 0, 1, 1], [], []>} : vector<32x32xf32>, vector<32x32xf32>, vector<32x32xf32> -> vector<32x32xf32>
    %328 = arith.addf %326, %327 : vector<32x32xf32>
    %cst_161 = arith.constant dense<0.000000e+00> : vector<32x32xf32>
    %329 = tpu.matmul %323, %199, %cst_161 {dimension_numbers = #tpu.dot_dimension_numbers<[1], [0], [0], [1], [0, 0, 1, 1], [], []>} : vector<32x32xf32>, vector<32x32xf32>, vector<32x32xf32> -> vector<32x32xf32>
    %330 = arith.addf %328, %329 : vector<32x32xf32>
    %331 = vector.broadcast %205 : vector<1x32xf32> to vector<32x32xf32>
    %332 = arith.addf %330, %331 : vector<32x32xf32>
    %cst_162 = arith.constant 0.000000e+00 : f32
    %333 = vector.broadcast %cst_162 : f32 to vector<32x32xf32>
    %334 = arith.maximumf %332, %333 : vector<32x32xf32>
    %cst_163 = arith.constant dense<0.000000e+00> : vector<8x96xf32>
    %335 = tpu.matmul %191, %209, %cst_163 {dimension_numbers = #tpu.dot_dimension_numbers<[1], [0], [0], [1], [0, 0, 1, 1], [], []>} : vector<8x32xf32>, vector<32x96xf32>, vector<8x96xf32> -> vector<8x96xf32>
    %cst_164 = arith.constant dense<0.000000e+00> : vector<8x96xf32>
    %336 = tpu.matmul %325, %211, %cst_164 {dimension_numbers = #tpu.dot_dimension_numbers<[1], [0], [0], [1], [0, 0, 1, 1], [], []>} : vector<8x32xf32>, vector<32x96xf32>, vector<8x96xf32> -> vector<8x96xf32>
    %337 = vector.extract_strided_slice %335 {offsets = [0, 0], sizes = [8, 32], strides = [1, 1]} : vector<8x96xf32> to vector<8x32xf32>
    %338 = vector.extract_strided_slice %336 {offsets = [0, 0], sizes = [8, 32], strides = [1, 1]} : vector<8x96xf32> to vector<8x32xf32>
    %339 = arith.addf %337, %338 : vector<8x32xf32>
    %340 = arith.negf %339 : vector<8x32xf32>
    %341 = math.exp %340 : vector<8x32xf32>
    %cst_165 = arith.constant 1.000000e+00 : f32
    %342 = vector.broadcast %cst_165 : f32 to vector<8x32xf32>
    %343 = arith.addf %342, %341 : vector<8x32xf32>
    %344 = arith.divf %342, %343 : vector<8x32xf32>
    %345 = vector.extract_strided_slice %335 {offsets = [0, 32], sizes = [8, 32], strides = [1, 1]} : vector<8x96xf32> to vector<8x32xf32>
    %346 = vector.extract_strided_slice %336 {offsets = [0, 32], sizes = [8, 32], strides = [1, 1]} : vector<8x96xf32> to vector<8x32xf32>
    %347 = arith.addf %345, %346 : vector<8x32xf32>
    %348 = arith.negf %347 : vector<8x32xf32>
    %349 = math.exp %348 : vector<8x32xf32>
    %cst_166 = arith.constant 1.000000e+00 : f32
    %350 = vector.broadcast %cst_166 : f32 to vector<8x32xf32>
    %351 = arith.addf %350, %349 : vector<8x32xf32>
    %352 = arith.divf %350, %351 : vector<8x32xf32>
    %353 = vector.extract_strided_slice %335 {offsets = [0, 64], sizes = [8, 32], strides = [1, 1]} : vector<8x96xf32> to vector<8x32xf32>
    %354 = vector.extract_strided_slice %336 {offsets = [0, 64], sizes = [8, 32], strides = [1, 1]} : vector<8x96xf32> to vector<8x32xf32>
    %355 = arith.mulf %352, %354 : vector<8x32xf32>
    %356 = arith.addf %353, %355 : vector<8x32xf32>
    %357 = math.tanh %356 : vector<8x32xf32>
    %cst_167 = arith.constant 1.000000e+00 : f32
    %358 = vector.broadcast %cst_167 : f32 to vector<8x32xf32>
    %359 = arith.subf %358, %344 : vector<8x32xf32>
    %360 = arith.mulf %359, %191 : vector<8x32xf32>
    %361 = arith.mulf %344, %357 : vector<8x32xf32>
    %362 = arith.addf %360, %361 : vector<8x32xf32>
    %cst_168 = arith.constant dense<0.000000e+00> : vector<32x32xf32>
    %363 = tpu.matmul %334, %2, %cst_168 {dimension_numbers = #tpu.dot_dimension_numbers<[1], [0], [0], [1], [0, 0, 1, 1], [], []>} : vector<32x32xf32>, vector<32x32xf32>, vector<32x32xf32> -> vector<32x32xf32>
    %364 = vector.broadcast %6 : vector<1x32xf32> to vector<32x32xf32>
    %365 = arith.addf %363, %364 : vector<32x32xf32>
    %366 = vector.extract_strided_slice %365 {offsets = [0, 0], sizes = [32, 4], strides = [1, 1]} : vector<32x32xf32> to vector<32x4xf32>
    %367 = vector.extract_strided_slice %366 {offsets = [0, 0], sizes = [16, 4], strides = [1, 1]} : vector<32x4xf32> to vector<16x4xf32>
    %c0_169 = arith.constant 0 : index
    %c0_170 = arith.constant 0 : index
    %c0_171 = arith.constant 0 : index
    %368 = vector.load %arg9[%c0_169, %c0_170, %c0_171] : memref<2x16x4xf32, #tpu.memory_space<vmem>>, vector<1x16x4xf32>
    %369 = vector.shape_cast %368 : vector<1x16x4xf32> to vector<16x4xf32>
    %370 = vector.shape_cast %367 : vector<16x4xf32> to vector<1x16x4xf32>
    tpu.vector_store %arg9[%c0_169, %c0_170, %c0_171], %370 {strides = array<i32>} : memref<2x16x4xf32, #tpu.memory_space<vmem>>, vector<1x16x4xf32>,
    %371 = vector.extract_strided_slice %366 {offsets = [16, 0], sizes = [16, 4], strides = [1, 1]} : vector<32x4xf32> to vector<16x4xf32>
    %c1_172 = arith.constant 1 : index
    %c0_173 = arith.constant 0 : index
    %c0_174 = arith.constant 0 : index
    %372 = vector.load %arg9[%c1_172, %c0_173, %c0_174] : memref<2x16x4xf32, #tpu.memory_space<vmem>>, vector<1x16x4xf32>
    %373 = vector.shape_cast %372 : vector<1x16x4xf32> to vector<16x4xf32>
    %374 = vector.shape_cast %371 : vector<16x4xf32> to vector<1x16x4xf32>
    tpu.vector_store %arg9[%c1_172, %c0_173, %c0_174], %374 {strides = array<i32>} : memref<2x16x4xf32, #tpu.memory_space<vmem>>, vector<1x16x4xf32>,
    %375 = vector.extract_strided_slice %362 {offsets = [0, 0], sizes = [4, 32], strides = [1, 1]} : vector<8x32xf32> to vector<4x32xf32>
    %cst_175 = arith.constant dense<0.000000e+00> : vector<32xf32>
    %376 = vector.multi_reduction <add>, %375, %cst_175 [0] : vector<4x32xf32> to vector<32xf32>
    %377 = vector.shape_cast %376 : vector<32xf32> to vector<1x32xf32>
    %378 = arith.mulf %377, %377 : vector<1x32xf32>
    %cst_176 = arith.constant dense<0.000000e+00> : vector<1xf32>
    %379 = vector.multi_reduction <add>, %378, %cst_176 [1] : vector<1x32xf32> to vector<1xf32>
    %380 = vector.shape_cast %379 : vector<1xf32> to vector<1x1xf32>
    %381 = arith.mulf %375, %375 : vector<4x32xf32>
    %cst_177 = arith.constant dense<0.000000e+00> : vector<4xf32>
    %382 = vector.multi_reduction <add>, %381, %cst_177 [1] : vector<4x32xf32> to vector<4xf32>
    %383 = vector.shape_cast %382 : vector<4xf32> to vector<4x1xf32>
    %cst_178 = arith.constant dense<0.000000e+00> : vector<1xf32>
    %384 = vector.multi_reduction <add>, %383, %cst_178 [0] : vector<4x1xf32> to vector<1xf32>
    %385 = vector.shape_cast %384 : vector<1xf32> to vector<1x1xf32>
    %386 = arith.subf %380, %385 : vector<1x1xf32>
    %cst_179 = arith.constant 6.250000e-02 : f32
    %387 = vector.broadcast %cst_179 : f32 to vector<1x1xf32>
    %388 = arith.mulf %386, %387 : vector<1x1xf32>
    %c0_180 = arith.constant 0 : index
    %c0_181 = arith.constant 0 : index
    %c0_182 = arith.constant 0 : index
    %389 = vector.load %arg10[%c0_180, %c0_181, %c0_182] : memref<2x1x1xf32, #tpu.memory_space<vmem>>, vector<1x1x1xf32>
    %390 = vector.shape_cast %389 : vector<1x1x1xf32> to vector<1x1xf32>
    %391 = vector.shape_cast %388 : vector<1x1xf32> to vector<1x1x1xf32>
    tpu.vector_store %arg10[%c0_180, %c0_181, %c0_182], %391 {strides = array<i32>} : memref<2x1x1xf32, #tpu.memory_space<vmem>>, vector<1x1x1xf32>,
    %392 = vector.extract_strided_slice %362 {offsets = [4, 0], sizes = [4, 32], strides = [1, 1]} : vector<8x32xf32> to vector<4x32xf32>
    %cst_183 = arith.constant dense<0.000000e+00> : vector<32xf32>
    %393 = vector.multi_reduction <add>, %392, %cst_183 [0] : vector<4x32xf32> to vector<32xf32>
    %394 = vector.shape_cast %393 : vector<32xf32> to vector<1x32xf32>
    %395 = arith.mulf %394, %394 : vector<1x32xf32>
    %cst_184 = arith.constant dense<0.000000e+00> : vector<1xf32>
    %396 = vector.multi_reduction <add>, %395, %cst_184 [1] : vector<1x32xf32> to vector<1xf32>
    %397 = vector.shape_cast %396 : vector<1xf32> to vector<1x1xf32>
    %398 = arith.mulf %392, %392 : vector<4x32xf32>
    %cst_185 = arith.constant dense<0.000000e+00> : vector<4xf32>
    %399 = vector.multi_reduction <add>, %398, %cst_185 [1] : vector<4x32xf32> to vector<4xf32>
    %400 = vector.shape_cast %399 : vector<4xf32> to vector<4x1xf32>
    %cst_186 = arith.constant dense<0.000000e+00> : vector<1xf32>
    %401 = vector.multi_reduction <add>, %400, %cst_186 [0] : vector<4x1xf32> to vector<1xf32>
    %402 = vector.shape_cast %401 : vector<1xf32> to vector<1x1xf32>
    %403 = arith.subf %397, %402 : vector<1x1xf32>
    %cst_187 = arith.constant 6.250000e-02 : f32
    %404 = vector.broadcast %cst_187 : f32 to vector<1x1xf32>
    %405 = arith.mulf %403, %404 : vector<1x1xf32>
    %c1_188 = arith.constant 1 : index
    %c0_189 = arith.constant 0 : index
    %c0_190 = arith.constant 0 : index
    %406 = vector.load %arg10[%c1_188, %c0_189, %c0_190] : memref<2x1x1xf32, #tpu.memory_space<vmem>>, vector<1x1x1xf32>
    %407 = vector.shape_cast %406 : vector<1x1x1xf32> to vector<1x1xf32>
    %408 = vector.shape_cast %405 : vector<1x1xf32> to vector<1x1x1xf32>
    tpu.vector_store %arg10[%c1_188, %c0_189, %c0_190], %408 {strides = array<i32>} : memref<2x1x1xf32, #tpu.memory_space<vmem>>, vector<1x1x1xf32>,
    return
  }
  func.func @transform_0(%arg0: i32) -> (i32, i32, i32) {
    %c0_i32 = arith.constant 0 : i32
    %c0_i32_0 = arith.constant 0 : i32
    %c0_i32_1 = arith.constant 0 : i32
    return %arg0, %c0_i32, %c0_i32_0 : i32, i32, i32
  }
  func.func @transform_1(%arg0: i32) -> (i32, i32, i32) {
    %c0_i32 = arith.constant 0 : i32
    %c0_i32_0 = arith.constant 0 : i32
    %c0_i32_1 = arith.constant 0 : i32
    return %arg0, %c0_i32, %c0_i32_0 : i32, i32, i32
  }
  func.func @transform_2(%arg0: i32) -> (i32, i32, i32) {
    %c0_i32 = arith.constant 0 : i32
    %c0_i32_0 = arith.constant 0 : i32
    %c0_i32_1 = arith.constant 0 : i32
    return %arg0, %c0_i32, %c0_i32_0 : i32, i32, i32
  }
  func.func @transform_3(%arg0: i32) -> (i32, i32, i32) {
    %c0_i32 = arith.constant 0 : i32
    %c0_i32_0 = arith.constant 0 : i32
    %c0_i32_1 = arith.constant 0 : i32
    return %arg0, %c0_i32, %c0_i32_0 : i32, i32, i32
  }
  func.func @transform_4(%arg0: i32) -> (i32, i32, i32) {
    %c0_i32 = arith.constant 0 : i32
    %c0_i32_0 = arith.constant 0 : i32
    %c0_i32_1 = arith.constant 0 : i32
    return %arg0, %c0_i32, %c0_i32_0 : i32, i32, i32
  }
  func.func @transform_5(%arg0: i32) -> (i32, i32) {
    %c0_i32 = arith.constant 0 : i32
    %c0_i32_0 = arith.constant 0 : i32
    %c0_i32_1 = arith.constant 0 : i32
    return %c0_i32, %c0_i32_0 : i32, i32
  }
  func.func @transform_6(%arg0: i32) -> (i32, i32, i32) {
    %c0_i32 = arith.constant 0 : i32
    %c0_i32_0 = arith.constant 0 : i32
    %c0_i32_1 = arith.constant 0 : i32
    %c0_i32_2 = arith.constant 0 : i32
    return %c0_i32, %c0_i32_0, %c0_i32_1 : i32, i32, i32
  }
  func.func @transform_7(%arg0: i32) -> (i32, i32, i32) {
    %c0_i32 = arith.constant 0 : i32
    %c0_i32_0 = arith.constant 0 : i32
    %c0_i32_1 = arith.constant 0 : i32
    %c0_i32_2 = arith.constant 0 : i32
    return %c0_i32, %c0_i32_0, %c0_i32_1 : i32, i32, i32
  }
  func.func @transform_8(%arg0: i32) -> (i32, i32, i32) {
    %c0_i32 = arith.constant 0 : i32
    %c0_i32_0 = arith.constant 0 : i32
    %c0_i32_1 = arith.constant 0 : i32
    return %arg0, %c0_i32, %c0_i32_0 : i32, i32, i32
  }
  func.func @transform_9(%arg0: i32) -> (i32, i32, i32) {
    %c0_i32 = arith.constant 0 : i32
    %c0_i32_0 = arith.constant 0 : i32
    %c0_i32_1 = arith.constant 0 : i32
    return %arg0, %c0_i32, %c0_i32_0 : i32, i32, i32
  }
}

</mosaic_0001>

<llo_original>
// kernel: perc_forward.1
$region0: #{perc_forward.1}
  #allocation0 [shape = 'u32[]', space=smem, size = 0x4, offset = 0x4, fixed_abs, tag = 'smem constant byte address 0x4 - core index']
  #allocation1 [shape = 'u32[144,128]{1,0:T(1,128)}', space=vmem, size = 0x12000, scoped, tag = 'internal scratch']
  %s0 = inlined_call_operand.vmem [shape: f32[4,16,48], index: 0, kind: input, shape index: {}]
  %s1 = inlined_call_operand.vmem [shape: f32[4,16,16], index: 1, kind: input, shape index: {}]
  %s2 = inlined_call_operand.vmem [shape: s32[4,16,16], index: 2, kind: input, shape index: {}]
  %s3 = inlined_call_operand.vmem [shape: f32[4,4,48], index: 3, kind: input, shape index: {}]
  %s4 = inlined_call_operand.vmem [shape: f32[4,20,16], index: 4, kind: input, shape index: {}]
  %s5 = inlined_call_operand.vmem [shape: f32[136,32], index: 5, kind: input, shape index: {}]
  %s6 = inlined_call_operand.vmem [shape: f32[2,168,32], index: 6, kind: input, shape index: {}]
  %s7 = inlined_call_operand.vmem [shape: f32[2,64,96], index: 7, kind: input, shape index: {}]
  %s8 = inlined_call_operand.vmem [shape: f32[4,16,4], index: 8, kind: output, shape index: {0}]
  %s9 = inlined_call_operand.vmem [shape: f32[4,1,1], index: 9, kind: output, shape index: {1}]
  %10 = xla_tuple %s8, %s9
  %s11 = sld [smem:[#allocation0]]
  $region73: #{perc_forward.1} parent=0
    _
  %s13 = ssub.s32 1, %s11
  %s14 = scalar_select 0, %s13, %s11
  loop: start=0, step=1, limit=4
  $region2: #{perc_forward.1} parent=0 // loop_pre_header
    _
  $region3: #{perc_forward.1} parent=0 // loop_header
    %s16 = sphi 0, %s20
    %p17 = scmp.ge.s32.totalorder %s16, 4
    %s26 = sphi 0, %s28
    %s29 = sphi 0, %s26
    %s30 = sphi 0, %s29
    %s46 = sphi 0, %s30
    %s52 = sphi 0, %s54
    %s55 = sphi 0, %s52
    %s56 = sphi 0, %s55
    %s72 = sphi 0, %s56
    %s78 = sphi 0, %s80
    %s81 = sphi 0, %s78
    %s82 = sphi 0, %s81
    %s98 = sphi 0, %s82
    %s104 = sphi 0, %s106
    %s107 = sphi 0, %s104
    %s108 = sphi 0, %s107
    %s124 = sphi 0, %s108
    %s130 = sphi 0, %s132
    %s133 = sphi 0, %s130
    %s134 = sphi 0, %s133
    %s150 = sphi 0, %s134
    %s154 = sphi 0, %s154
    %s156 = sphi 0, %s154
    %s157 = sphi 0, %s156
    %s171 = sphi 0, %s157
    %s175 = sphi 0, %s175
    %s177 = sphi 0, %s175
    %s178 = sphi 0, %s177
    %s192 = sphi 0, %s178
    %s196 = sphi 0, %s196
    %s198 = sphi 0, %s196
    %s199 = sphi 0, %s198
    %s213 = sphi 0, %s199
    %s219 = sphi 0, %s221
    %s222 = sphi 0, %s219
    %s223 = sphi 0, %s222
    %s239 = sphi 0, %s223
    %s245 = sphi 0, %s247
    %s248 = sphi 0, %s245
    %s249 = sphi 0, %s248
    %s265 = sphi 0, %s249
  $region4: #{perc_forward.1} parent=0 // loop_header_branch
    %19 = sbr.rel (%p17) target = $region8
  $region5: #{perc_forward.1} parent=0 // loop_body
    %s21 = ssub.s32 %s16, 1
    %s22 = ssub.s32 %s16, 2
    %s23 = sadd.s32 %s16, 1
    %s24 = ssub.s32 %s16, %s23
    %p25 = scmp.eq.s32.totalorder %s24, 0
    %s27 = sadd.s32 %s26, 1
    %s28 = scalar_select %p25, %s26, %s27
    %p31 = pneg %p25
    %p32 = scmp.eq.s32.totalorder %s16, 1
    %p33 = por %p31, %p32
    %p34 = scmp.ne.s32.totalorder %s26, %s29
    %p35 = scmp.eq.s32.totalorder %s16, 0
    %p36 = por %p34, %p35
    %p37 = scmp.ne.s32.totalorder %s26, %s29
    %p38 = scmp.eq.s32.totalorder %s21, 1
    %p39 = por %p37, %p38
    %p40 = scmp.ne.s32.totalorder %s29, %s30
    %p41 = scmp.eq.s32.totalorder %s21, 0
    %p42 = por %p40, %p41
    %p43 = scmp.ne.s32.totalorder %s29, %s30
    %p44 = scmp.eq.s32.totalorder %s22, 1
    %p45 = por %p43, %p44
    %p47 = scmp.ne.s32.totalorder %s30, %s46
    %p48 = scmp.eq.s32.totalorder %s22, 0
    %p49 = por %p47, %p48
    %s50 = ssub.s32 %s16, %s23
    %p51 = scmp.eq.s32.totalorder %s50, 0
    %s53 = sadd.s32 %s52, 1
    %s54 = scalar_select %p51, %s52, %s53
    %p57 = pneg %p51
    %p58 = scmp.eq.s32.totalorder %s16, 1
    %p59 = por %p57, %p58
    %p60 = scmp.ne.s32.totalorder %s52, %s55
    %p61 = scmp.eq.s32.totalorder %s16, 0
    %p62 = por %p60, %p61
    %p63 = scmp.ne.s32.totalorder %s52, %s55
    %p64 = scmp.eq.s32.totalorder %s21, 1
    %p65 = por %p63, %p64
    %p66 = scmp.ne.s32.totalorder %s55, %s56
    %p67 = scmp.eq.s32.totalorder %s21, 0
    %p68 = por %p66, %p67
    %p69 = scmp.ne.s32.totalorder %s55, %s56
    %p70 = scmp.eq.s32.totalorder %s22, 1
    %p71 = por %p69, %p70
    %p73 = scmp.ne.s32.totalorder %s56, %s72
    %p74 = scmp.eq.s32.totalorder %s22, 0
    %p75 = por %p73, %p74
    %s76 = ssub.s32 %s16, %s23
    %p77 = scmp.eq.s32.totalorder %s76, 0
    %s79 = sadd.s32 %s78, 1
    %s80 = scalar_select %p77, %s78, %s79
    %p83 = pneg %p77
    %p84 = scmp.eq.s32.totalorder %s16, 1
    %p85 = por %p83, %p84
    %p86 = scmp.ne.s32.totalorder %s78, %s81
    %p87 = scmp.eq.s32.totalorder %s16, 0
    %p88 = por %p86, %p87
    %p89 = scmp.ne.s32.totalorder %s78, %s81
    %p90 = scmp.eq.s32.totalorder %s21, 1
    %p91 = por %p89, %p90
    %p92 = scmp.ne.s32.totalorder %s81, %s82
    %p93 = scmp.eq.s32.totalorder %s21, 0
    %p94 = por %p92, %p93
    %p95 = scmp.ne.s32.totalorder %s81, %s82
    %p96 = scmp.eq.s32.totalorder %s22, 1
    %p97 = por %p95, %p96
    %p99 = scmp.ne.s32.totalorder %s82, %s98
    %p100 = scmp.eq.s32.totalorder %s22, 0
    %p101 = por %p99, %p100
    %s102 = ssub.s32 %s16, %s23
    %p103 = scmp.eq.s32.totalorder %s102, 0
    %s105 = sadd.s32 %s104, 1
    %s106 = scalar_select %p103, %s104, %s105
    %p109 = pneg %p103
    %p110 = scmp.eq.s32.totalorder %s16, 1
    %p111 = por %p109, %p110
    %p112 = scmp.ne.s32.totalorder %s104, %s107
    %p113 = scmp.eq.s32.totalorder %s16, 0
    %p114 = por %p112, %p113
    %p115 = scmp.ne.s32.totalorder %s104, %s107
    %p116 = scmp.eq.s32.totalorder %s21, 1
    %p117 = por %p115, %p116
    %p118 = scmp.ne.s32.totalorder %s107, %s108
    %p119 = scmp.eq.s32.totalorder %s21, 0
    %p120 = por %p118, %p119
    %p121 = scmp.ne.s32.totalorder %s107, %s108
    %p122 = scmp.eq.s32.totalorder %s22, 1
    %p123 = por %p121, %p122
    %p125 = scmp.ne.s32.totalorder %s108, %s124
    %p126 = scmp.eq.s32.totalorder %s22, 0
    %p127 = por %p125, %p126
    %s128 = ssub.s32 %s16, %s23
    %p129 = scmp.eq.s32.totalorder %s128, 0
    %s131 = sadd.s32 %s130, 1
    %s132 = scalar_select %p129, %s130, %s131
    %p135 = pneg %p129
    %p136 = scmp.eq.s32.totalorder %s16, 1
    %p137 = por %p135, %p136
    %p138 = scmp.ne.s32.totalorder %s130, %s133
    %p139 = scmp.eq.s32.totalorder %s16, 0
    %p140 = por %p138, %p139
    %p141 = scmp.ne.s32.totalorder %s130, %s133
    %p142 = scmp.eq.s32.totalorder %s21, 1
    %p143 = por %p141, %p142
    %p144 = scmp.ne.s32.totalorder %s133, %s134
    %p145 = scmp.eq.s32.totalorder %s21, 0
    %p146 = por %p144, %p145
    %p147 = scmp.ne.s32.totalorder %s133, %s134
    %p148 = scmp.eq.s32.totalorder %s22, 1
    %p149 = por %p147, %p148
    %p151 = scmp.ne.s32.totalorder %s134, %s150
    %p152 = scmp.eq.s32.totalorder %s22, 0
    %p153 = por %p151, %p152
    %s155 = sadd.s32 %s154, 1
    %p158 = scmp.eq.s32.totalorder %s16, 1
    %p159 = scmp.ne.s32.totalorder %s154, %s156
    %p160 = scmp.eq.s32.totalorder %s16, 0
    %p161 = por %p159, %p160
    %p162 = scmp.ne.s32.totalorder %s154, %s156
    %p163 = scmp.eq.s32.totalorder %s21, 1
    %p164 = por %p162, %p163
    %p165 = scmp.ne.s32.totalorder %s156, %s157
    %p166 = scmp.eq.s32.totalorder %s21, 0
    %p167 = por %p165, %p166
    %p168 = scmp.ne.s32.totalorder %s156, %s157
    %p169 = scmp.eq.s32.totalorder %s22, 1
    %p170 = por %p168, %p169
    %p172 = scmp.ne.s32.totalorder %s157, %s171
    %p173 = scmp.eq.s32.totalorder %s22, 0
    %p174 = por %p172, %p173
    %s176 = sadd.s32 %s175, 1
    %p179 = scmp.eq.s32.totalorder %s16, 1
    %p180 = scmp.ne.s32.totalorder %s175, %s177
    %p181 = scmp.eq.s32.totalorder %s16, 0
    %p182 = por %p180, %p181
    %p183 = scmp.ne.s32.totalorder %s175, %s177
    %p184 = scmp.eq.s32.totalorder %s21, 1
    %p185 = por %p183, %p184
    %p186 = scmp.ne.s32.totalorder %s177, %s178
    %p187 = scmp.eq.s32.totalorder %s21, 0
    %p188 = por %p186, %p187
    %p189 = scmp.ne.s32.totalorder %s177, %s178
    %p190 = scmp.eq.s32.totalorder %s22, 1
    %p191 = por %p189, %p190
    %p193 = scmp.ne.s32.totalorder %s178, %s192
    %p194 = scmp.eq.s32.totalorder %s22, 0
    %p195 = por %p193, %p194
    %s197 = sadd.s32 %s196, 1
    %p200 = scmp.eq.s32.totalorder %s16, 1
    %p201 = scmp.ne.s32.totalorder %s196, %s198
    %p202 = scmp.eq.s32.totalorder %s16, 0
    %p203 = por %p201, %p202
    %p204 = scmp.ne.s32.totalorder %s196, %s198
    %p205 = scmp.eq.s32.totalorder %s21, 1
    %p206 = por %p204, %p205
    %p207 = scmp.ne.s32.totalorder %s198, %s199
    %p208 = scmp.eq.s32.totalorder %s21, 0
    %p209 = por %p207, %p208
    %p210 = scmp.ne.s32.totalorder %s198, %s199
    %p211 = scmp.eq.s32.totalorder %s22, 1
    %p212 = por %p210, %p211
    %p214 = scmp.ne.s32.totalorder %s199, %s213
    %p215 = scmp.eq.s32.totalorder %s22, 0
    %p216 = por %p214, %p215
    %s217 = ssub.s32 %s16, %s23
    %p218 = scmp.eq.s32.totalorder %s217, 0
    %s220 = sadd.s32 %s219, 1
    %s221 = scalar_select %p218, %s219, %s220
    %p224 = pneg %p218
    %p225 = scmp.eq.s32.totalorder %s16, 1
    %p226 = por %p224, %p225
    %p227 = scmp.ne.s32.totalorder %s219, %s222
    %p228 = scmp.eq.s32.totalorder %s16, 0
    %p229 = por %p227, %p228
    %p230 = scmp.ne.s32.totalorder %s219, %s222
    %p231 = scmp.eq.s32.totalorder %s21, 1
    %p232 = por %p230, %p231
    %p233 = scmp.ne.s32.totalorder %s222, %s223
    %p234 = scmp.eq.s32.totalorder %s21, 0
    %p235 = por %p233, %p234
    %p236 = scmp.ne.s32.totalorder %s222, %s223
    %p237 = scmp.eq.s32.totalorder %s22, 1
    %p238 = por %p236, %p237
    %p240 = scmp.ne.s32.totalorder %s223, %s239
    %p241 = scmp.eq.s32.totalorder %s22, 0
    %p242 = por %p240, %p241
    %s243 = ssub.s32 %s16, %s23
    %p244 = scmp.eq.s32.totalorder %s243, 0
    %s246 = sadd.s32 %s245, 1
    %s247 = scalar_select %p244, %s245, %s246
    %p250 = pneg %p244
    %p251 = scmp.eq.s32.totalorder %s16, 1
    %p252 = por %p250, %p251
    %p253 = scmp.ne.s32.totalorder %s245, %s248
    %p254 = scmp.eq.s32.totalorder %s16, 0
    %p255 = por %p253, %p254
    %p256 = scmp.ne.s32.totalorder %s245, %s248
    %p257 = scmp.eq.s32.totalorder %s21, 1
    %p258 = por %p256, %p257
    %p259 = scmp.ne.s32.totalorder %s248, %s249
    %p260 = scmp.eq.s32.totalorder %s21, 0
    %p261 = por %p259, %p260
    %p262 = scmp.ne.s32.totalorder %s248, %s249
    %p263 = scmp.eq.s32.totalorder %s22, 1
    %p264 = por %p262, %p263
    %p266 = scmp.ne.s32.totalorder %s249, %s265
    %p267 = scmp.eq.s32.totalorder %s22, 0
    %p268 = por %p266, %p267
    %p269 = scmp.le.s32.totalorder 1, %s16
    %p270 = scmp.lt.s32.totalorder %s16, 3
    %p271 = pnand %p269, %p270
    %p272 = pneg %p271
    // Predicated region
    $region9: #{perc_forward.1} parent=5 // pred_check
      _
    $region10: #{perc_forward.1} parent=5 // pred_check_branch
      %274 = sbr.rel (%p271) target = $region12
    $region11: #{perc_forward.1} parent=5 // pred_region
      %s275 = ssub.s32 %s16, 1
      // Predicated region
      $region13: #{perc_forward.1} parent=11 // pred_check
        %p276 = pneg %p167
      $region14: #{perc_forward.1} parent=11 // pred_check_branch
        %278 = sbr.rel (%p276) target = $region16
      $region15: #{perc_forward.1} parent=11 // pred_region
        _
      $region16: #{perc_forward.1} parent=11 // pred_fallthru
        _
      // Predicated region
      $region17: #{perc_forward.1} parent=11 // pred_check
        %p279 = pneg %p188
      $region18: #{perc_forward.1} parent=11 // pred_check_branch
        %281 = sbr.rel (%p279) target = $region20
      $region19: #{perc_forward.1} parent=11 // pred_region
        _
      $region20: #{perc_forward.1} parent=11 // pred_fallthru
        _
      // Predicated region
      $region21: #{perc_forward.1} parent=11 // pred_check
        %p282 = pneg %p209
      $region22: #{perc_forward.1} parent=11 // pred_check_branch
        %284 = sbr.rel (%p282) target = $region24
      $region23: #{perc_forward.1} parent=11 // pred_region
        _
      $region24: #{perc_forward.1} parent=11 // pred_fallthru
        _
    $region12: #{perc_forward.1} parent=5 // pred_fallthru
      _
    %p285 = scmp.lt.s32.totalorder %s16, 2
    // Predicated region
    $region25: #{perc_forward.1} parent=5 // pred_check
      %p286 = pneg %p285
    $region26: #{perc_forward.1} parent=5 // pred_check_branch
      %288 = sbr.rel (%p286) target = $region28
    $region27: #{perc_forward.1} parent=5 // pred_region
      // Predicated region
      $region29: #{perc_forward.1} parent=27 // pred_check
        %p289 = pneg %p36
      $region30: #{perc_forward.1} parent=27 // pred_check_branch
        %291 = sbr.rel (%p289) target = $region32
      $region31: #{perc_forward.1} parent=27 // pred_region
        %s292 = smul.u32 2, %s16
        %p293 = scmp.lt.s32.totalorder %s292, 3
        %s294 = scalar_select %p293, %s292, 3
        %s295 = smul.addr %s294, 2
        %s296 = smul.addr %s295, 8
        %s297 = scalar_lea.vmem %s0, %s296
        %s298 = smul.u32 2, %s16
      $region32: #{perc_forward.1} parent=27 // pred_fallthru
        _
      // Predicated region
      $region33: #{perc_forward.1} parent=27 // pred_check
        %p299 = pneg %p62
      $region34: #{perc_forward.1} parent=27 // pred_check_branch
        %301 = sbr.rel (%p299) target = $region36
      $region35: #{perc_forward.1} parent=27 // pred_region
        %s302 = smul.u32 2, %s16
        %p303 = scmp.lt.s32.totalorder %s302, 3
        %s304 = scalar_select %p303, %s302, 3
        %s305 = smul.addr %s304, 2
        %s306 = smul.addr %s305, 8
        %s307 = scalar_lea.vmem %s1, %s306
        %s308 = smul.u32 2, %s16
      $region36: #{perc_forward.1} parent=27 // pred_fallthru
        _
      // Predicated region
      $region37: #{perc_forward.1} parent=27 // pred_check
        %p309 = pneg %p88
      $region38: #{perc_forward.1} parent=27 // pred_check_branch
        %311 = sbr.rel (%p309) target = $region40
      $region39: #{perc_forward.1} parent=27 // pred_region
        %s312 = smul.u32 2, %s16
        %p313 = scmp.lt.s32.totalorder %s312, 3
        %s314 = scalar_select %p313, %s312, 3
        %s315 = smul.addr %s314, 2
        %s316 = smul.addr %s315, 8
        %s317 = scalar_lea.vmem %s2, %s316
        %s318 = smul.u32 2, %s16
      $region40: #{perc_forward.1} parent=27 // pred_fallthru
        _
      // Predicated region
      $region41: #{perc_forward.1} parent=27 // pred_check
        %p319 = pneg %p114
      $region42: #{perc_forward.1} parent=27 // pred_check_branch
        %321 = sbr.rel (%p319) target = $region44
      $region43: #{perc_forward.1} parent=27 // pred_region
        %s322 = smul.u32 2, %s16
        %p323 = scmp.lt.s32.totalorder %s322, 3
        %s324 = scalar_select %p323, %s322, 3
        %s325 = smul.addr %s324, 4
        %s326 = scalar_lea.vmem %s3, %s325
        %s327 = smul.u32 2, %s16
      $region44: #{perc_forward.1} parent=27 // pred_fallthru
        _
      // Predicated region
      $region45: #{perc_forward.1} parent=27 // pred_check
        %p328 = pneg %p140
      $region46: #{perc_forward.1} parent=27 // pred_check_branch
        %330 = sbr.rel (%p328) target = $region48
      $region47: #{perc_forward.1} parent=27 // pred_region
        %s331 = smul.u32 2, %s16
        %p332 = scmp.lt.s32.totalorder %s331, 3
        %s333 = scalar_select %p332, %s331, 3
        %s334 = smul.addr %s333, 3
        %s335 = smul.addr %s334, 8
        %s336 = scalar_lea.vmem %s4, %s335
        %s337 = smul.u32 2, %s16
      $region48: #{perc_forward.1} parent=27 // pred_fallthru
        _
    $region28: #{perc_forward.1} parent=5 // pred_fallthru
      _
    %p338 = scmp.le.s32.totalorder 1, %s16
    %p339 = scmp.lt.s32.totalorder %s16, 3
    %p340 = pnand %p338, %p339
    %p341 = pneg %p340
    // Predicated region
    $region49: #{perc_forward.1} parent=5 // pred_check
      _
    $region50: #{perc_forward.1} parent=5 // pred_check_branch
      %343 = sbr.rel (%p340) target = $region52
    $region51: #{perc_forward.1} parent=5 // pred_region
      %s344 = ssub.s32 %s16, 1
      %s345 = smul.u32 2, %s21
      %p346 = scmp.lt.s32.totalorder %s345, 3
      %s347 = scalar_select %p346, %s345, 3
      %s348 = smul.addr %s347, 2
      %s349 = smul.addr %s348, 8
      %s350 = scalar_lea.vmem %s0, %s349
      %p351 = pneg %p42
      %p352 = pneg %p39
      %s353 = smul.u32 2, %s21
      %p354 = scmp.lt.s32.totalorder %s353, 3
      %s355 = scalar_select %p354, %s353, 3
      %s356 = smul.addr %s355, 2
      %s357 = smul.addr %s356, 8
      %s358 = scalar_lea.vmem %s1, %s357
      %p359 = pneg %p68
      %p360 = pneg %p65
      %s361 = smul.u32 2, %s21
      %p362 = scmp.lt.s32.totalorder %s361, 3
      %s363 = scalar_select %p362, %s361, 3
      %s364 = smul.addr %s363, 2
      %s365 = smul.addr %s364, 8
      %s366 = scalar_lea.vmem %s2, %s365
      %p367 = pneg %p94
      %p368 = pneg %p91
      %s369 = smul.u32 2, %s21
      %p370 = scmp.lt.s32.totalorder %s369, 3
      %s371 = scalar_select %p370, %s369, 3
      %s372 = smul.addr %s371, 4
      %s373 = scalar_lea.vmem %s3, %s372
      %p374 = pneg %p120
      %p375 = pneg %p117
      %s376 = smul.u32 2, %s21
      %p377 = scmp.lt.s32.totalorder %s376, 3
      %s378 = scalar_select %p377, %s376, 3
      %s379 = smul.addr %s378, 3
      %s380 = smul.addr %s379, 8
      %s381 = scalar_lea.vmem %s4, %s380
      %p382 = pneg %p146
      %p383 = pneg %p143
      %p384 = pneg %p167
      %p385 = pneg %p164
      %p386 = pneg %p188
      %p387 = pneg %p185
      %p388 = pneg %p209
      %p389 = pneg %p206
      %p390 = pneg %p235
      %p391 = pneg %p232
      %s392 = smul.u32 2, %s21
      %p393 = scmp.lt.s32.totalorder %s392, 3
      %s394 = scalar_select %p393, %s392, 3
      %s395 = smul.addr %s394, 2
      %s396 = smul.addr %s395, 8
      %s397 = scalar_lea.vmem %s8, %s396
      %p398 = pneg %p261
      %p399 = pneg %p258
      %s400 = smul.u32 2, %s21
      %p401 = scmp.lt.s32.totalorder %s400, 3
      %s402 = scalar_select %p401, %s400, 3
      %s403 = scalar_lea.vmem %s9, %s402
      %s404 = smul.u32 2, %s21
      %p405 = scmp.lt.s32.totalorder %s404, 3
      %s406 = scalar_select %p405, %s404, 3
      %s407 = smul.addr %s406, 2
      %s408 = smul.addr %s407, 8
      %s409 = scalar_lea.vmem %s0, %s408
      %s410 = smul.u32 2, %s21
      %s411 = smul.u32 2, %s21
      %p412 = scmp.lt.s32.totalorder %s411, 3
      %s413 = scalar_select %p412, %s411, 3
      %s414 = smul.addr %s413, 2
      %s415 = smul.addr %s414, 8
      %s416 = scalar_lea.vmem %s1, %s415
      %s417 = smul.u32 2, %s21
      %s418 = smul.u32 2, %s21
      %p419 = scmp.lt.s32.totalorder %s418, 3
      %s420 = scalar_select %p419, %s418, 3
      %s421 = smul.addr %s420, 2
      %s422 = smul.addr %s421, 8
      %s423 = scalar_lea.vmem %s2, %s422
      %s424 = smul.u32 2, %s21
      %s425 = smul.u32 2, %s21
      %p426 = scmp.lt.s32.totalorder %s425, 3
      %s427 = scalar_select %p426, %s425, 3
      %s428 = smul.addr %s427, 4
      %s429 = scalar_lea.vmem %s3, %s428
      %s430 = smul.u32 2, %s21
      %s431 = smul.u32 2, %s21
      %p432 = scmp.lt.s32.totalorder %s431, 3
      %s433 = scalar_select %p432, %s431, 3
      %s434 = smul.addr %s433, 3
      %s435 = smul.addr %s434, 8
      %s436 = scalar_lea.vmem %s4, %s435
      %s437 = smul.u32 2, %s21
      %s438 = smul.u32 2, %s21
      %p439 = scmp.lt.s32.totalorder %s438, 3
      %s440 = scalar_select %p439, %s438, 3
      %s441 = smul.addr %s440, 2
      %s442 = smul.addr %s441, 8
      %s443 = scalar_lea.vmem %s8, %s442
      %s444 = smul.u32 2, %s21
      %s445 = smul.u32 2, %s21
      %p446 = scmp.lt.s32.totalorder %s445, 3
      %s447 = scalar_select %p446, %s445, 3
      %s448 = scalar_lea.vmem %s9, %s447
      %s449 = smul.u32 2, %s21
      %v450 = vld [vmem:[%s5] sm:$0xff]
      %v451 = vld [vmem:[%s5 + $0x8] sm:$0xff]
      %v452 = vld [vmem:[%s5 + $0x10] sm:$0xff]
      %v453 = vld [vmem:[%s5 + $0x18] sm:$0xff]
      %v454 = vld [vmem:[%s5 + $0x20] sm:$0xff]
      %v455 = vld [vmem:[%s5 + $0x28] sm:$0xff]
      %v456 = vld [vmem:[%s5 + $0x30] sm:$0xff]
      %v457 = vld [vmem:[%s5 + $0x38] sm:$0xff]
      %v458 = vld [vmem:[%s5 + $0x40] sm:$0xff]
      %v459 = vld [vmem:[%s5 + $0x48] sm:$0xff]
      %v460 = vld [vmem:[%s5 + $0x50] sm:$0xff]
      %v461 = vld [vmem:[%s5 + $0x58] sm:$0xff]
      %v462 = vld [vmem:[%s5 + $0x60] sm:$0xff]
      %v463 = vld [vmem:[%s5 + $0x68] sm:$0xff]
      %v464 = vld [vmem:[%s5 + $0x70] sm:$0xff]
      %v465 = vld [vmem:[%s5 + $0x78] sm:$0xff]
      %v466 = vld [vmem:[%s5 + $0x80] sm:$0xff]
      %v467 = vld [vmem:[%s409] sm:$0xff]
      %v468 = vld [vmem:[%s409 + $0x8] sm:$0xff]
      %v469 = vld [vmem:[%s409 + $0x10] sm:$0xff]
      %v470 = vld [vmem:[%s409 + $0x18] sm:$0xff]
      %v471 = vld [vmem:[%s429] sm:$0xf]
      %v472 = vld [vmem:[%s429 + $0x4] sm:$0xf]
      %v473 = vlaneseq
      %v474 = vshrl.u32 %v473, 7
      %v475 = vsub.s32 0, %v474
      %v476 = vrot.slane %v466, %v475
      %vm477 = vcmask 392192
      %v479 = vsel %vm477, %v467, 0
      %v482 = vsel %vm477, %v468, 0
      %v485 = vsel %vm477, %v469, 0
      %v488 = vsel %vm477, %v470, 0
      %490 = vmatprep.subr.mxu0 0.0
      %491 = vmatpush1.msra.mxu0 %v450
      %492 = vmatprep.subr.mxu0 0.0
      %493 = vmatpush1.msra.mxu0 %v451
      %494 = vmatprep.subr.mxu0 0.0
      %495 = vmatpush1.msra.mxu0 %v452
      %496 = vmatprep.subr.mxu0 0.0
      %497 = vmatpush1.msra.mxu0 %v453
      %498 = vmatprep.subr.mxu0 0.0
      %499 = vmatpush1.msra.mxu0 %v454
      %500 = vmatprep.subr.mxu0 0.0
      %501 = vmatpush1.msra.mxu0 %v455
      %502 = vmatprep.subr.mxu0 0.0
      %503 = vmatpush1.msra.mxu0 0.0
      %504 = vmatprep.subr.mxu0 0.0
      %505 = vmatpush1.msra.mxu0 0.0
      %506 = vmatprep.subr.mxu0 0.0
      %507 = vmatpush1.msra.mxu0 0.0
      %508 = vmatprep.subr.mxu0 0.0
      %509 = vmatpush1.msra.mxu0 0.0
      %510 = vmatprep.subr.mxu0 0.0
      %511 = vmatpush1.msra.mxu0 0.0
      %512 = vmatprep.subr.mxu0 0.0
      %513 = vmatpush1.msra.mxu0 0.0
      %514 = vmatprep.subr.mxu0 0.0
      %515 = vmatpush1.msra.mxu0 0.0
      %516 = vmatprep.subr.mxu0 0.0
      %517 = vmatpush1.msra.mxu0 0.0
      %518 = vmatprep.subr.mxu0 0.0
      %519 = vmatpush1.msra.mxu0 0.0
      %520 = vmatprep.subr.mxu0 0.0
      %521 = vmatpush1.msra.mxu0 0.0
      %522 = vmatprep.subr.mxu0 0.0
      %523 = vmatpush1.msra.mxu0 0.0
      %524 = vmatprep.subr.mxu0 0.0
      %525 = vmatpush1.msra.mxu0 0.0
      %526 = vmatprep.subr.mxu0 0.0
      %527 = vmatpush1.msra.mxu0 0.0
      %528 = vmatprep.subr.mxu0 0.0
      %529 = vmatpush1.msra.mxu0 0.0
      %530 = vmatprep.subr.mxu0 0.0
      %531 = vmatpush1.msra.mxu0 0.0
      %532 = vmatprep.subr.mxu0 0.0
      %533 = vmatpush1.msra.mxu0 0.0
      %534 = vmatprep.subr.mxu0 0.0
      %535 = vmatpush1.msra.mxu0 0.0
      %536 = vmatprep.subr.mxu0 0.0
      %537 = vmatpush1.msra.mxu0 0.0
      %538 = vmatprep.subr.mxu0 0.0
      %539 = vmatpush1.msra.mxu0 0.0
      %540 = vmatprep.subr.mxu0 0.0
      %541 = vmatpush1.msra.mxu0 0.0
      %542 = vmatprep.subr.mxu0 0.0
      %543 = vmatpush1.msra.mxu0 0.0
      %544 = vmatprep.subr.mxu0 0.0
      %545 = vmatpush1.msra.mxu0 0.0
      %546 = vmatprep.subr.mxu0 0.0
      %547 = vmatpush1.msra.mxu0 0.0
      %548 = vmatprep.subr.mxu0 0.0
      %549 = vmatpush1.msra.mxu0 0.0
      %550 = vmatprep.subr.mxu0 0.0
      %551 = vmatpush1.msra.mxu0 0.0
      %552 = vmatprep.subr.mxu0 0.0
      %553 = vmatpush1.msra.mxu0 0.0
      %554 = vmatprep.mubr.f32.mxu0 0.0
      %555 = vmatmul.mubr.f32.gmra.mrb[0].mxu0 %v479
      %v556 = vpop.f32.mrb[0].mxu0
      %v557 = vadd.f32 %v476, %v556
      %v558 = vpop.f32.mrb[0].mxu0
      %559 = vmatprep.mubr.f32.mxu0 0.0
      %560 = vmatmul.mubr.f32.gmra.mrb[0].mxu0 %v482
      %v561 = vpop.f32.mrb[0].mxu0
      %v562 = vadd.f32 %v476, %v561
      %v563 = vpop.f32.mrb[0].mxu0
      %564 = vmatprep.mubr.f32.mxu0 0.0
      %565 = vmatmul.mubr.f32.gmra.mrb[0].mxu0 %v485
      %v566 = vpop.f32.mrb[0].mxu0
      %v567 = vadd.f32 %v476, %v566
      %v568 = vpop.f32.mrb[0].mxu0
      %569 = vmatprep.mubr.f32.mxu0 0.0
      %570 = vmatmul.mubr.f32.gmra.mrb[0].mxu0 %v488
      %v571 = vpop.f32.mrb[0].mxu0
      %v572 = vadd.f32 %v476, %v571
      %v573 = vpop.f32.mrb[0].mxu0
      %574 = vdwg.mxu0
      %v575 = vmax.f32 %v557, 0.0
      %v576 = vmax.f32 %v562, 0.0
      %v577 = vmax.f32 %v567, 0.0
      %v578 = vmax.f32 %v572, 0.0
      %v579 = vlaneseq
      %v580 = vshrl.u32 %v579, 7
      %v581 = vsub.s32 1, %v580
      %v582 = vrot.slane %v466, %v581
      %v585 = vcombine.low %v471, %v472
      %v586 = vsel %vm477, %v585, 0
      %588 = vmatprep.subr.mxu0 0.0
      %589 = vmatpush1.msra.mxu0 %v456
      %590 = vmatprep.subr.mxu0 0.0
      %591 = vmatpush1.msra.mxu0 %v457
      %592 = vmatprep.subr.mxu0 0.0
      %593 = vmatpush1.msra.mxu0 %v458
      %594 = vmatprep.subr.mxu0 0.0
      %595 = vmatpush1.msra.mxu0 %v459
      %596 = vmatprep.subr.mxu0 0.0
      %597 = vmatpush1.msra.mxu0 %v460
      %598 = vmatprep.subr.mxu0 0.0
      %599 = vmatpush1.msra.mxu0 %v461
      %600 = vmatprep.subr.mxu0 0.0
      %601 = vmatpush1.msra.mxu0 0.0
      %602 = vmatprep.subr.mxu0 0.0
      %603 = vmatpush1.msra.mxu0 0.0
      %604 = vmatprep.subr.mxu0 0.0
      %605 = vmatpush1.msra.mxu0 0.0
      %606 = vmatprep.subr.mxu0 0.0
      %607 = vmatpush1.msra.mxu0 0.0
      %608 = vmatprep.subr.mxu0 0.0
      %609 = vmatpush1.msra.mxu0 0.0
      %610 = vmatprep.subr.mxu0 0.0
      %611 = vmatpush1.msra.mxu0 0.0
      %612 = vmatprep.subr.mxu0 0.0
      %613 = vmatpush1.msra.mxu0 0.0
      %614 = vmatprep.subr.mxu0 0.0
      %615 = vmatpush1.msra.mxu0 0.0
      %616 = vmatprep.subr.mxu0 0.0
      %617 = vmatpush1.msra.mxu0 0.0
      %618 = vmatprep.subr.mxu0 0.0
      %619 = vmatpush1.msra.mxu0 0.0
      %620 = vmatprep.subr.mxu0 0.0
      %621 = vmatpush1.msra.mxu0 0.0
      %622 = vmatprep.subr.mxu0 0.0
      %623 = vmatpush1.msra.mxu0 0.0
      %624 = vmatprep.subr.mxu0 0.0
      %625 = vmatpush1.msra.mxu0 0.0
      %626 = vmatprep.subr.mxu0 0.0
      %627 = vmatpush1.msra.mxu0 0.0
      %628 = vmatprep.subr.mxu0 0.0
      %629 = vmatpush1.msra.mxu0 0.0
      %630 = vmatprep.subr.mxu0 0.0
      %631 = vmatpush1.msra.mxu0 0.0
      %632 = vmatprep.subr.mxu0 0.0
      %633 = vmatpush1.msra.mxu0 0.0
      %634 = vmatprep.subr.mxu0 0.0
      %635 = vmatpush1.msra.mxu0 0.0
      %636 = vmatprep.subr.mxu0 0.0
      %637 = vmatpush1.msra.mxu0 0.0
      %638 = vmatprep.subr.mxu0 0.0
      %639 = vmatpush1.msra.mxu0 0.0
      %640 = vmatprep.subr.mxu0 0.0
      %641 = vmatpush1.msra.mxu0 0.0
      %642 = vmatprep.subr.mxu0 0.0
      %643 = vmatpush1.msra.mxu0 0.0
      %644 = vmatprep.subr.mxu0 0.0
      %645 = vmatpush1.msra.mxu0 0.0
      %646 = vmatprep.subr.mxu0 0.0
      %647 = vmatpush1.msra.mxu0 0.0
      %648 = vmatprep.subr.mxu0 0.0
      %649 = vmatpush1.msra.mxu0 0.0
      %650 = vmatprep.subr.mxu0 0.0
      %651 = vmatpush1.msra.mxu0 0.0
      %652 = vmatprep.mubr.f32.mxu0 0.0
      %653 = vmatmul.mubr.f32.gmra.mrb[0].mxu0 %v586
      %v654 = vpop.f32.mrb[0].mxu0
      %v655 = vadd.f32 %v582, %v654
      %v656 = vpop.f32.mrb[0].mxu0
      %657 = vdwg.mxu0
      %v658 = vmax.f32 %v655, 0.0
      %v659 = vld [vmem:[%s6] sm:$0xff]
      %v660 = vld [vmem:[%s6 + $0x8] sm:$0xff]
      %v661 = vld [vmem:[%s6 + $0x10] sm:$0xff]
      %v662 = vld [vmem:[%s6 + $0x18] sm:$0xff]
      %v663 = vld [vmem:[%s6 + $0x20] sm:$0xff]
      %v664 = vld [vmem:[%s6 + $0x28] sm:$0xff]
      %v665 = vld [vmem:[%s6 + $0x30] sm:$0xff]
      %v666 = vld [vmem:[%s6 + $0x38] sm:$0xff]
      %v667 = vld [vmem:[%s6 + $0x40] sm:$0xff]
      %v668 = vld [vmem:[%s6 + $0x48] sm:$0xff]
      %v669 = vld [vmem:[%s6 + $0x50] sm:$0xff]
      %v670 = vld [vmem:[%s6 + $0x58] sm:$0xff]
      %v671 = vld [vmem:[%s6 + $0x60] sm:$0xff]
      %v672 = vld [vmem:[%s6 + $0x68] sm:$0xff]
      %v673 = vld [vmem:[%s6 + $0x70] sm:$0xff]
      %v674 = vld [vmem:[%s6 + $0x78] sm:$0xff]
      %v675 = vld [vmem:[%s6 + $0x80] sm:$0xff]
      %v676 = vld [vmem:[%s6 + $0x88] sm:$0xff]
      %v677 = vld [vmem:[%s6 + $0x90] sm:$0xff]
      %v678 = vld [vmem:[%s6 + $0x98] sm:$0xff]
      %v679 = vld [vmem:[%s6 + $0xa0] sm:$0xff]
      %v680 = vld [vmem:[%s7] sm:$0xff]
      %v681 = vld [vmem:[%s7 + $0x8] sm:$0xff]
      %v682 = vld [vmem:[%s7 + $0x10] sm:$0xff]
      %v683 = vld [vmem:[%s7 + $0x18] sm:$0xff]
      %v684 = vld [vmem:[%s7 + $0x20] sm:$0xff]
      %v685 = vld [vmem:[%s7 + $0x28] sm:$0xff]
      %v686 = vld [vmem:[%s7 + $0x30] sm:$0xff]
      %v687 = vld [vmem:[%s7 + $0x38] sm:$0xff]
      %vm688 = vcmask 261120
      %v690 = vsel %vm688, %v575, 0
      %v693 = vsel %vm688, %v576, 0
      %v696 = vsel %vm688, %v577, 0
      %v699 = vsel %vm688, %v578, 0
      %701 = vmatprep.subr.mxu0 0.0
      %702 = vmatpush1.msra.mxu0 %v659
      %703 = vmatprep.subr.mxu0 0.0
      %704 = vmatpush1.msra.mxu0 %v660
      %705 = vmatprep.subr.mxu0 0.0
      %706 = vmatpush1.msra.mxu0 %v661
      %707 = vmatprep.subr.mxu0 0.0
      %708 = vmatpush1.msra.mxu0 %v662
      %709 = vmatprep.subr.mxu0 0.0
      %710 = vmatpush1.msra.mxu0 0.0
      %711 = vmatprep.subr.mxu0 0.0
      %712 = vmatpush1.msra.mxu0 0.0
      %713 = vmatprep.subr.mxu0 0.0
      %714 = vmatpush1.msra.mxu0 0.0
      %715 = vmatprep.subr.mxu0 0.0
      %716 = vmatpush1.msra.mxu0 0.0
      %717 = vmatprep.subr.mxu0 0.0
      %718 = vmatpush1.msra.mxu0 0.0
      %719 = vmatprep.subr.mxu0 0.0
      %720 = vmatpush1.msra.mxu0 0.0
      %721 = vmatprep.subr.mxu0 0.0
      %722 = vmatpush1.msra.mxu0 0.0
      %723 = vmatprep.subr.mxu0 0.0
      %724 = vmatpush1.msra.mxu0 0.0
      %725 = vmatprep.subr.mxu0 0.0
      %726 = vmatpush1.msra.mxu0 0.0
      %727 = vmatprep.subr.mxu0 0.0
      %728 = vmatpush1.msra.mxu0 0.0
      %729 = vmatprep.subr.mxu0 0.0
      %730 = vmatpush1.msra.mxu0 0.0
      %731 = vmatprep.subr.mxu0 0.0
      %732 = vmatpush1.msra.mxu0 0.0
      %733 = vmatprep.subr.mxu0 0.0
      %734 = vmatpush1.msra.mxu0 0.0
      %735 = vmatprep.subr.mxu0 0.0
      %736 = vmatpush1.msra.mxu0 0.0
      %737 = vmatprep.subr.mxu0 0.0
      %738 = vmatpush1.msra.mxu0 0.0
      %739 = vmatprep.subr.mxu0 0.0
      %740 = vmatpush1.msra.mxu0 0.0
      %741 = vmatprep.subr.mxu0 0.0
      %742 = vmatpush1.msra.mxu0 0.0
      %743 = vmatprep.subr.mxu0 0.0
      %744 = vmatpush1.msra.mxu0 0.0
      %745 = vmatprep.subr.mxu0 0.0
      %746 = vmatpush1.msra.mxu0 0.0
      %747 = vmatprep.subr.mxu0 0.0
      %748 = vmatpush1.msra.mxu0 0.0
      %749 = vmatprep.subr.mxu0 0.0
      %750 = vmatpush1.msra.mxu0 0.0
      %751 = vmatprep.subr.mxu0 0.0
      %752 = vmatpush1.msra.mxu0 0.0
      %753 = vmatprep.subr.mxu0 0.0
      %754 = vmatpush1.msra.mxu0 0.0
      %755 = vmatprep.subr.mxu0 0.0
      %756 = vmatpush1.msra.mxu0 0.0
      %757 = vmatprep.subr.mxu0 0.0
      %758 = vmatpush1.msra.mxu0 0.0
      %759 = vmatprep.subr.mxu0 0.0
      %760 = vmatpush1.msra.mxu0 0.0
      %761 = vmatprep.subr.mxu0 0.0
      %762 = vmatpush1.msra.mxu0 0.0
      %763 = vmatprep.subr.mxu0 0.0
      %764 = vmatpush1.msra.mxu0 0.0
      %765 = vmatprep.mubr.f32.mxu0 0.0
      %766 = vmatmul.mubr.f32.gmra.mrb[0].mxu0 %v690
      %v767 = vpop.f32.mrb[0].mxu0
      %v768 = vadd.f32 0.0, %v767
      %v769 = vpop.f32.mrb[0].mxu0
      %770 = vmatprep.mubr.f32.mxu0 0.0
      %771 = vmatmul.mubr.f32.gmra.mrb[0].mxu0 %v693
      %v772 = vpop.f32.mrb[0].mxu0
      %v773 = vadd.f32 0.0, %v772
      %v774 = vpop.f32.mrb[0].mxu0
      %775 = vmatprep.mubr.f32.mxu0 0.0
      %776 = vmatmul.mubr.f32.gmra.mrb[0].mxu0 %v696
      %v777 = vpop.f32.mrb[0].mxu0
      %v778 = vadd.f32 0.0, %v777
      %v779 = vpop.f32.mrb[0].mxu0
      %780 = vmatprep.mubr.f32.mxu0 0.0
      %781 = vmatmul.mubr.f32.gmra.mrb[0].mxu0 %v699
      %v782 = vpop.f32.mrb[0].mxu0
      %v783 = vadd.f32 0.0, %v782
      %v784 = vpop.f32.mrb[0].mxu0
      %785 = vdwg.mxu0
      %786 = vmatprep.subr.mxu0 0.0
      %787 = vmatpush1.msra.mxu0 %v675
      %788 = vmatprep.subr.mxu0 0.0
      %789 = vmatpush1.msra.mxu0 %v676
      %790 = vmatprep.subr.mxu0 0.0
      %791 = vmatpush1.msra.mxu0 %v677
      %792 = vmatprep.subr.mxu0 0.0
      %793 = vmatpush1.msra.mxu0 %v678
      %794 = vmatprep.subr.mxu0 0.0
      %795 = vmatpush1.msra.mxu0 0.0
      %796 = vmatprep.subr.mxu0 0.0
      %797 = vmatpush1.msra.mxu0 0.0
      %798 = vmatprep.subr.mxu0 0.0
      %799 = vmatpush1.msra.mxu0 0.0
      %800 = vmatprep.subr.mxu0 0.0
      %801 = vmatpush1.msra.mxu0 0.0
      %802 = vmatprep.subr.mxu0 0.0
      %803 = vmatpush1.msra.mxu0 0.0
      %804 = vmatprep.subr.mxu0 0.0
      %805 = vmatpush1.msra.mxu0 0.0
      %806 = vmatprep.subr.mxu0 0.0
      %807 = vmatpush1.msra.mxu0 0.0
      %808 = vmatprep.subr.mxu0 0.0
      %809 = vmatpush1.msra.mxu0 0.0
      %810 = vmatprep.subr.mxu0 0.0
      %811 = vmatpush1.msra.mxu0 0.0
      %812 = vmatprep.subr.mxu0 0.0
      %813 = vmatpush1.msra.mxu0 0.0
      %814 = vmatprep.subr.mxu0 0.0
      %815 = vmatpush1.msra.mxu0 0.0
      %816 = vmatprep.subr.mxu0 0.0
      %817 = vmatpush1.msra.mxu0 0.0
      %818 = vmatprep.subr.mxu0 0.0
      %819 = vmatpush1.msra.mxu0 0.0
      %820 = vmatprep.subr.mxu0 0.0
      %821 = vmatpush1.msra.mxu0 0.0
      %822 = vmatprep.subr.mxu0 0.0
      %823 = vmatpush1.msra.mxu0 0.0
      %824 = vmatprep.subr.mxu0 0.0
      %825 = vmatpush1.msra.mxu0 0.0
      %826 = vmatprep.subr.mxu0 0.0
      %827 = vmatpush1.msra.mxu0 0.0
      %828 = vmatprep.subr.mxu0 0.0
      %829 = vmatpush1.msra.mxu0 0.0
      %830 = vmatprep.subr.mxu0 0.0
      %831 = vmatpush1.msra.mxu0 0.0
      %832 = vmatprep.subr.mxu0 0.0
      %833 = vmatpush1.msra.mxu0 0.0
      %834 = vmatprep.subr.mxu0 0.0
      %835 = vmatpush1.msra.mxu0 0.0
      %836 = vmatprep.subr.mxu0 0.0
      %837 = vmatpush1.msra.mxu0 0.0
      %838 = vmatprep.subr.mxu0 0.0
      %839 = vmatpush1.msra.mxu0 0.0
      %840 = vmatprep.subr.mxu0 0.0
      %841 = vmatpush1.msra.mxu0 0.0
      %842 = vmatprep.subr.mxu0 0.0
      %843 = vmatpush1.msra.mxu0 0.0
      %844 = vmatprep.subr.mxu0 0.0
      %845 = vmatpush1.msra.mxu0 0.0
      %846 = vmatprep.subr.mxu0 0.0
      %847 = vmatpush1.msra.mxu0 0.0
      %848 = vmatprep.subr.mxu0 0.0
      %849 = vmatpush1.msra.mxu0 0.0
      %850 = vmatprep.mubr.f32.mxu0 0.0
      %851 = vmatmul.mubr.f32.gmra.mrb[0].mxu0 %v690
      %v852 = vpop.f32.mrb[0].mxu0
      %v853 = vadd.f32 0.0, %v852
      %v854 = vpop.f32.mrb[0].mxu0
      %855 = vmatprep.mubr.f32.mxu0 0.0
      %856 = vmatmul.mubr.f32.gmra.mrb[0].mxu0 %v693
      %v857 = vpop.f32.mrb[0].mxu0
      %v858 = vadd.f32 0.0, %v857
      %v859 = vpop.f32.mrb[0].mxu0
      %860 = vmatprep.mubr.f32.mxu0 0.0
      %861 = vmatmul.mubr.f32.gmra.mrb[0].mxu0 %v696
      %v862 = vpop.f32.mrb[0].mxu0
      %v863 = vadd.f32 0.0, %v862
      %v864 = vpop.f32.mrb[0].mxu0
      %865 = vmatprep.mubr.f32.mxu0 0.0
      %866 = vmatmul.mubr.f32.gmra.mrb[0].mxu0 %v699
      %v867 = vpop.f32.mrb[0].mxu0
      %v868 = vadd.f32 0.0, %v867
      %v869 = vpop.f32.mrb[0].mxu0
      %870 = vdwg.mxu0
      %v872 = vsel %vm688, %v679, 0
      %874 = vmatprep.subr.mxu0 0.0
      %875 = vmatpush1.xpose.msra.mxu0 %v690
      %876 = vmatprep.subr.mxu0 0.0
      %877 = vmatpush1.xpose.msra.mxu0 %v693
      %878 = vmatprep.subr.mxu0 0.0
      %879 = vmatpush1.xpose.msra.mxu0 %v696
      %880 = vmatprep.subr.mxu0 0.0
      %881 = vmatpush1.xpose.msra.mxu0 %v699
      %882 = vmatprep.subr.mxu0 0.0
      %883 = vmatpush1.xpose.msra.mxu0 0.0
      %884 = vmatprep.subr.mxu0 0.0
      %885 = vmatpush1.xpose.msra.mxu0 0.0
      %886 = vmatprep.subr.mxu0 0.0
      %887 = vmatpush1.xpose.msra.mxu0 0.0
      %888 = vmatprep.subr.mxu0 0.0
      %889 = vmatpush1.xpose.msra.mxu0 0.0
      %890 = vmatprep.subr.mxu0 0.0
      %891 = vmatpush1.xpose.msra.mxu0 0.0
      %892 = vmatprep.subr.mxu0 0.0
      %893 = vmatpush1.xpose.msra.mxu0 0.0
      %894 = vmatprep.subr.mxu0 0.0
      %895 = vmatpush1.xpose.msra.mxu0 0.0
      %896 = vmatprep.subr.mxu0 0.0
      %897 = vmatpush1.xpose.msra.mxu0 0.0
      %898 = vmatprep.subr.mxu0 0.0
      %899 = vmatpush1.xpose.msra.mxu0 0.0
      %900 = vmatprep.subr.mxu0 0.0
      %901 = vmatpush1.xpose.msra.mxu0 0.0
      %902 = vmatprep.subr.mxu0 0.0
      %903 = vmatpush1.xpose.msra.mxu0 0.0
      %904 = vmatprep.subr.mxu0 0.0
      %905 = vmatpush1.xpose.msra.mxu0 0.0
      %906 = vmatprep.subr.mxu0 0.0
      %907 = vmatpush1.xpose.msra.mxu0 0.0
      %908 = vmatprep.subr.mxu0 0.0
      %909 = vmatpush1.xpose.msra.mxu0 0.0
      %910 = vmatprep.subr.mxu0 0.0
      %911 = vmatpush1.xpose.msra.mxu0 0.0
      %912 = vmatprep.subr.mxu0 0.0
      %913 = vmatpush1.xpose.msra.mxu0 0.0
      %914 = vmatprep.subr.mxu0 0.0
      %915 = vmatpush1.xpose.msra.mxu0 0.0
      %916 = vmatprep.subr.mxu0 0.0
      %917 = vmatpush1.xpose.msra.mxu0 0.0
      %918 = vmatprep.subr.mxu0 0.0
      %919 = vmatpush1.xpose.msra.mxu0 0.0
      %920 = vmatprep.subr.mxu0 0.0
      %921 = vmatpush1.xpose.msra.mxu0 0.0
      %922 = vmatprep.subr.mxu0 0.0
      %923 = vmatpush1.xpose.msra.mxu0 0.0
      %924 = vmatprep.subr.mxu0 0.0
      %925 = vmatpush1.xpose.msra.mxu0 0.0
      %926 = vmatprep.subr.mxu0 0.0
      %927 = vmatpush1.xpose.msra.mxu0 0.0
      %928 = vmatprep.subr.mxu0 0.0
      %929 = vmatpush1.xpose.msra.mxu0 0.0
      %930 = vmatprep.subr.mxu0 0.0
      %931 = vmatpush1.xpose.msra.mxu0 0.0
      %932 = vmatprep.subr.mxu0 0.0
      %933 = vmatpush1.xpose.msra.mxu0 0.0
      %934 = vmatprep.subr.mxu0 0.0
      %935 = vmatpush1.xpose.msra.mxu0 0.0
      %936 = vmatprep.subr.mxu0 0.0
      %937 = vmatpush1.xpose.msra.mxu0 0.0
      %938 = vmatprep.mubr.f32.mxu0 0.0
      %939 = vmatmul.mubr.f32.gmra.mrb[0].mxu0 %v872
      %v940 = vpop.f32.mrb[0].mxu0
      %v941 = vadd.f32 0.0, %v940
      %v942 = vpop.f32.mrb[0].mxu0
      %943 = vdwg.mxu0
      %v944 = vld [vmem:[%s416] sm:$0xff]
      %v945 = vld [vmem:[%s416 + $0x8] sm:$0xff]
      %v946 = vld [vmem:[%s423] sm:$0xff]
      %v947 = vld [vmem:[%s423 + $0x8] sm:$0xff]
      %949 = vset.pattern.permute.xlu0 0
      %950 = vperm.xlu0 %949, %v853
      %v951 = vpop.permute.xlu0 %950
      %954 = vset.pattern.permute.xlu0 0
      %955 = vperm.xlu0 %954, %v858
      %v956 = vpop.permute.xlu0 %955
      %v958 = vlaneseq
      %v959 = vshrl.u32 %v958, 7
      %v960 = vsub.s32 0, %v959
      %v961 = vrot.slane %v941, %v960
      %v962 = vadd.f32 %v951, %v961
      %v963 = vadd.f32 %v956, %v961
      %vm964 = vcmp.eq.s32.totalorder %v946, 0
      %vm965 = vcmp.eq.s32.totalorder %v947, 0
      %v966 = vrot.slane %v679, 2
      %s967 = vtos %v966
      %v968 = vstv %s967
      %970 = vrot.lane.b32.xlu0 %v966, 127
      %v971 = vpop.permute.xlu0 %970
      %s972 = vtos %v971
      %v973 = vstv %s972
      %v975 = vsel %vm964, %v968, %v973
      %v976 = vsel %vm965, %v968, %v973
      %v977 = vadd.f32 %v962, %v975
      %v978 = vadd.f32 %v963, %v976
      %vm979 = vcmp.gt.f32.partialorder %v977, 0.0
      %vm980 = vcmp.gt.f32.partialorder %v978, 0.0
      %v981 = vmul.f32 %v977, 0.1
      %v982 = vmul.f32 %v978, 0.1
      %v983 = vsel %vm979, %v977, %v981
      %v984 = vsel %vm980, %v978, %v982
      %vm985 = vcmp.gt.f32.partialorder %v944, 0.0
      %vm986 = vcmp.gt.f32.partialorder %v945, 0.0
      %v987 = vsel %vm985, %v983, -9e+15
      %v988 = vsel %vm986, %v984, -9e+15
      %vm989 = vcmask 130048
      %v990 = vsel %vm989, %v987, -inf
      %991 = vmax.xlane.f32.xlu0 %v990
      %v992 = vpop.xlane.xlu0 %991
      %v993 = vsel %vm989, %v988, -inf
      %994 = vmax.xlane.f32.xlu0 %v993
      %v995 = vpop.xlane.xlu0 %994
      %v996 = vsub.f32 %v987, %v992
      %v997 = vsub.f32 %v988, %v995
      %v998 = vmul.f32 %v996, 1.442695
      %v999 = vpow.pop %v998
      %v1000 = vmul.f32 %v997, 1.442695
      %v1001 = vpow.pop %v1000
      %v1002 = vsel %vm989, %v999, 0.0
      %1003 = vadd.xlane.f32.xlu0 %v1002
      %v1004 = vpop.xlane.xlu0 %1003
      %v1005 = vsel %vm989, %v1001, 0.0
      %1006 = vadd.xlane.f32.xlu0 %v1005
      %v1007 = vpop.xlane.xlu0 %1006
      %v1008 = vrcp.pop %v1004
      %v1009 = vrcp.pop %v1007
      %v1010 = vmul.f32 %v999, %v1008
      %v1011 = vmul.f32 %v1001, %v1009
      %v1013 = vsel %vm989, %v1010, 0
      %v1016 = vsel %vm989, %v1011, 0
      %1018 = vmatprep.subr.mxu0 0.0
      %1019 = vmatpush1.msra.mxu0 %v768
      %1020 = vmatprep.subr.mxu0 0.0
      %1021 = vmatpush1.msra.mxu0 %v773
      %1022 = vmatprep.subr.mxu0 0.0
      %1023 = vmatpush1.msra.mxu0 0.0
      %1024 = vmatprep.subr.mxu0 0.0
      %1025 = vmatpush1.msra.mxu0 0.0
      %1026 = vmatprep.subr.mxu0 0.0
      %1027 = vmatpush1.msra.mxu0 0.0
      %1028 = vmatprep.subr.mxu0 0.0
      %1029 = vmatpush1.msra.mxu0 0.0
      %1030 = vmatprep.subr.mxu0 0.0
      %1031 = vmatpush1.msra.mxu0 0.0
      %1032 = vmatprep.subr.mxu0 0.0
      %1033 = vmatpush1.msra.mxu0 0.0
      %1034 = vmatprep.subr.mxu0 0.0
      %1035 = vmatpush1.msra.mxu0 0.0
      %1036 = vmatprep.subr.mxu0 0.0
      %1037 = vmatpush1.msra.mxu0 0.0
      %1038 = vmatprep.subr.mxu0 0.0
      %1039 = vmatpush1.msra.mxu0 0.0
      %1040 = vmatprep.subr.mxu0 0.0
      %1041 = vmatpush1.msra.mxu0 0.0
      %1042 = vmatprep.subr.mxu0 0.0
      %1043 = vmatpush1.msra.mxu0 0.0
      %1044 = vmatprep.subr.mxu0 0.0
      %1045 = vmatpush1.msra.mxu0 0.0
      %1046 = vmatprep.subr.mxu0 0.0
      %1047 = vmatpush1.msra.mxu0 0.0
      %1048 = vmatprep.subr.mxu0 0.0
      %1049 = vmatpush1.msra.mxu0 0.0
      %1050 = vmatprep.subr.mxu0 0.0
      %1051 = vmatpush1.msra.mxu0 0.0
      %1052 = vmatprep.subr.mxu0 0.0
      %1053 = vmatpush1.msra.mxu0 0.0
      %1054 = vmatprep.subr.mxu0 0.0
      %1055 = vmatpush1.msra.mxu0 0.0
      %1056 = vmatprep.subr.mxu0 0.0
      %1057 = vmatpush1.msra.mxu0 0.0
      %1058 = vmatprep.subr.mxu0 0.0
      %1059 = vmatpush1.msra.mxu0 0.0
      %1060 = vmatprep.subr.mxu0 0.0
      %1061 = vmatpush1.msra.mxu0 0.0
      %1062 = vmatprep.subr.mxu0 0.0
      %1063 = vmatpush1.msra.mxu0 0.0
      %1064 = vmatprep.subr.mxu0 0.0
      %1065 = vmatpush1.msra.mxu0 0.0
      %1066 = vmatprep.subr.mxu0 0.0
      %1067 = vmatpush1.msra.mxu0 0.0
      %1068 = vmatprep.subr.mxu0 0.0
      %1069 = vmatpush1.msra.mxu0 0.0
      %1070 = vmatprep.subr.mxu0 0.0
      %1071 = vmatpush1.msra.mxu0 0.0
      %1072 = vmatprep.subr.mxu0 0.0
      %1073 = vmatpush1.msra.mxu0 0.0
      %1074 = vmatprep.subr.mxu0 0.0
      %1075 = vmatpush1.msra.mxu0 0.0
      %1076 = vmatprep.subr.mxu0 0.0
      %1077 = vmatpush1.msra.mxu0 0.0
      %1078 = vmatprep.subr.mxu0 0.0
      %1079 = vmatpush1.msra.mxu0 0.0
      %1080 = vmatprep.subr.mxu0 0.0
      %1081 = vmatpush1.msra.mxu0 0.0
      %1082 = vmatprep.mubr.f32.mxu0 0.0
      %1083 = vmatmul.mubr.f32.gmra.mrb[0].mxu0 %v1013
      %v1084 = vpop.f32.mrb[0].mxu0
      %v1085 = vadd.f32 0.0, %v1084
      %v1086 = vpop.f32.mrb[0].mxu0
      %1087 = vmatprep.mubr.f32.mxu0 0.0
      %1088 = vmatmul.mubr.f32.gmra.mrb[0].mxu0 %v1016
      %v1089 = vpop.f32.mrb[0].mxu0
      %v1090 = vadd.f32 0.0, %v1089
      %v1091 = vpop.f32.mrb[0].mxu0
      %1092 = vdwg.mxu0
      %vm1093 = vcmp.gt.f32.partialorder %v1085, 0.0
      %vm1094 = vcmp.gt.f32.partialorder %v1090, 0.0
      %v1095 = vmin.f32 %v1085, 0.0
      %v1096 = vmin.f32 %v1090, 0.0
      %v1097 = vmul.f32 %v1095, 1.442695
      %v1098 = vpow.pop %v1097
      %v1099 = vmul.f32 %v1096, 1.442695
      %v1100 = vpow.pop %v1099
      %v1101 = vsub.f32 %v1098, 1.0
      %v1102 = vsub.f32 %v1100, 1.0
      %v1103 = vsel %vm1093, %v1085, %v1101
      %v1104 = vsel %vm1094, %v1090, %v1102
      %v1105 = vld [vmem:[%s436] sm:$0xff]
      %v1106 = vld [vmem:[%s436 + $0x8] sm:$0xff]
      %v1107 = vld [vmem:[%s436 + $0x10] sm:$0xf]
      %vm1111 = vcmask 1043456
      %v1112 = vrot.slane %v1105, 4
      %v1113 = vrot.slane %v1106, 4
      %v1114 = vsel %vm1111, %v1112, %v1113
      %v1115 = vrot.slane %v1107, 4
      %v1116 = vsel %vm1111, %v1113, %v1115
      %vm1117 = vcmask 31744
      %v1118 = vsel %vm1117, %v1114, 0
      %v1120 = vsel %vm1117, %v1116, 0
      %v1123 = vsel %vm1111, %v658, 0
      %1125 = vmatprep.subr.mxu0 0.0
      %1126 = vmatpush1.msra.mxu0 %v1123
      %1127 = vmatprep.subr.mxu0 0.0
      %1128 = vmatpush1.msra.mxu0 0.0
      %1129 = vmatprep.subr.mxu0 0.0
      %1130 = vmatpush1.msra.mxu0 0.0
      %1131 = vmatprep.subr.mxu0 0.0
      %1132 = vmatpush1.msra.mxu0 0.0
      %1133 = vmatprep.subr.mxu0 0.0
      %1134 = vmatpush1.msra.mxu0 0.0
      %1135 = vmatprep.subr.mxu0 0.0
      %1136 = vmatpush1.msra.mxu0 0.0
      %1137 = vmatprep.subr.mxu0 0.0
      %1138 = vmatpush1.msra.mxu0 0.0
      %1139 = vmatprep.subr.mxu0 0.0
      %1140 = vmatpush1.msra.mxu0 0.0
      %1141 = vmatprep.subr.mxu0 0.0
      %1142 = vmatpush1.msra.mxu0 0.0
      %1143 = vmatprep.subr.mxu0 0.0
      %1144 = vmatpush1.msra.mxu0 0.0
      %1145 = vmatprep.subr.mxu0 0.0
      %1146 = vmatpush1.msra.mxu0 0.0
      %1147 = vmatprep.subr.mxu0 0.0
      %1148 = vmatpush1.msra.mxu0 0.0
      %1149 = vmatprep.subr.mxu0 0.0
      %1150 = vmatpush1.msra.mxu0 0.0
      %1151 = vmatprep.subr.mxu0 0.0
      %1152 = vmatpush1.msra.mxu0 0.0
      %1153 = vmatprep.subr.mxu0 0.0
      %1154 = vmatpush1.msra.mxu0 0.0
      %1155 = vmatprep.subr.mxu0 0.0
      %1156 = vmatpush1.msra.mxu0 0.0
      %1157 = vmatprep.subr.mxu0 0.0
      %1158 = vmatpush1.msra.mxu0 0.0
      %1159 = vmatprep.subr.mxu0 0.0
      %1160 = vmatpush1.msra.mxu0 0.0
      %1161 = vmatprep.subr.mxu0 0.0
      %1162 = vmatpush1.msra.mxu0 0.0
      %1163 = vmatprep.subr.mxu0 0.0
      %1164 = vmatpush1.msra.mxu0 0.0
      %1165 = vmatprep.subr.mxu0 0.0
      %1166 = vmatpush1.msra.mxu0 0.0
      %1167 = vmatprep.subr.mxu0 0.0
      %1168 = vmatpush1.msra.mxu0 0.0
      %1169 = vmatprep.subr.mxu0 0.0
      %1170 = vmatpush1.msra.mxu0 0.0
      %1171 = vmatprep.subr.mxu0 0.0
      %1172 = vmatpush1.msra.mxu0 0.0
      %1173 = vmatprep.subr.mxu0 0.0
      %1174 = vmatpush1.msra.mxu0 0.0
      %1175 = vmatprep.subr.mxu0 0.0
      %1176 = vmatpush1.msra.mxu0 0.0
      %1177 = vmatprep.subr.mxu0 0.0
      %1178 = vmatpush1.msra.mxu0 0.0
      %1179 = vmatprep.subr.mxu0 0.0
      %1180 = vmatpush1.msra.mxu0 0.0
      %1181 = vmatprep.subr.mxu0 0.0
      %1182 = vmatpush1.msra.mxu0 0.0
      %1183 = vmatprep.subr.mxu0 0.0
      %1184 = vmatpush1.msra.mxu0 0.0
      %1185 = vmatprep.subr.mxu0 0.0
      %1186 = vmatpush1.msra.mxu0 0.0
      %1187 = vmatprep.subr.mxu0 0.0
      %1188 = vmatpush1.msra.mxu0 0.0
      %1189 = vmatprep.mubr.f32.mxu0 0.0
      %1190 = vmatmul.mubr.f32.gmra.mrb[0].mxu0 %v1118
      %v1191 = vpop.f32.mrb[0].mxu0
      %v1192 = vadd.f32 0.0, %v1191
      %v1193 = vpop.f32.mrb[0].mxu0
      %1194 = vmatprep.mubr.f32.mxu0 0.0
      %1195 = vmatmul.mubr.f32.gmra.mrb[0].mxu0 %v1120
      %v1196 = vpop.f32.mrb[0].mxu0
      %v1197 = vadd.f32 0.0, %v1196
      %v1198 = vpop.f32.mrb[0].mxu0
      %1199 = vdwg.mxu0
      %v1200 = vsel %vm989, %v1105, 0
      %1202 = vmatprep.subr.mxu0 0.0
      %1203 = vmatpush1.msra.mxu0 %v575
      %1204 = vmatprep.subr.mxu0 0.0
      %1205 = vmatpush1.msra.mxu0 %v576
      %1206 = vmatprep.subr.mxu0 0.0
      %1207 = vmatpush1.msra.mxu0 0.0
      %1208 = vmatprep.subr.mxu0 0.0
      %1209 = vmatpush1.msra.mxu0 0.0
      %1210 = vmatprep.subr.mxu0 0.0
      %1211 = vmatpush1.msra.mxu0 0.0
      %1212 = vmatprep.subr.mxu0 0.0
      %1213 = vmatpush1.msra.mxu0 0.0
      %1214 = vmatprep.subr.mxu0 0.0
      %1215 = vmatpush1.msra.mxu0 0.0
      %1216 = vmatprep.subr.mxu0 0.0
      %1217 = vmatpush1.msra.mxu0 0.0
      %1218 = vmatprep.subr.mxu0 0.0
      %1219 = vmatpush1.msra.mxu0 0.0
      %1220 = vmatprep.subr.mxu0 0.0
      %1221 = vmatpush1.msra.mxu0 0.0
      %1222 = vmatprep.subr.mxu0 0.0
      %1223 = vmatpush1.msra.mxu0 0.0
      %1224 = vmatprep.subr.mxu0 0.0
      %1225 = vmatpush1.msra.mxu0 0.0
      %1226 = vmatprep.subr.mxu0 0.0
      %1227 = vmatpush1.msra.mxu0 0.0
      %1228 = vmatprep.subr.mxu0 0.0
      %1229 = vmatpush1.msra.mxu0 0.0
      %1230 = vmatprep.subr.mxu0 0.0
      %1231 = vmatpush1.msra.mxu0 0.0
      %1232 = vmatprep.subr.mxu0 0.0
      %1233 = vmatpush1.msra.mxu0 0.0
      %1234 = vmatprep.subr.mxu0 0.0
      %1235 = vmatpush1.msra.mxu0 0.0
      %1236 = vmatprep.subr.mxu0 0.0
      %1237 = vmatpush1.msra.mxu0 0.0
      %1238 = vmatprep.subr.mxu0 0.0
      %1239 = vmatpush1.msra.mxu0 0.0
      %1240 = vmatprep.subr.mxu0 0.0
      %1241 = vmatpush1.msra.mxu0 0.0
      %1242 = vmatprep.subr.mxu0 0.0
      %1243 = vmatpush1.msra.mxu0 0.0
      %1244 = vmatprep.subr.mxu0 0.0
      %1245 = vmatpush1.msra.mxu0 0.0
      %1246 = vmatprep.subr.mxu0 0.0
      %1247 = vmatpush1.msra.mxu0 0.0
      %1248 = vmatprep.subr.mxu0 0.0
      %1249 = vmatpush1.msra.mxu0 0.0
      %1250 = vmatprep.subr.mxu0 0.0
      %1251 = vmatpush1.msra.mxu0 0.0
      %1252 = vmatprep.subr.mxu0 0.0
      %1253 = vmatpush1.msra.mxu0 0.0
      %1254 = vmatprep.subr.mxu0 0.0
      %1255 = vmatpush1.msra.mxu0 0.0
      %1256 = vmatprep.subr.mxu0 0.0
      %1257 = vmatpush1.msra.mxu0 0.0
      %1258 = vmatprep.subr.mxu0 0.0
      %1259 = vmatpush1.msra.mxu0 0.0
      %1260 = vmatprep.subr.mxu0 0.0
      %1261 = vmatpush1.msra.mxu0 0.0
      %1262 = vmatprep.subr.mxu0 0.0
      %1263 = vmatpush1.msra.mxu0 0.0
      %1264 = vmatprep.subr.mxu0 0.0
      %1265 = vmatpush1.msra.mxu0 0.0
      %1266 = vmatprep.mubr.f32.mxu0 0.0
      %1267 = vmatmul.mubr.f32.gmra.mrb[0].mxu0 %v1200
      %v1268 = vpop.f32.mrb[0].mxu0
      %v1269 = vadd.f32 0.0, %v1268
      %v1270 = vpop.f32.mrb[0].mxu0
      %1271 = vdwg.mxu0
      %s1272 = scalar_lea.vmem %s416, 16
      %v1273 = vld [vmem:[%s1272] sm:$0xff]
      %v1274 = vld [vmem:[%s1272 + $0x8] sm:$0xff]
      %s1275 = scalar_lea.vmem %s423, 16
      %v1276 = vld [vmem:[%s1275] sm:$0xff]
      %v1277 = vld [vmem:[%s1275 + $0x8] sm:$0xff]
      %1279 = vset.pattern.permute.xlu0 0
      %1280 = vperm.xlu0 %1279, %v863
      %v1281 = vpop.permute.xlu0 %1280
      %1284 = vset.pattern.permute.xlu0 0
      %1285 = vperm.xlu0 %1284, %v868
      %v1286 = vpop.permute.xlu0 %1285
      %v1288 = vadd.f32 %v1281, %v961
      %v1289 = vadd.f32 %v1286, %v961
      %vm1290 = vcmp.eq.s32.totalorder %v1276, 0
      %vm1291 = vcmp.eq.s32.totalorder %v1277, 0
      %v1292 = vsel %vm1290, %v968, %v973
      %v1293 = vsel %vm1291, %v968, %v973
      %1296 = vrot.lane.b32.xlu0 %v1292, 16
      %v1297 = vpop.permute.xlu0 %1296
      %1298 = vrot.lane.b32.xlu0 %v1293, 16
      %v1299 = vpop.permute.xlu0 %1298
      %v1302 = vadd.f32 %v1288, %v1297
      %v1303 = vadd.f32 %v1289, %v1299
      %vm1304 = vcmp.gt.f32.partialorder %v1302, 0.0
      %vm1305 = vcmp.gt.f32.partialorder %v1303, 0.0
      %v1306 = vmul.f32 %v1302, 0.1
      %v1307 = vmul.f32 %v1303, 0.1
      %v1308 = vsel %vm1304, %v1302, %v1306
      %v1309 = vsel %vm1305, %v1303, %v1307
      %vm1310 = vcmp.gt.f32.partialorder %v1273, 0.0
      %vm1311 = vcmp.gt.f32.partialorder %v1274, 0.0
      %1314 = vrot.lane.b32.xlu0 %v1308, 112
      %v1315 = vpop.permute.xlu0 %1314
      %1316 = vrot.lane.b32.xlu0 %v1309, 112
      %v1317 = vpop.permute.xlu0 %1316
      %v1320 = vsel %vm1310, %v1315, -9e+15
      %v1321 = vsel %vm1311, %v1317, -9e+15
      %v1322 = vsel %vm989, %v1320, -inf
      %1323 = vmax.xlane.f32.xlu0 %v1322
      %v1324 = vpop.xlane.xlu0 %1323
      %v1325 = vsel %vm989, %v1321, -inf
      %1326 = vmax.xlane.f32.xlu0 %v1325
      %v1327 = vpop.xlane.xlu0 %1326
      %v1328 = vsub.f32 %v1320, %v1324
      %v1329 = vsub.f32 %v1321, %v1327
      %v1330 = vmul.f32 %v1328, 1.442695
      %v1331 = vpow.pop %v1330
      %v1332 = vmul.f32 %v1329, 1.442695
      %v1333 = vpow.pop %v1332
      %v1334 = vsel %vm989, %v1331, 0.0
      %1335 = vadd.xlane.f32.xlu0 %v1334
      %v1336 = vpop.xlane.xlu0 %1335
      %v1337 = vsel %vm989, %v1333, 0.0
      %1338 = vadd.xlane.f32.xlu0 %v1337
      %v1339 = vpop.xlane.xlu0 %1338
      %v1340 = vrcp.pop %v1336
      %v1341 = vrcp.pop %v1339
      %v1342 = vmul.f32 %v1331, %v1340
      %v1343 = vmul.f32 %v1333, %v1341
      %v1345 = vsel %vm989, %v1342, 0
      %v1348 = vsel %vm989, %v1343, 0
      %1350 = vmatprep.subr.mxu0 0.0
      %1351 = vmatpush1.msra.mxu0 %v778
      %1352 = vmatprep.subr.mxu0 0.0
      %1353 = vmatpush1.msra.mxu0 %v783
      %1354 = vmatprep.subr.mxu0 0.0
      %1355 = vmatpush1.msra.mxu0 0.0
      %1356 = vmatprep.subr.mxu0 0.0
      %1357 = vmatpush1.msra.mxu0 0.0
      %1358 = vmatprep.subr.mxu0 0.0
      %1359 = vmatpush1.msra.mxu0 0.0
      %1360 = vmatprep.subr.mxu0 0.0
      %1361 = vmatpush1.msra.mxu0 0.0
      %1362 = vmatprep.subr.mxu0 0.0
      %1363 = vmatpush1.msra.mxu0 0.0
      %1364 = vmatprep.subr.mxu0 0.0
      %1365 = vmatpush1.msra.mxu0 0.0
      %1366 = vmatprep.subr.mxu0 0.0
      %1367 = vmatpush1.msra.mxu0 0.0
      %1368 = vmatprep.subr.mxu0 0.0
      %1369 = vmatpush1.msra.mxu0 0.0
      %1370 = vmatprep.subr.mxu0 0.0
      %1371 = vmatpush1.msra.mxu0 0.0
      %1372 = vmatprep.subr.mxu0 0.0
      %1373 = vmatpush1.msra.mxu0 0.0
      %1374 = vmatprep.subr.mxu0 0.0
      %1375 = vmatpush1.msra.mxu0 0.0
      %1376 = vmatprep.subr.mxu0 0.0
      %1377 = vmatpush1.msra.mxu0 0.0
      %1378 = vmatprep.subr.mxu0 0.0
      %1379 = vmatpush1.msra.mxu0 0.0
      %1380 = vmatprep.subr.mxu0 0.0
      %1381 = vmatpush1.msra.mxu0 0.0
      %1382 = vmatprep.subr.mxu0 0.0
      %1383 = vmatpush1.msra.mxu0 0.0
      %1384 = vmatprep.subr.mxu0 0.0
      %1385 = vmatpush1.msra.mxu0 0.0
      %1386 = vmatprep.subr.mxu0 0.0
      %1387 = vmatpush1.msra.mxu0 0.0
      %1388 = vmatprep.subr.mxu0 0.0
      %1389 = vmatpush1.msra.mxu0 0.0
      %1390 = vmatprep.subr.mxu0 0.0
      %1391 = vmatpush1.msra.mxu0 0.0
      %1392 = vmatprep.subr.mxu0 0.0
      %1393 = vmatpush1.msra.mxu0 0.0
      %1394 = vmatprep.subr.mxu0 0.0
      %1395 = vmatpush1.msra.mxu0 0.0
      %1396 = vmatprep.subr.mxu0 0.0
      %1397 = vmatpush1.msra.mxu0 0.0
      %1398 = vmatprep.subr.mxu0 0.0
      %1399 = vmatpush1.msra.mxu0 0.0
      %1400 = vmatprep.subr.mxu0 0.0
      %1401 = vmatpush1.msra.mxu0 0.0
      %1402 = vmatprep.subr.mxu0 0.0
      %1403 = vmatpush1.msra.mxu0 0.0
      %1404 = vmatprep.subr.mxu0 0.0
      %1405 = vmatpush1.msra.mxu0 0.0
      %1406 = vmatprep.subr.mxu0 0.0
      %1407 = vmatpush1.msra.mxu0 0.0
      %1408 = vmatprep.subr.mxu0 0.0
      %1409 = vmatpush1.msra.mxu0 0.0
      %1410 = vmatprep.subr.mxu0 0.0
      %1411 = vmatpush1.msra.mxu0 0.0
      %1412 = vmatprep.subr.mxu0 0.0
      %1413 = vmatpush1.msra.mxu0 0.0
      %1414 = vmatprep.mubr.f32.mxu0 0.0
      %1415 = vmatmul.mubr.f32.gmra.mrb[0].mxu0 %v1345
      %v1416 = vpop.f32.mrb[0].mxu0
      %v1417 = vadd.f32 0.0, %v1416
      %v1418 = vpop.f32.mrb[0].mxu0
      %1419 = vmatprep.mubr.f32.mxu0 0.0
      %1420 = vmatmul.mubr.f32.gmra.mrb[0].mxu0 %v1348
      %v1421 = vpop.f32.mrb[0].mxu0
      %v1422 = vadd.f32 0.0, %v1421
      %v1423 = vpop.f32.mrb[0].mxu0
      %1424 = vdwg.mxu0
      %vm1425 = vcmp.gt.f32.partialorder %v1417, 0.0
      %vm1426 = vcmp.gt.f32.partialorder %v1422, 0.0
      %v1427 = vmin.f32 %v1417, 0.0
      %v1428 = vmin.f32 %v1422, 0.0
      %v1429 = vmul.f32 %v1427, 1.442695
      %v1430 = vpow.pop %v1429
      %v1431 = vmul.f32 %v1428, 1.442695
      %v1432 = vpow.pop %v1431
      %v1433 = vsub.f32 %v1430, 1.0
      %v1434 = vsub.f32 %v1432, 1.0
      %v1435 = vsel %vm1425, %v1417, %v1433
      %v1436 = vsel %vm1426, %v1422, %v1434
      %s1437 = scalar_lea.vmem %s436, 24
      %v1438 = vld [vmem:[%s1437] sm:$0xff]
      %v1439 = vld [vmem:[%s1437 + $0x8] sm:$0xff]
      %v1440 = vld [vmem:[%s1437 + $0x10] sm:$0xf]
      %v1444 = vrot.slane %v1438, 4
      %v1445 = vrot.slane %v1439, 4
      %v1446 = vsel %vm1111, %v1444, %v1445
      %v1447 = vrot.slane %v1440, 4
      %v1448 = vsel %vm1111, %v1445, %v1447
      %v1449 = vrot.slane %v658, 4
      %v1450 = vsel %vm1117, %v1446, 0
      %v1452 = vsel %vm1117, %v1448, 0
      %v1454 = vsel %vm1111, %v1449, 0
      %1456 = vmatprep.subr.mxu0 0.0
      %1457 = vmatpush1.msra.mxu0 %v1454
      %1458 = vmatprep.subr.mxu0 0.0
      %1459 = vmatpush1.msra.mxu0 0.0
      %1460 = vmatprep.subr.mxu0 0.0
      %1461 = vmatpush1.msra.mxu0 0.0
      %1462 = vmatprep.subr.mxu0 0.0
      %1463 = vmatpush1.msra.mxu0 0.0
      %1464 = vmatprep.subr.mxu0 0.0
      %1465 = vmatpush1.msra.mxu0 0.0
      %1466 = vmatprep.subr.mxu0 0.0
      %1467 = vmatpush1.msra.mxu0 0.0
      %1468 = vmatprep.subr.mxu0 0.0
      %1469 = vmatpush1.msra.mxu0 0.0
      %1470 = vmatprep.subr.mxu0 0.0
      %1471 = vmatpush1.msra.mxu0 0.0
      %1472 = vmatprep.subr.mxu0 0.0
      %1473 = vmatpush1.msra.mxu0 0.0
      %1474 = vmatprep.subr.mxu0 0.0
      %1475 = vmatpush1.msra.mxu0 0.0
      %1476 = vmatprep.subr.mxu0 0.0
      %1477 = vmatpush1.msra.mxu0 0.0
      %1478 = vmatprep.subr.mxu0 0.0
      %1479 = vmatpush1.msra.mxu0 0.0
      %1480 = vmatprep.subr.mxu0 0.0
      %1481 = vmatpush1.msra.mxu0 0.0
      %1482 = vmatprep.subr.mxu0 0.0
      %1483 = vmatpush1.msra.mxu0 0.0
      %1484 = vmatprep.subr.mxu0 0.0
      %1485 = vmatpush1.msra.mxu0 0.0
      %1486 = vmatprep.subr.mxu0 0.0
      %1487 = vmatpush1.msra.mxu0 0.0
      %1488 = vmatprep.subr.mxu0 0.0
      %1489 = vmatpush1.msra.mxu0 0.0
      %1490 = vmatprep.subr.mxu0 0.0
      %1491 = vmatpush1.msra.mxu0 0.0
      %1492 = vmatprep.subr.mxu0 0.0
      %1493 = vmatpush1.msra.mxu0 0.0
      %1494 = vmatprep.subr.mxu0 0.0
      %1495 = vmatpush1.msra.mxu0 0.0
      %1496 = vmatprep.subr.mxu0 0.0
      %1497 = vmatpush1.msra.mxu0 0.0
      %1498 = vmatprep.subr.mxu0 0.0
      %1499 = vmatpush1.msra.mxu0 0.0
      %1500 = vmatprep.subr.mxu0 0.0
      %1501 = vmatpush1.msra.mxu0 0.0
      %1502 = vmatprep.subr.mxu0 0.0
      %1503 = vmatpush1.msra.mxu0 0.0
      %1504 = vmatprep.subr.mxu0 0.0
      %1505 = vmatpush1.msra.mxu0 0.0
      %1506 = vmatprep.subr.mxu0 0.0
      %1507 = vmatpush1.msra.mxu0 0.0
      %1508 = vmatprep.subr.mxu0 0.0
      %1509 = vmatpush1.msra.mxu0 0.0
      %1510 = vmatprep.subr.mxu0 0.0
      %1511 = vmatpush1.msra.mxu0 0.0
      %1512 = vmatprep.subr.mxu0 0.0
      %1513 = vmatpush1.msra.mxu0 0.0
      %1514 = vmatprep.subr.mxu0 0.0
      %1515 = vmatpush1.msra.mxu0 0.0
      %1516 = vmatprep.subr.mxu0 0.0
      %1517 = vmatpush1.msra.mxu0 0.0
      %1518 = vmatprep.subr.mxu0 0.0
      %1519 = vmatpush1.msra.mxu0 0.0
      %1520 = vmatprep.mubr.f32.mxu0 0.0
      %1521 = vmatmul.mubr.f32.gmra.mrb[0].mxu0 %v1450
      %v1522 = vpop.f32.mrb[0].mxu0
      %v1523 = vadd.f32 0.0, %v1522
      %v1524 = vpop.f32.mrb[0].mxu0
      %1525 = vmatprep.mubr.f32.mxu0 0.0
      %1526 = vmatmul.mubr.f32.gmra.mrb[0].mxu0 %v1452
      %v1527 = vpop.f32.mrb[0].mxu0
      %v1528 = vadd.f32 0.0, %v1527
      %v1529 = vpop.f32.mrb[0].mxu0
      %1530 = vdwg.mxu0
      %v1531 = vsel %vm989, %v1438, 0
      %1533 = vmatprep.subr.mxu0 0.0
      %1534 = vmatpush1.msra.mxu0 %v577
      %1535 = vmatprep.subr.mxu0 0.0
      %1536 = vmatpush1.msra.mxu0 %v578
      %1537 = vmatprep.subr.mxu0 0.0
      %1538 = vmatpush1.msra.mxu0 0.0
      %1539 = vmatprep.subr.mxu0 0.0
      %1540 = vmatpush1.msra.mxu0 0.0
      %1541 = vmatprep.subr.mxu0 0.0
      %1542 = vmatpush1.msra.mxu0 0.0
      %1543 = vmatprep.subr.mxu0 0.0
      %1544 = vmatpush1.msra.mxu0 0.0
      %1545 = vmatprep.subr.mxu0 0.0
      %1546 = vmatpush1.msra.mxu0 0.0
      %1547 = vmatprep.subr.mxu0 0.0
      %1548 = vmatpush1.msra.mxu0 0.0
      %1549 = vmatprep.subr.mxu0 0.0
      %1550 = vmatpush1.msra.mxu0 0.0
      %1551 = vmatprep.subr.mxu0 0.0
      %1552 = vmatpush1.msra.mxu0 0.0
      %1553 = vmatprep.subr.mxu0 0.0
      %1554 = vmatpush1.msra.mxu0 0.0
      %1555 = vmatprep.subr.mxu0 0.0
      %1556 = vmatpush1.msra.mxu0 0.0
      %1557 = vmatprep.subr.mxu0 0.0
      %1558 = vmatpush1.msra.mxu0 0.0
      %1559 = vmatprep.subr.mxu0 0.0
      %1560 = vmatpush1.msra.mxu0 0.0
      %1561 = vmatprep.subr.mxu0 0.0
      %1562 = vmatpush1.msra.mxu0 0.0
      %1563 = vmatprep.subr.mxu0 0.0
      %1564 = vmatpush1.msra.mxu0 0.0
      %1565 = vmatprep.subr.mxu0 0.0
      %1566 = vmatpush1.msra.mxu0 0.0
      %1567 = vmatprep.subr.mxu0 0.0
      %1568 = vmatpush1.msra.mxu0 0.0
      %1569 = vmatprep.subr.mxu0 0.0
      %1570 = vmatpush1.msra.mxu0 0.0
      %1571 = vmatprep.subr.mxu0 0.0
      %1572 = vmatpush1.msra.mxu0 0.0
      %1573 = vmatprep.subr.mxu0 0.0
      %1574 = vmatpush1.msra.mxu0 0.0
      %1575 = vmatprep.subr.mxu0 0.0
      %1576 = vmatpush1.msra.mxu0 0.0
      %1577 = vmatprep.subr.mxu0 0.0
      %1578 = vmatpush1.msra.mxu0 0.0
      %1579 = vmatprep.subr.mxu0 0.0
      %1580 = vmatpush1.msra.mxu0 0.0
      %1581 = vmatprep.subr.mxu0 0.0
      %1582 = vmatpush1.msra.mxu0 0.0
      %1583 = vmatprep.subr.mxu0 0.0
      %1584 = vmatpush1.msra.mxu0 0.0
      %1585 = vmatprep.subr.mxu0 0.0
      %1586 = vmatpush1.msra.mxu0 0.0
      %1587 = vmatprep.subr.mxu0 0.0
      %1588 = vmatpush1.msra.mxu0 0.0
      %1589 = vmatprep.subr.mxu0 0.0
      %1590 = vmatpush1.msra.mxu0 0.0
      %1591 = vmatprep.subr.mxu0 0.0
      %1592 = vmatpush1.msra.mxu0 0.0
      %1593 = vmatprep.subr.mxu0 0.0
      %1594 = vmatpush1.msra.mxu0 0.0
      %1595 = vmatprep.subr.mxu0 0.0
      %1596 = vmatpush1.msra.mxu0 0.0
      %1597 = vmatprep.mubr.f32.mxu0 0.0
      %1598 = vmatmul.mubr.f32.gmra.mrb[0].mxu0 %v1531
      %v1599 = vpop.f32.mrb[0].mxu0
      %v1600 = vadd.f32 0.0, %v1599
      %v1601 = vpop.f32.mrb[0].mxu0
      %1602 = vdwg.mxu0
      %v1604 = vrot.slane %v1600, 4
      %v1606 = vsel %vm1111, %v1269, %v1604
      %v1608 = vsel %vm688, %v1192, 0
      %v1611 = vsel %vm688, %v1197, 0
      %v1614 = vsel %vm688, %v1523, 0
      %v1617 = vsel %vm688, %v1528, 0
      %1619 = vmatprep.subr.mxu0 0.0
      %1620 = vmatpush1.msra.mxu0 %v667
      %1621 = vmatprep.subr.mxu0 0.0
      %1622 = vmatpush1.msra.mxu0 %v668
      %1623 = vmatprep.subr.mxu0 0.0
      %1624 = vmatpush1.msra.mxu0 %v669
      %1625 = vmatprep.subr.mxu0 0.0
      %1626 = vmatpush1.msra.mxu0 %v670
      %1627 = vmatprep.subr.mxu0 0.0
      %1628 = vmatpush1.msra.mxu0 0.0
      %1629 = vmatprep.subr.mxu0 0.0
      %1630 = vmatpush1.msra.mxu0 0.0
      %1631 = vmatprep.subr.mxu0 0.0
      %1632 = vmatpush1.msra.mxu0 0.0
      %1633 = vmatprep.subr.mxu0 0.0
      %1634 = vmatpush1.msra.mxu0 0.0
      %1635 = vmatprep.subr.mxu0 0.0
      %1636 = vmatpush1.msra.mxu0 0.0
      %1637 = vmatprep.subr.mxu0 0.0
      %1638 = vmatpush1.msra.mxu0 0.0
      %1639 = vmatprep.subr.mxu0 0.0
      %1640 = vmatpush1.msra.mxu0 0.0
      %1641 = vmatprep.subr.mxu0 0.0
      %1642 = vmatpush1.msra.mxu0 0.0
      %1643 = vmatprep.subr.mxu0 0.0
      %1644 = vmatpush1.msra.mxu0 0.0
      %1645 = vmatprep.subr.mxu0 0.0
      %1646 = vmatpush1.msra.mxu0 0.0
      %1647 = vmatprep.subr.mxu0 0.0
      %1648 = vmatpush1.msra.mxu0 0.0
      %1649 = vmatprep.subr.mxu0 0.0
      %1650 = vmatpush1.msra.mxu0 0.0
      %1651 = vmatprep.subr.mxu0 0.0
      %1652 = vmatpush1.msra.mxu0 0.0
      %1653 = vmatprep.subr.mxu0 0.0
      %1654 = vmatpush1.msra.mxu0 0.0
      %1655 = vmatprep.subr.mxu0 0.0
      %1656 = vmatpush1.msra.mxu0 0.0
      %1657 = vmatprep.subr.mxu0 0.0
      %1658 = vmatpush1.msra.mxu0 0.0
      %1659 = vmatprep.subr.mxu0 0.0
      %1660 = vmatpush1.msra.mxu0 0.0
      %1661 = vmatprep.subr.mxu0 0.0
      %1662 = vmatpush1.msra.mxu0 0.0
      %1663 = vmatprep.subr.mxu0 0.0
      %1664 = vmatpush1.msra.mxu0 0.0
      %1665 = vmatprep.subr.mxu0 0.0
      %1666 = vmatpush1.msra.mxu0 0.0
      %1667 = vmatprep.subr.mxu0 0.0
      %1668 = vmatpush1.msra.mxu0 0.0
      %1669 = vmatprep.subr.mxu0 0.0
      %1670 = vmatpush1.msra.mxu0 0.0
      %1671 = vmatprep.subr.mxu0 0.0
      %1672 = vmatpush1.msra.mxu0 0.0
      %1673 = vmatprep.subr.mxu0 0.0
      %1674 = vmatpush1.msra.mxu0 0.0
      %1675 = vmatprep.subr.mxu0 0.0
      %1676 = vmatpush1.msra.mxu0 0.0
      %1677 = vmatprep.subr.mxu0 0.0
      %1678 = vmatpush1.msra.mxu0 0.0
      %1679 = vmatprep.subr.mxu0 0.0
      %1680 = vmatpush1.msra.mxu0 0.0
      %1681 = vmatprep.subr.mxu0 0.0
      %1682 = vmatpush1.msra.mxu0 0.0
      %1683 = vmatprep.mubr.f32.mxu0 0.0
      %1684 = vmatmul.mubr.f32.gmra.mrb[0].mxu0 %v1608
      %v1685 = vpop.f32.mrb[0].mxu0
      %v1686 = vadd.f32 0.0, %v1685
      %v1687 = vpop.f32.mrb[0].mxu0
      %1688 = vmatprep.mubr.f32.mxu0 0.0
      %1689 = vmatmul.mubr.f32.gmra.mrb[0].mxu0 %v1611
      %v1690 = vpop.f32.mrb[0].mxu0
      %v1691 = vadd.f32 0.0, %v1690
      %v1692 = vpop.f32.mrb[0].mxu0
      %1693 = vmatprep.mubr.f32.mxu0 0.0
      %1694 = vmatmul.mubr.f32.gmra.mrb[0].mxu0 %v1614
      %v1695 = vpop.f32.mrb[0].mxu0
      %v1696 = vadd.f32 0.0, %v1695
      %v1697 = vpop.f32.mrb[0].mxu0
      %1698 = vmatprep.mubr.f32.mxu0 0.0
      %1699 = vmatmul.mubr.f32.gmra.mrb[0].mxu0 %v1617
      %v1700 = vpop.f32.mrb[0].mxu0
      %v1701 = vadd.f32 0.0, %v1700
      %v1702 = vpop.f32.mrb[0].mxu0
      %1703 = vdwg.mxu0
      %1704 = vmatprep.subr.mxu0 0.0
      %1705 = vmatpush1.msra.mxu0 %v663
      %1706 = vmatprep.subr.mxu0 0.0
      %1707 = vmatpush1.msra.mxu0 %v664
      %1708 = vmatprep.subr.mxu0 0.0
      %1709 = vmatpush1.msra.mxu0 %v665
      %1710 = vmatprep.subr.mxu0 0.0
      %1711 = vmatpush1.msra.mxu0 %v666
      %1712 = vmatprep.subr.mxu0 0.0
      %1713 = vmatpush1.msra.mxu0 0.0
      %1714 = vmatprep.subr.mxu0 0.0
      %1715 = vmatpush1.msra.mxu0 0.0
      %1716 = vmatprep.subr.mxu0 0.0
      %1717 = vmatpush1.msra.mxu0 0.0
      %1718 = vmatprep.subr.mxu0 0.0
      %1719 = vmatpush1.msra.mxu0 0.0
      %1720 = vmatprep.subr.mxu0 0.0
      %1721 = vmatpush1.msra.mxu0 0.0
      %1722 = vmatprep.subr.mxu0 0.0
      %1723 = vmatpush1.msra.mxu0 0.0
      %1724 = vmatprep.subr.mxu0 0.0
      %1725 = vmatpush1.msra.mxu0 0.0
      %1726 = vmatprep.subr.mxu0 0.0
      %1727 = vmatpush1.msra.mxu0 0.0
      %1728 = vmatprep.subr.mxu0 0.0
      %1729 = vmatpush1.msra.mxu0 0.0
      %1730 = vmatprep.subr.mxu0 0.0
      %1731 = vmatpush1.msra.mxu0 0.0
      %1732 = vmatprep.subr.mxu0 0.0
      %1733 = vmatpush1.msra.mxu0 0.0
      %1734 = vmatprep.subr.mxu0 0.0
      %1735 = vmatpush1.msra.mxu0 0.0
      %1736 = vmatprep.subr.mxu0 0.0
      %1737 = vmatpush1.msra.mxu0 0.0
      %1738 = vmatprep.subr.mxu0 0.0
      %1739 = vmatpush1.msra.mxu0 0.0
      %1740 = vmatprep.subr.mxu0 0.0
      %1741 = vmatpush1.msra.mxu0 0.0
      %1742 = vmatprep.subr.mxu0 0.0
      %1743 = vmatpush1.msra.mxu0 0.0
      %1744 = vmatprep.subr.mxu0 0.0
      %1745 = vmatpush1.msra.mxu0 0.0
      %1746 = vmatprep.subr.mxu0 0.0
      %1747 = vmatpush1.msra.mxu0 0.0
      %1748 = vmatprep.subr.mxu0 0.0
      %1749 = vmatpush1.msra.mxu0 0.0
      %1750 = vmatprep.subr.mxu0 0.0
      %1751 = vmatpush1.msra.mxu0 0.0
      %1752 = vmatprep.subr.mxu0 0.0
      %1753 = vmatpush1.msra.mxu0 0.0
      %1754 = vmatprep.subr.mxu0 0.0
      %1755 = vmatpush1.msra.mxu0 0.0
      %1756 = vmatprep.subr.mxu0 0.0
      %1757 = vmatpush1.msra.mxu0 0.0
      %1758 = vmatprep.subr.mxu0 0.0
      %1759 = vmatpush1.msra.mxu0 0.0
      %1760 = vmatprep.subr.mxu0 0.0
      %1761 = vmatpush1.msra.mxu0 0.0
      %1762 = vmatprep.subr.mxu0 0.0
      %1763 = vmatpush1.msra.mxu0 0.0
      %1764 = vmatprep.subr.mxu0 0.0
      %1765 = vmatpush1.msra.mxu0 0.0
      %1766 = vmatprep.subr.mxu0 0.0
      %1767 = vmatpush1.msra.mxu0 0.0
      %1768 = vmatprep.mubr.f32.mxu0 0.0
      %1769 = vmatmul.mubr.f32.gmra.mrb[0].mxu0 %v690
      %v1770 = vpop.f32.mrb[0].mxu0
      %v1771 = vadd.f32 %v1686, %v1770
      %v1772 = vpop.f32.mrb[0].mxu0
      %1773 = vmatprep.mubr.f32.mxu0 0.0
      %1774 = vmatmul.mubr.f32.gmra.mrb[0].mxu0 %v693
      %v1775 = vpop.f32.mrb[0].mxu0
      %v1776 = vadd.f32 %v1691, %v1775
      %v1777 = vpop.f32.mrb[0].mxu0
      %1778 = vmatprep.mubr.f32.mxu0 0.0
      %1779 = vmatmul.mubr.f32.gmra.mrb[0].mxu0 %v696
      %v1780 = vpop.f32.mrb[0].mxu0
      %v1781 = vadd.f32 %v1696, %v1780
      %v1782 = vpop.f32.mrb[0].mxu0
      %1783 = vmatprep.mubr.f32.mxu0 0.0
      %1784 = vmatmul.mubr.f32.gmra.mrb[0].mxu0 %v699
      %v1785 = vpop.f32.mrb[0].mxu0
      %v1786 = vadd.f32 %v1701, %v1785
      %v1787 = vpop.f32.mrb[0].mxu0
      %1788 = vdwg.mxu0
      %v1790 = vsel %vm688, %v1103, 0
      %v1793 = vsel %vm688, %v1104, 0
      %v1796 = vsel %vm688, %v1435, 0
      %v1799 = vsel %vm688, %v1436, 0
      %1801 = vmatprep.subr.mxu0 0.0
      %1802 = vmatpush1.msra.mxu0 %v671
      %1803 = vmatprep.subr.mxu0 0.0
      %1804 = vmatpush1.msra.mxu0 %v672
      %1805 = vmatprep.subr.mxu0 0.0
      %1806 = vmatpush1.msra.mxu0 %v673
      %1807 = vmatprep.subr.mxu0 0.0
      %1808 = vmatpush1.msra.mxu0 %v674
      %1809 = vmatprep.subr.mxu0 0.0
      %1810 = vmatpush1.msra.mxu0 0.0
      %1811 = vmatprep.subr.mxu0 0.0
      %1812 = vmatpush1.msra.mxu0 0.0
      %1813 = vmatprep.subr.mxu0 0.0
      %1814 = vmatpush1.msra.mxu0 0.0
      %1815 = vmatprep.subr.mxu0 0.0
      %1816 = vmatpush1.msra.mxu0 0.0
      %1817 = vmatprep.subr.mxu0 0.0
      %1818 = vmatpush1.msra.mxu0 0.0
      %1819 = vmatprep.subr.mxu0 0.0
      %1820 = vmatpush1.msra.mxu0 0.0
      %1821 = vmatprep.subr.mxu0 0.0
      %1822 = vmatpush1.msra.mxu0 0.0
      %1823 = vmatprep.subr.mxu0 0.0
      %1824 = vmatpush1.msra.mxu0 0.0
      %1825 = vmatprep.subr.mxu0 0.0
      %1826 = vmatpush1.msra.mxu0 0.0
      %1827 = vmatprep.subr.mxu0 0.0
      %1828 = vmatpush1.msra.mxu0 0.0
      %1829 = vmatprep.subr.mxu0 0.0
      %1830 = vmatpush1.msra.mxu0 0.0
      %1831 = vmatprep.subr.mxu0 0.0
      %1832 = vmatpush1.msra.mxu0 0.0
      %1833 = vmatprep.subr.mxu0 0.0
      %1834 = vmatpush1.msra.mxu0 0.0
      %1835 = vmatprep.subr.mxu0 0.0
      %1836 = vmatpush1.msra.mxu0 0.0
      %1837 = vmatprep.subr.mxu0 0.0
      %1838 = vmatpush1.msra.mxu0 0.0
      %1839 = vmatprep.subr.mxu0 0.0
      %1840 = vmatpush1.msra.mxu0 0.0
      %1841 = vmatprep.subr.mxu0 0.0
      %1842 = vmatpush1.msra.mxu0 0.0
      %1843 = vmatprep.subr.mxu0 0.0
      %1844 = vmatpush1.msra.mxu0 0.0
      %1845 = vmatprep.subr.mxu0 0.0
      %1846 = vmatpush1.msra.mxu0 0.0
      %1847 = vmatprep.subr.mxu0 0.0
      %1848 = vmatpush1.msra.mxu0 0.0
      %1849 = vmatprep.subr.mxu0 0.0
      %1850 = vmatpush1.msra.mxu0 0.0
      %1851 = vmatprep.subr.mxu0 0.0
      %1852 = vmatpush1.msra.mxu0 0.0
      %1853 = vmatprep.subr.mxu0 0.0
      %1854 = vmatpush1.msra.mxu0 0.0
      %1855 = vmatprep.subr.mxu0 0.0
      %1856 = vmatpush1.msra.mxu0 0.0
      %1857 = vmatprep.subr.mxu0 0.0
      %1858 = vmatpush1.msra.mxu0 0.0
      %1859 = vmatprep.subr.mxu0 0.0
      %1860 = vmatpush1.msra.mxu0 0.0
      %1861 = vmatprep.subr.mxu0 0.0
      %1862 = vmatpush1.msra.mxu0 0.0
      %1863 = vmatprep.subr.mxu0 0.0
      %1864 = vmatpush1.msra.mxu0 0.0
      %1865 = vmatprep.mubr.f32.mxu0 0.0
      %1866 = vmatmul.mubr.f32.gmra.mrb[0].mxu0 %v1790
      %v1867 = vpop.f32.mrb[0].mxu0
      %v1868 = vadd.f32 0.0, %v1867
      %v1869 = vpop.f32.mrb[0].mxu0
      %1870 = vmatprep.mubr.f32.mxu0 0.0
      %1871 = vmatmul.mubr.f32.gmra.mrb[0].mxu0 %v1793
      %v1872 = vpop.f32.mrb[0].mxu0
      %v1873 = vadd.f32 0.0, %v1872
      %v1874 = vpop.f32.mrb[0].mxu0
      %1875 = vmatprep.mubr.f32.mxu0 0.0
      %1876 = vmatmul.mubr.f32.gmra.mrb[0].mxu0 %v1796
      %v1877 = vpop.f32.mrb[0].mxu0
      %v1878 = vadd.f32 0.0, %v1877
      %v1879 = vpop.f32.mrb[0].mxu0
      %1880 = vmatprep.mubr.f32.mxu0 0.0
      %1881 = vmatmul.mubr.f32.gmra.mrb[0].mxu0 %v1799
      %v1882 = vpop.f32.mrb[0].mxu0
      %v1883 = vadd.f32 0.0, %v1882
      %v1884 = vpop.f32.mrb[0].mxu0
      %1885 = vdwg.mxu0
      %v1886 = vadd.f32 %v1771, %v1868
      %v1887 = vadd.f32 %v1776, %v1873
      %v1888 = vadd.f32 %v1781, %v1878
      %v1889 = vadd.f32 %v1786, %v1883
      %v1890 = vlaneseq
      %v1891 = vshrl.u32 %v1890, 7
      %v1892 = vsub.s32 1, %v1891
      %v1893 = vrot.slane %v679, %v1892
      %v1894 = vadd.f32 %v1886, %v1893
      %v1895 = vadd.f32 %v1887, %v1893
      %v1896 = vadd.f32 %v1888, %v1893
      %v1897 = vadd.f32 %v1889, %v1893
      %v1898 = vmax.f32 %v1894, 0.0
      %v1899 = vmax.f32 %v1895, 0.0
      %v1900 = vmax.f32 %v1896, 0.0
      %v1901 = vmax.f32 %v1897, 0.0
      %v1902 = vsel %vm688, %v658, 0
      %1904 = vmatprep.subr.mxu0 0.0
      %1905 = vmatpush1.msra.mxu0 %v680
      %1906 = vmatprep.subr.mxu0 0.0
      %1907 = vmatpush1.msra.mxu0 %v681
      %1908 = vmatprep.subr.mxu0 0.0
      %1909 = vmatpush1.msra.mxu0 %v682
      %1910 = vmatprep.subr.mxu0 0.0
      %1911 = vmatpush1.msra.mxu0 %v683
      %1912 = vmatprep.subr.mxu0 0.0
      %1913 = vmatpush1.msra.mxu0 0.0
      %1914 = vmatprep.subr.mxu0 0.0
      %1915 = vmatpush1.msra.mxu0 0.0
      %1916 = vmatprep.subr.mxu0 0.0
      %1917 = vmatpush1.msra.mxu0 0.0
      %1918 = vmatprep.subr.mxu0 0.0
      %1919 = vmatpush1.msra.mxu0 0.0
      %1920 = vmatprep.subr.mxu0 0.0
      %1921 = vmatpush1.msra.mxu0 0.0
      %1922 = vmatprep.subr.mxu0 0.0
      %1923 = vmatpush1.msra.mxu0 0.0
      %1924 = vmatprep.subr.mxu0 0.0
      %1925 = vmatpush1.msra.mxu0 0.0
      %1926 = vmatprep.subr.mxu0 0.0
      %1927 = vmatpush1.msra.mxu0 0.0
      %1928 = vmatprep.subr.mxu0 0.0
      %1929 = vmatpush1.msra.mxu0 0.0
      %1930 = vmatprep.subr.mxu0 0.0
      %1931 = vmatpush1.msra.mxu0 0.0
      %1932 = vmatprep.subr.mxu0 0.0
      %1933 = vmatpush1.msra.mxu0 0.0
      %1934 = vmatprep.subr.mxu0 0.0
      %1935 = vmatpush1.msra.mxu0 0.0
      %1936 = vmatprep.subr.mxu0 0.0
      %1937 = vmatpush1.msra.mxu0 0.0
      %1938 = vmatprep.subr.mxu0 0.0
      %1939 = vmatpush1.msra.mxu0 0.0
      %1940 = vmatprep.subr.mxu0 0.0
      %1941 = vmatpush1.msra.mxu0 0.0
      %1942 = vmatprep.subr.mxu0 0.0
      %1943 = vmatpush1.msra.mxu0 0.0
      %1944 = vmatprep.subr.mxu0 0.0
      %1945 = vmatpush1.msra.mxu0 0.0
      %1946 = vmatprep.subr.mxu0 0.0
      %1947 = vmatpush1.msra.mxu0 0.0
      %1948 = vmatprep.subr.mxu0 0.0
      %1949 = vmatpush1.msra.mxu0 0.0
      %1950 = vmatprep.subr.mxu0 0.0
      %1951 = vmatpush1.msra.mxu0 0.0
      %1952 = vmatprep.subr.mxu0 0.0
      %1953 = vmatpush1.msra.mxu0 0.0
      %1954 = vmatprep.subr.mxu0 0.0
      %1955 = vmatpush1.msra.mxu0 0.0
      %1956 = vmatprep.subr.mxu0 0.0
      %1957 = vmatpush1.msra.mxu0 0.0
      %1958 = vmatprep.subr.mxu0 0.0
      %1959 = vmatpush1.msra.mxu0 0.0
      %1960 = vmatprep.subr.mxu0 0.0
      %1961 = vmatpush1.msra.mxu0 0.0
      %1962 = vmatprep.subr.mxu0 0.0
      %1963 = vmatpush1.msra.mxu0 0.0
      %1964 = vmatprep.subr.mxu0 0.0
      %1965 = vmatpush1.msra.mxu0 0.0
      %1966 = vmatprep.subr.mxu0 0.0
      %1967 = vmatpush1.msra.mxu0 0.0
      %1968 = vmatprep.mubr.f32.mxu0 0.0
      %1969 = vmatmul.mubr.f32.gmra.mrb[0].mxu0 %v1902
      %v1970 = vpop.f32.mrb[0].mxu0
      %v1971 = vadd.f32 0.0, %v1970
      %v1972 = vpop.f32.mrb[0].mxu0
      %1973 = vdwg.mxu0
      %v1975 = vsel %vm688, %v1606, 0
      %1977 = vmatprep.subr.mxu0 0.0
      %1978 = vmatpush1.msra.mxu0 %v684
      %1979 = vmatprep.subr.mxu0 0.0
      %1980 = vmatpush1.msra.mxu0 %v685
      %1981 = vmatprep.subr.mxu0 0.0
      %1982 = vmatpush1.msra.mxu0 %v686
      %1983 = vmatprep.subr.mxu0 0.0
      %1984 = vmatpush1.msra.mxu0 %v687
      %1985 = vmatprep.subr.mxu0 0.0
      %1986 = vmatpush1.msra.mxu0 0.0
      %1987 = vmatprep.subr.mxu0 0.0
      %1988 = vmatpush1.msra.mxu0 0.0
      %1989 = vmatprep.subr.mxu0 0.0
      %1990 = vmatpush1.msra.mxu0 0.0
      %1991 = vmatprep.subr.mxu0 0.0
      %1992 = vmatpush1.msra.mxu0 0.0
      %1993 = vmatprep.subr.mxu0 0.0
      %1994 = vmatpush1.msra.mxu0 0.0
      %1995 = vmatprep.subr.mxu0 0.0
      %1996 = vmatpush1.msra.mxu0 0.0
      %1997 = vmatprep.subr.mxu0 0.0
      %1998 = vmatpush1.msra.mxu0 0.0
      %1999 = vmatprep.subr.mxu0 0.0
      %2000 = vmatpush1.msra.mxu0 0.0
      %2001 = vmatprep.subr.mxu0 0.0
      %2002 = vmatpush1.msra.mxu0 0.0
      %2003 = vmatprep.subr.mxu0 0.0
      %2004 = vmatpush1.msra.mxu0 0.0
      %2005 = vmatprep.subr.mxu0 0.0
      %2006 = vmatpush1.msra.mxu0 0.0
      %2007 = vmatprep.subr.mxu0 0.0
      %2008 = vmatpush1.msra.mxu0 0.0
      %2009 = vmatprep.subr.mxu0 0.0
      %2010 = vmatpush1.msra.mxu0 0.0
      %2011 = vmatprep.subr.mxu0 0.0
      %2012 = vmatpush1.msra.mxu0 0.0
      %2013 = vmatprep.subr.mxu0 0.0
      %2014 = vmatpush1.msra.mxu0 0.0
      %2015 = vmatprep.subr.mxu0 0.0
      %2016 = vmatpush1.msra.mxu0 0.0
      %2017 = vmatprep.subr.mxu0 0.0
      %2018 = vmatpush1.msra.mxu0 0.0
      %2019 = vmatprep.subr.mxu0 0.0
      %2020 = vmatpush1.msra.mxu0 0.0
      %2021 = vmatprep.subr.mxu0 0.0
      %2022 = vmatpush1.msra.mxu0 0.0
      %2023 = vmatprep.subr.mxu0 0.0
      %2024 = vmatpush1.msra.mxu0 0.0
      %2025 = vmatprep.subr.mxu0 0.0
      %2026 = vmatpush1.msra.mxu0 0.0
      %2027 = vmatprep.subr.mxu0 0.0
      %2028 = vmatpush1.msra.mxu0 0.0
      %2029 = vmatprep.subr.mxu0 0.0
      %2030 = vmatpush1.msra.mxu0 0.0
      %2031 = vmatprep.subr.mxu0 0.0
      %2032 = vmatpush1.msra.mxu0 0.0
      %2033 = vmatprep.subr.mxu0 0.0
      %2034 = vmatpush1.msra.mxu0 0.0
      %2035 = vmatprep.subr.mxu0 0.0
      %2036 = vmatpush1.msra.mxu0 0.0
      %2037 = vmatprep.subr.mxu0 0.0
      %2038 = vmatpush1.msra.mxu0 0.0
      %2039 = vmatprep.subr.mxu0 0.0
      %2040 = vmatpush1.msra.mxu0 0.0
      %2041 = vmatprep.mubr.f32.mxu0 0.0
      %2042 = vmatmul.mubr.f32.gmra.mrb[0].mxu0 %v1975
      %v2043 = vpop.f32.mrb[0].mxu0
      %v2044 = vadd.f32 0.0, %v2043
      %v2045 = vpop.f32.mrb[0].mxu0
      %2046 = vdwg.mxu0
      %v2047 = vadd.f32 %v1971, %v2044
      %v2048 = vxor.u32 %v2047, 2147483648
      %v2049 = vmul.f32 %v2048, 1.442695
      %v2050 = vpow.pop %v2049
      %v2051 = vadd.f32 %v2050, 1.0
      %v2052 = vrcp.pop %v2051
      %v2053 = vmul.f32 1.0, %v2052
      %2055 = vrot.lane.b32.xlu0 %v2044, 96
      %v2056 = vpop.permute.xlu0 %2055
      %v2058 = vmul.f32 %v2053, %v2056
      %2060 = vrot.lane.b32.xlu0 %v2058, 32
      %v2061 = vpop.permute.xlu0 %2060
      %v2063 = vadd.f32 %v1971, %v2061
      %v2064 = vtanh.pop %v2063
      %v2065 = vsub.f32 1.0, %v2053
      %v2066 = vmul.f32 %v2065, %v658
      %2068 = vrot.lane.b32.xlu0 %v2064, 64
      %v2069 = vpop.permute.xlu0 %2068
      %v2071 = vmul.f32 %v2053, %v2069
      %v2072 = vadd.f32 %v2066, %v2071
      %s2073 = scalar_lea.vmem %s6, 168
      %v2074 = vld [vmem:[%s2073] sm:$0xff]
      %v2075 = vld [vmem:[%s2073 + $0x8] sm:$0xff]
      %v2076 = vld [vmem:[%s2073 + $0x10] sm:$0xff]
      %v2077 = vld [vmem:[%s2073 + $0x18] sm:$0xff]
      %v2078 = vld [vmem:[%s2073 + $0x20] sm:$0xff]
      %v2079 = vld [vmem:[%s2073 + $0x28] sm:$0xff]
      %v2080 = vld [vmem:[%s2073 + $0x30] sm:$0xff]
      %v2081 = vld [vmem:[%s2073 + $0x38] sm:$0xff]
      %v2082 = vld [vmem:[%s2073 + $0x40] sm:$0xff]
      %v2083 = vld [vmem:[%s2073 + $0x48] sm:$0xff]
      %v2084 = vld [vmem:[%s2073 + $0x50] sm:$0xff]
      %v2085 = vld [vmem:[%s2073 + $0x58] sm:$0xff]
      %v2086 = vld [vmem:[%s2073 + $0x60] sm:$0xff]
      %v2087 = vld [vmem:[%s2073 + $0x68] sm:$0xff]
      %v2088 = vld [vmem:[%s2073 + $0x70] sm:$0xff]
      %v2089 = vld [vmem:[%s2073 + $0x78] sm:$0xff]
      %v2090 = vld [vmem:[%s2073 + $0x80] sm:$0xff]
      %v2091 = vld [vmem:[%s2073 + $0x88] sm:$0xff]
      %v2092 = vld [vmem:[%s2073 + $0x90] sm:$0xff]
      %v2093 = vld [vmem:[%s2073 + $0x98] sm:$0xff]
      %v2094 = vld [vmem:[%s2073 + $0xa0] sm:$0xff]
      %s2095 = scalar_lea.vmem %s7, 64
      %v2096 = vld [vmem:[%s2095] sm:$0xff]
      %v2097 = vld [vmem:[%s2095 + $0x8] sm:$0xff]
      %v2098 = vld [vmem:[%s2095 + $0x10] sm:$0xff]
      %v2099 = vld [vmem:[%s2095 + $0x18] sm:$0xff]
      %v2100 = vld [vmem:[%s2095 + $0x20] sm:$0xff]
      %v2101 = vld [vmem:[%s2095 + $0x28] sm:$0xff]
      %v2102 = vld [vmem:[%s2095 + $0x30] sm:$0xff]
      %v2103 = vld [vmem:[%s2095 + $0x38] sm:$0xff]
      %v2105 = vsel %vm688, %v1898, 0
      %v2108 = vsel %vm688, %v1899, 0
      %v2111 = vsel %vm688, %v1900, 0
      %v2114 = vsel %vm688, %v1901, 0
      %2116 = vmatprep.subr.mxu0 0.0
      %2117 = vmatpush1.msra.mxu0 %v2074
      %2118 = vmatprep.subr.mxu0 0.0
      %2119 = vmatpush1.msra.mxu0 %v2075
      %2120 = vmatprep.subr.mxu0 0.0
      %2121 = vmatpush1.msra.mxu0 %v2076
      %2122 = vmatprep.subr.mxu0 0.0
      %2123 = vmatpush1.msra.mxu0 %v2077
      %2124 = vmatprep.subr.mxu0 0.0
      %2125 = vmatpush1.msra.mxu0 0.0
      %2126 = vmatprep.subr.mxu0 0.0
      %2127 = vmatpush1.msra.mxu0 0.0
      %2128 = vmatprep.subr.mxu0 0.0
      %2129 = vmatpush1.msra.mxu0 0.0
      %2130 = vmatprep.subr.mxu0 0.0
      %2131 = vmatpush1.msra.mxu0 0.0
      %2132 = vmatprep.subr.mxu0 0.0
      %2133 = vmatpush1.msra.mxu0 0.0
      %2134 = vmatprep.subr.mxu0 0.0
      %2135 = vmatpush1.msra.mxu0 0.0
      %2136 = vmatprep.subr.mxu0 0.0
      %2137 = vmatpush1.msra.mxu0 0.0
      %2138 = vmatprep.subr.mxu0 0.0
      %2139 = vmatpush1.msra.mxu0 0.0
      %2140 = vmatprep.subr.mxu0 0.0
      %2141 = vmatpush1.msra.mxu0 0.0
      %2142 = vmatprep.subr.mxu0 0.0
      %2143 = vmatpush1.msra.mxu0 0.0
      %2144 = vmatprep.subr.mxu0 0.0
      %2145 = vmatpush1.msra.mxu0 0.0
      %2146 = vmatprep.subr.mxu0 0.0
      %2147 = vmatpush1.msra.mxu0 0.0
      %2148 = vmatprep.subr.mxu0 0.0
      %2149 = vmatpush1.msra.mxu0 0.0
      %2150 = vmatprep.subr.mxu0 0.0
      %2151 = vmatpush1.msra.mxu0 0.0
      %2152 = vmatprep.subr.mxu0 0.0
      %2153 = vmatpush1.msra.mxu0 0.0
      %2154 = vmatprep.subr.mxu0 0.0
      %2155 = vmatpush1.msra.mxu0 0.0
      %2156 = vmatprep.subr.mxu0 0.0
      %2157 = vmatpush1.msra.mxu0 0.0
      %2158 = vmatprep.subr.mxu0 0.0
      %2159 = vmatpush1.msra.mxu0 0.0
      %2160 = vmatprep.subr.mxu0 0.0
      %2161 = vmatpush1.msra.mxu0 0.0
      %2162 = vmatprep.subr.mxu0 0.0
      %2163 = vmatpush1.msra.mxu0 0.0
      %2164 = vmatprep.subr.mxu0 0.0
      %2165 = vmatpush1.msra.mxu0 0.0
      %2166 = vmatprep.subr.mxu0 0.0
      %2167 = vmatpush1.msra.mxu0 0.0
      %2168 = vmatprep.subr.mxu0 0.0
      %2169 = vmatpush1.msra.mxu0 0.0
      %2170 = vmatprep.subr.mxu0 0.0
      %2171 = vmatpush1.msra.mxu0 0.0
      %2172 = vmatprep.subr.mxu0 0.0
      %2173 = vmatpush1.msra.mxu0 0.0
      %2174 = vmatprep.subr.mxu0 0.0
      %2175 = vmatpush1.msra.mxu0 0.0
      %2176 = vmatprep.subr.mxu0 0.0
      %2177 = vmatpush1.msra.mxu0 0.0
      %2178 = vmatprep.subr.mxu0 0.0
      %2179 = vmatpush1.msra.mxu0 0.0
      %2180 = vmatprep.mubr.f32.mxu0 0.0
      %2181 = vmatmul.mubr.f32.gmra.mrb[0].mxu0 %v2105
      %v2182 = vpop.f32.mrb[0].mxu0
      %v2183 = vadd.f32 0.0, %v2182
      %v2184 = vpop.f32.mrb[0].mxu0
      %2185 = vmatprep.mubr.f32.mxu0 0.0
      %2186 = vmatmul.mubr.f32.gmra.mrb[0].mxu0 %v2108
      %v2187 = vpop.f32.mrb[0].mxu0
      %v2188 = vadd.f32 0.0, %v2187
      %v2189 = vpop.f32.mrb[0].mxu0
      %2190 = vmatprep.mubr.f32.mxu0 0.0
      %2191 = vmatmul.mubr.f32.gmra.mrb[0].mxu0 %v2111
      %v2192 = vpop.f32.mrb[0].mxu0
      %v2193 = vadd.f32 0.0, %v2192
      %v2194 = vpop.f32.mrb[0].mxu0
      %2195 = vmatprep.mubr.f32.mxu0 0.0
      %2196 = vmatmul.mubr.f32.gmra.mrb[0].mxu0 %v2114
      %v2197 = vpop.f32.mrb[0].mxu0
      %v2198 = vadd.f32 0.0, %v2197
      %v2199 = vpop.f32.mrb[0].mxu0
      %2200 = vdwg.mxu0
      %2201 = vmatprep.subr.mxu0 0.0
      %2202 = vmatpush1.msra.mxu0 %v2090
      %2203 = vmatprep.subr.mxu0 0.0
      %2204 = vmatpush1.msra.mxu0 %v2091
      %2205 = vmatprep.subr.mxu0 0.0
      %2206 = vmatpush1.msra.mxu0 %v2092
      %2207 = vmatprep.subr.mxu0 0.0
      %2208 = vmatpush1.msra.mxu0 %v2093
      %2209 = vmatprep.subr.mxu0 0.0
      %2210 = vmatpush1.msra.mxu0 0.0
      %2211 = vmatprep.subr.mxu0 0.0
      %2212 = vmatpush1.msra.mxu0 0.0
      %2213 = vmatprep.subr.mxu0 0.0
      %2214 = vmatpush1.msra.mxu0 0.0
      %2215 = vmatprep.subr.mxu0 0.0
      %2216 = vmatpush1.msra.mxu0 0.0
      %2217 = vmatprep.subr.mxu0 0.0
      %2218 = vmatpush1.msra.mxu0 0.0
      %2219 = vmatprep.subr.mxu0 0.0
      %2220 = vmatpush1.msra.mxu0 0.0
      %2221 = vmatprep.subr.mxu0 0.0
      %2222 = vmatpush1.msra.mxu0 0.0
      %2223 = vmatprep.subr.mxu0 0.0
      %2224 = vmatpush1.msra.mxu0 0.0
      %2225 = vmatprep.subr.mxu0 0.0
      %2226 = vmatpush1.msra.mxu0 0.0
      %2227 = vmatprep.subr.mxu0 0.0
      %2228 = vmatpush1.msra.mxu0 0.0
      %2229 = vmatprep.subr.mxu0 0.0
      %2230 = vmatpush1.msra.mxu0 0.0
      %2231 = vmatprep.subr.mxu0 0.0
      %2232 = vmatpush1.msra.mxu0 0.0
      %2233 = vmatprep.subr.mxu0 0.0
      %2234 = vmatpush1.msra.mxu0 0.0
      %2235 = vmatprep.subr.mxu0 0.0
      %2236 = vmatpush1.msra.mxu0 0.0
      %2237 = vmatprep.subr.mxu0 0.0
      %2238 = vmatpush1.msra.mxu0 0.0
      %2239 = vmatprep.subr.mxu0 0.0
      %2240 = vmatpush1.msra.mxu0 0.0
      %2241 = vmatprep.subr.mxu0 0.0
      %2242 = vmatpush1.msra.mxu0 0.0
      %2243 = vmatprep.subr.mxu0 0.0
      %2244 = vmatpush1.msra.mxu0 0.0
      %2245 = vmatprep.subr.mxu0 0.0
      %2246 = vmatpush1.msra.mxu0 0.0
      %2247 = vmatprep.subr.mxu0 0.0
      %2248 = vmatpush1.msra.mxu0 0.0
      %2249 = vmatprep.subr.mxu0 0.0
      %2250 = vmatpush1.msra.mxu0 0.0
      %2251 = vmatprep.subr.mxu0 0.0
      %2252 = vmatpush1.msra.mxu0 0.0
      %2253 = vmatprep.subr.mxu0 0.0
      %2254 = vmatpush1.msra.mxu0 0.0
      %2255 = vmatprep.subr.mxu0 0.0
      %2256 = vmatpush1.msra.mxu0 0.0
      %2257 = vmatprep.subr.mxu0 0.0
      %2258 = vmatpush1.msra.mxu0 0.0
      %2259 = vmatprep.subr.mxu0 0.0
      %2260 = vmatpush1.msra.mxu0 0.0
      %2261 = vmatprep.subr.mxu0 0.0
      %2262 = vmatpush1.msra.mxu0 0.0
      %2263 = vmatprep.subr.mxu0 0.0
      %2264 = vmatpush1.msra.mxu0 0.0
      %2265 = vmatprep.mubr.f32.mxu0 0.0
      %2266 = vmatmul.mubr.f32.gmra.mrb[0].mxu0 %v2105
      %v2267 = vpop.f32.mrb[0].mxu0
      %v2268 = vadd.f32 0.0, %v2267
      %v2269 = vpop.f32.mrb[0].mxu0
      %2270 = vmatprep.mubr.f32.mxu0 0.0
      %2271 = vmatmul.mubr.f32.gmra.mrb[0].mxu0 %v2108
      %v2272 = vpop.f32.mrb[0].mxu0
      %v2273 = vadd.f32 0.0, %v2272
      %v2274 = vpop.f32.mrb[0].mxu0
      %2275 = vmatprep.mubr.f32.mxu0 0.0
      %2276 = vmatmul.mubr.f32.gmra.mrb[0].mxu0 %v2111
      %v2277 = vpop.f32.mrb[0].mxu0
      %v2278 = vadd.f32 0.0, %v2277
      %v2279 = vpop.f32.mrb[0].mxu0
      %2280 = vmatprep.mubr.f32.mxu0 0.0
      %2281 = vmatmul.mubr.f32.gmra.mrb[0].mxu0 %v2114
      %v2282 = vpop.f32.mrb[0].mxu0
      %v2283 = vadd.f32 0.0, %v2282
      %v2284 = vpop.f32.mrb[0].mxu0
      %2285 = vdwg.mxu0
      %v2287 = vsel %vm688, %v2094, 0
      %2289 = vmatprep.subr.mxu0 0.0
      %2290 = vmatpush1.xpose.msra.mxu0 %v2105
      %2291 = vmatprep.subr.mxu0 0.0
      %2292 = vmatpush1.xpose.msra.mxu0 %v2108
      %2293 = vmatprep.subr.mxu0 0.0
      %2294 = vmatpush1.xpose.msra.mxu0 %v2111
      %2295 = vmatprep.subr.mxu0 0.0
      %2296 = vmatpush1.xpose.msra.mxu0 %v2114
      %2297 = vmatprep.subr.mxu0 0.0
      %2298 = vmatpush1.xpose.msra.mxu0 0.0
      %2299 = vmatprep.subr.mxu0 0.0
      %2300 = vmatpush1.xpose.msra.mxu0 0.0
      %2301 = vmatprep.subr.mxu0 0.0
      %2302 = vmatpush1.xpose.msra.mxu0 0.0
      %2303 = vmatprep.subr.mxu0 0.0
      %2304 = vmatpush1.xpose.msra.mxu0 0.0
      %2305 = vmatprep.subr.mxu0 0.0
      %2306 = vmatpush1.xpose.msra.mxu0 0.0
      %2307 = vmatprep.subr.mxu0 0.0
      %2308 = vmatpush1.xpose.msra.mxu0 0.0
      %2309 = vmatprep.subr.mxu0 0.0
      %2310 = vmatpush1.xpose.msra.mxu0 0.0
      %2311 = vmatprep.subr.mxu0 0.0
      %2312 = vmatpush1.xpose.msra.mxu0 0.0
      %2313 = vmatprep.subr.mxu0 0.0
      %2314 = vmatpush1.xpose.msra.mxu0 0.0
      %2315 = vmatprep.subr.mxu0 0.0
      %2316 = vmatpush1.xpose.msra.mxu0 0.0
      %2317 = vmatprep.subr.mxu0 0.0
      %2318 = vmatpush1.xpose.msra.mxu0 0.0
      %2319 = vmatprep.subr.mxu0 0.0
      %2320 = vmatpush1.xpose.msra.mxu0 0.0
      %2321 = vmatprep.subr.mxu0 0.0
      %2322 = vmatpush1.xpose.msra.mxu0 0.0
      %2323 = vmatprep.subr.mxu0 0.0
      %2324 = vmatpush1.xpose.msra.mxu0 0.0
      %2325 = vmatprep.subr.mxu0 0.0
      %2326 = vmatpush1.xpose.msra.mxu0 0.0
      %2327 = vmatprep.subr.mxu0 0.0
      %2328 = vmatpush1.xpose.msra.mxu0 0.0
      %2329 = vmatprep.subr.mxu0 0.0
      %2330 = vmatpush1.xpose.msra.mxu0 0.0
      %2331 = vmatprep.subr.mxu0 0.0
      %2332 = vmatpush1.xpose.msra.mxu0 0.0
      %2333 = vmatprep.subr.mxu0 0.0
      %2334 = vmatpush1.xpose.msra.mxu0 0.0
      %2335 = vmatprep.subr.mxu0 0.0
      %2336 = vmatpush1.xpose.msra.mxu0 0.0
      %2337 = vmatprep.subr.mxu0 0.0
      %2338 = vmatpush1.xpose.msra.mxu0 0.0
      %2339 = vmatprep.subr.mxu0 0.0
      %2340 = vmatpush1.xpose.msra.mxu0 0.0
      %2341 = vmatprep.subr.mxu0 0.0
      %2342 = vmatpush1.xpose.msra.mxu0 0.0
      %2343 = vmatprep.subr.mxu0 0.0
      %2344 = vmatpush1.xpose.msra.mxu0 0.0
      %2345 = vmatprep.subr.mxu0 0.0
      %2346 = vmatpush1.xpose.msra.mxu0 0.0
      %2347 = vmatprep.subr.mxu0 0.0
      %2348 = vmatpush1.xpose.msra.mxu0 0.0
      %2349 = vmatprep.subr.mxu0 0.0
      %2350 = vmatpush1.xpose.msra.mxu0 0.0
      %2351 = vmatprep.subr.mxu0 0.0
      %2352 = vmatpush1.xpose.msra.mxu0 0.0
      %2353 = vmatprep.mubr.f32.mxu0 0.0
      %2354 = vmatmul.mubr.f32.gmra.mrb[0].mxu0 %v2287
      %v2355 = vpop.f32.mrb[0].mxu0
      %v2356 = vadd.f32 0.0, %v2355
      %v2357 = vpop.f32.mrb[0].mxu0
      %2358 = vdwg.mxu0
      %2360 = vset.pattern.permute.xlu0 0
      %2361 = vperm.xlu0 %2360, %v2268
      %v2362 = vpop.permute.xlu0 %2361
      %2365 = vset.pattern.permute.xlu0 0
      %2366 = vperm.xlu0 %2365, %v2273
      %v2367 = vpop.permute.xlu0 %2366
      %v2369 = vlaneseq
      %v2370 = vshrl.u32 %v2369, 7
      %v2371 = vsub.s32 0, %v2370
      %v2372 = vrot.slane %v2356, %v2371
      %v2373 = vadd.f32 %v2362, %v2372
      %v2374 = vadd.f32 %v2367, %v2372
      %v2375 = vrot.slane %v2094, 2
      %s2376 = vtos %v2375
      %v2377 = vstv %s2376
      %2379 = vrot.lane.b32.xlu0 %v2375, 127
      %v2380 = vpop.permute.xlu0 %2379
      %s2381 = vtos %v2380
      %v2382 = vstv %s2381
      %v2384 = vsel %vm964, %v2377, %v2382
      %v2385 = vsel %vm965, %v2377, %v2382
      %v2386 = vadd.f32 %v2373, %v2384
      %v2387 = vadd.f32 %v2374, %v2385
      %vm2388 = vcmp.gt.f32.partialorder %v2386, 0.0
      %vm2389 = vcmp.gt.f32.partialorder %v2387, 0.0
      %v2390 = vmul.f32 %v2386, 0.1
      %v2391 = vmul.f32 %v2387, 0.1
      %v2392 = vsel %vm2388, %v2386, %v2390
      %v2393 = vsel %vm2389, %v2387, %v2391
      %v2394 = vsel %vm985, %v2392, -9e+15
      %v2395 = vsel %vm986, %v2393, -9e+15
      %v2396 = vsel %vm989, %v2394, -inf
      %2397 = vmax.xlane.f32.xlu0 %v2396
      %v2398 = vpop.xlane.xlu0 %2397
      %v2399 = vsel %vm989, %v2395, -inf
      %2400 = vmax.xlane.f32.xlu0 %v2399
      %v2401 = vpop.xlane.xlu0 %2400
      %v2402 = vsub.f32 %v2394, %v2398
      %v2403 = vsub.f32 %v2395, %v2401
      %v2404 = vmul.f32 %v2402, 1.442695
      %v2405 = vpow.pop %v2404
      %v2406 = vmul.f32 %v2403, 1.442695
      %v2407 = vpow.pop %v2406
      %v2408 = vsel %vm989, %v2405, 0.0
      %2409 = vadd.xlane.f32.xlu0 %v2408
      %v2410 = vpop.xlane.xlu0 %2409
      %v2411 = vsel %vm989, %v2407, 0.0
      %2412 = vadd.xlane.f32.xlu0 %v2411
      %v2413 = vpop.xlane.xlu0 %2412
      %v2414 = vrcp.pop %v2410
      %v2415 = vrcp.pop %v2413
      %v2416 = vmul.f32 %v2405, %v2414
      %v2417 = vmul.f32 %v2407, %v2415
      %v2419 = vsel %vm989, %v2416, 0
      %v2422 = vsel %vm989, %v2417, 0
      %2424 = vmatprep.subr.mxu0 0.0
      %2425 = vmatpush1.msra.mxu0 %v2183
      %2426 = vmatprep.subr.mxu0 0.0
      %2427 = vmatpush1.msra.mxu0 %v2188
      %2428 = vmatprep.subr.mxu0 0.0
      %2429 = vmatpush1.msra.mxu0 0.0
      %2430 = vmatprep.subr.mxu0 0.0
      %2431 = vmatpush1.msra.mxu0 0.0
      %2432 = vmatprep.subr.mxu0 0.0
      %2433 = vmatpush1.msra.mxu0 0.0
      %2434 = vmatprep.subr.mxu0 0.0
      %2435 = vmatpush1.msra.mxu0 0.0
      %2436 = vmatprep.subr.mxu0 0.0
      %2437 = vmatpush1.msra.mxu0 0.0
      %2438 = vmatprep.subr.mxu0 0.0
      %2439 = vmatpush1.msra.mxu0 0.0
      %2440 = vmatprep.subr.mxu0 0.0
      %2441 = vmatpush1.msra.mxu0 0.0
      %2442 = vmatprep.subr.mxu0 0.0
      %2443 = vmatpush1.msra.mxu0 0.0
      %2444 = vmatprep.subr.mxu0 0.0
      %2445 = vmatpush1.msra.mxu0 0.0
      %2446 = vmatprep.subr.mxu0 0.0
      %2447 = vmatpush1.msra.mxu0 0.0
      %2448 = vmatprep.subr.mxu0 0.0
      %2449 = vmatpush1.msra.mxu0 0.0
      %2450 = vmatprep.subr.mxu0 0.0
      %2451 = vmatpush1.msra.mxu0 0.0
      %2452 = vmatprep.subr.mxu0 0.0
      %2453 = vmatpush1.msra.mxu0 0.0
      %2454 = vmatprep.subr.mxu0 0.0
      %2455 = vmatpush1.msra.mxu0 0.0
      %2456 = vmatprep.subr.mxu0 0.0
      %2457 = vmatpush1.msra.mxu0 0.0
      %2458 = vmatprep.subr.mxu0 0.0
      %2459 = vmatpush1.msra.mxu0 0.0
      %2460 = vmatprep.subr.mxu0 0.0
      %2461 = vmatpush1.msra.mxu0 0.0
      %2462 = vmatprep.subr.mxu0 0.0
      %2463 = vmatpush1.msra.mxu0 0.0
      %2464 = vmatprep.subr.mxu0 0.0
      %2465 = vmatpush1.msra.mxu0 0.0
      %2466 = vmatprep.subr.mxu0 0.0
      %2467 = vmatpush1.msra.mxu0 0.0
      %2468 = vmatprep.subr.mxu0 0.0
      %2469 = vmatpush1.msra.mxu0 0.0
      %2470 = vmatprep.subr.mxu0 0.0
      %2471 = vmatpush1.msra.mxu0 0.0
      %2472 = vmatprep.subr.mxu0 0.0
      %2473 = vmatpush1.msra.mxu0 0.0
      %2474 = vmatprep.subr.mxu0 0.0
      %2475 = vmatpush1.msra.mxu0 0.0
      %2476 = vmatprep.subr.mxu0 0.0
      %2477 = vmatpush1.msra.mxu0 0.0
      %2478 = vmatprep.subr.mxu0 0.0
      %2479 = vmatpush1.msra.mxu0 0.0
      %2480 = vmatprep.subr.mxu0 0.0
      %2481 = vmatpush1.msra.mxu0 0.0
      %2482 = vmatprep.subr.mxu0 0.0
      %2483 = vmatpush1.msra.mxu0 0.0
      %2484 = vmatprep.subr.mxu0 0.0
      %2485 = vmatpush1.msra.mxu0 0.0
      %2486 = vmatprep.subr.mxu0 0.0
      %2487 = vmatpush1.msra.mxu0 0.0
      %2488 = vmatprep.mubr.f32.mxu0 0.0
      %2489 = vmatmul.mubr.f32.gmra.mrb[0].mxu0 %v2419
      %v2490 = vpop.f32.mrb[0].mxu0
      %v2491 = vadd.f32 0.0, %v2490
      %v2492 = vpop.f32.mrb[0].mxu0
      %2493 = vmatprep.mubr.f32.mxu0 0.0
      %2494 = vmatmul.mubr.f32.gmra.mrb[0].mxu0 %v2422
      %v2495 = vpop.f32.mrb[0].mxu0
      %v2496 = vadd.f32 0.0, %v2495
      %v2497 = vpop.f32.mrb[0].mxu0
      %2498 = vdwg.mxu0
      %vm2499 = vcmp.gt.f32.partialorder %v2491, 0.0
      %vm2500 = vcmp.gt.f32.partialorder %v2496, 0.0
      %v2501 = vmin.f32 %v2491, 0.0
      %v2502 = vmin.f32 %v2496, 0.0
      %v2503 = vmul.f32 %v2501, 1.442695
      %v2504 = vpow.pop %v2503
      %v2505 = vmul.f32 %v2502, 1.442695
      %v2506 = vpow.pop %v2505
      %v2507 = vsub.f32 %v2504, 1.0
      %v2508 = vsub.f32 %v2506, 1.0
      %v2509 = vsel %vm2499, %v2491, %v2507
      %v2510 = vsel %vm2500, %v2496, %v2508
      %v2512 = vsel %vm1111, %v2072, 0
      %2514 = vmatprep.subr.mxu0 0.0
      %2515 = vmatpush1.msra.mxu0 %v2512
      %2516 = vmatprep.subr.mxu0 0.0
      %2517 = vmatpush1.msra.mxu0 0.0
      %2518 = vmatprep.subr.mxu0 0.0
      %2519 = vmatpush1.msra.mxu0 0.0
      %2520 = vmatprep.subr.mxu0 0.0
      %2521 = vmatpush1.msra.mxu0 0.0
      %2522 = vmatprep.subr.mxu0 0.0
      %2523 = vmatpush1.msra.mxu0 0.0
      %2524 = vmatprep.subr.mxu0 0.0
      %2525 = vmatpush1.msra.mxu0 0.0
      %2526 = vmatprep.subr.mxu0 0.0
      %2527 = vmatpush1.msra.mxu0 0.0
      %2528 = vmatprep.subr.mxu0 0.0
      %2529 = vmatpush1.msra.mxu0 0.0
      %2530 = vmatprep.subr.mxu0 0.0
      %2531 = vmatpush1.msra.mxu0 0.0
      %2532 = vmatprep.subr.mxu0 0.0
      %2533 = vmatpush1.msra.mxu0 0.0
      %2534 = vmatprep.subr.mxu0 0.0
      %2535 = vmatpush1.msra.mxu0 0.0
      %2536 = vmatprep.subr.mxu0 0.0
      %2537 = vmatpush1.msra.mxu0 0.0
      %2538 = vmatprep.subr.mxu0 0.0
      %2539 = vmatpush1.msra.mxu0 0.0
      %2540 = vmatprep.subr.mxu0 0.0
      %2541 = vmatpush1.msra.mxu0 0.0
      %2542 = vmatprep.subr.mxu0 0.0
      %2543 = vmatpush1.msra.mxu0 0.0
      %2544 = vmatprep.subr.mxu0 0.0
      %2545 = vmatpush1.msra.mxu0 0.0
      %2546 = vmatprep.subr.mxu0 0.0
      %2547 = vmatpush1.msra.mxu0 0.0
      %2548 = vmatprep.subr.mxu0 0.0
      %2549 = vmatpush1.msra.mxu0 0.0
      %2550 = vmatprep.subr.mxu0 0.0
      %2551 = vmatpush1.msra.mxu0 0.0
      %2552 = vmatprep.subr.mxu0 0.0
      %2553 = vmatpush1.msra.mxu0 0.0
      %2554 = vmatprep.subr.mxu0 0.0
      %2555 = vmatpush1.msra.mxu0 0.0
      %2556 = vmatprep.subr.mxu0 0.0
      %2557 = vmatpush1.msra.mxu0 0.0
      %2558 = vmatprep.subr.mxu0 0.0
      %2559 = vmatpush1.msra.mxu0 0.0
      %2560 = vmatprep.subr.mxu0 0.0
      %2561 = vmatpush1.msra.mxu0 0.0
      %2562 = vmatprep.subr.mxu0 0.0
      %2563 = vmatpush1.msra.mxu0 0.0
      %2564 = vmatprep.subr.mxu0 0.0
      %2565 = vmatpush1.msra.mxu0 0.0
      %2566 = vmatprep.subr.mxu0 0.0
      %2567 = vmatpush1.msra.mxu0 0.0
      %2568 = vmatprep.subr.mxu0 0.0
      %2569 = vmatpush1.msra.mxu0 0.0
      %2570 = vmatprep.subr.mxu0 0.0
      %2571 = vmatpush1.msra.mxu0 0.0
      %2572 = vmatprep.subr.mxu0 0.0
      %2573 = vmatpush1.msra.mxu0 0.0
      %2574 = vmatprep.subr.mxu0 0.0
      %2575 = vmatpush1.msra.mxu0 0.0
      %2576 = vmatprep.subr.mxu0 0.0
      %2577 = vmatpush1.msra.mxu0 0.0
      %2578 = vmatprep.mubr.f32.mxu0 0.0
      %2579 = vmatmul.mubr.f32.gmra.mrb[0].mxu0 %v1118
      %v2580 = vpop.f32.mrb[0].mxu0
      %v2581 = vadd.f32 0.0, %v2580
      %v2582 = vpop.f32.mrb[0].mxu0
      %2583 = vmatprep.mubr.f32.mxu0 0.0
      %2584 = vmatmul.mubr.f32.gmra.mrb[0].mxu0 %v1120
      %v2585 = vpop.f32.mrb[0].mxu0
      %v2586 = vadd.f32 0.0, %v2585
      %v2587 = vpop.f32.mrb[0].mxu0
      %2588 = vdwg.mxu0
      %2589 = vmatprep.subr.mxu0 0.0
      %2590 = vmatpush1.msra.mxu0 %v1898
      %2591 = vmatprep.subr.mxu0 0.0
      %2592 = vmatpush1.msra.mxu0 %v1899
      %2593 = vmatprep.subr.mxu0 0.0
      %2594 = vmatpush1.msra.mxu0 0.0
      %2595 = vmatprep.subr.mxu0 0.0
      %2596 = vmatpush1.msra.mxu0 0.0
      %2597 = vmatprep.subr.mxu0 0.0
      %2598 = vmatpush1.msra.mxu0 0.0
      %2599 = vmatprep.subr.mxu0 0.0
      %2600 = vmatpush1.msra.mxu0 0.0
      %2601 = vmatprep.subr.mxu0 0.0
      %2602 = vmatpush1.msra.mxu0 0.0
      %2603 = vmatprep.subr.mxu0 0.0
      %2604 = vmatpush1.msra.mxu0 0.0
      %2605 = vmatprep.subr.mxu0 0.0
      %2606 = vmatpush1.msra.mxu0 0.0
      %2607 = vmatprep.subr.mxu0 0.0
      %2608 = vmatpush1.msra.mxu0 0.0
      %2609 = vmatprep.subr.mxu0 0.0
      %2610 = vmatpush1.msra.mxu0 0.0
      %2611 = vmatprep.subr.mxu0 0.0
      %2612 = vmatpush1.msra.mxu0 0.0
      %2613 = vmatprep.subr.mxu0 0.0
      %2614 = vmatpush1.msra.mxu0 0.0
      %2615 = vmatprep.subr.mxu0 0.0
      %2616 = vmatpush1.msra.mxu0 0.0
      %2617 = vmatprep.subr.mxu0 0.0
      %2618 = vmatpush1.msra.mxu0 0.0
      %2619 = vmatprep.subr.mxu0 0.0
      %2620 = vmatpush1.msra.mxu0 0.0
      %2621 = vmatprep.subr.mxu0 0.0
      %2622 = vmatpush1.msra.mxu0 0.0
      %2623 = vmatprep.subr.mxu0 0.0
      %2624 = vmatpush1.msra.mxu0 0.0
      %2625 = vmatprep.subr.mxu0 0.0
      %2626 = vmatpush1.msra.mxu0 0.0
      %2627 = vmatprep.subr.mxu0 0.0
      %2628 = vmatpush1.msra.mxu0 0.0
      %2629 = vmatprep.subr.mxu0 0.0
      %2630 = vmatpush1.msra.mxu0 0.0
      %2631 = vmatprep.subr.mxu0 0.0
      %2632 = vmatpush1.msra.mxu0 0.0
      %2633 = vmatprep.subr.mxu0 0.0
      %2634 = vmatpush1.msra.mxu0 0.0
      %2635 = vmatprep.subr.mxu0 0.0
      %2636 = vmatpush1.msra.mxu0 0.0
      %2637 = vmatprep.subr.mxu0 0.0
      %2638 = vmatpush1.msra.mxu0 0.0
      %2639 = vmatprep.subr.mxu0 0.0
      %2640 = vmatpush1.msra.mxu0 0.0
      %2641 = vmatprep.subr.mxu0 0.0
      %2642 = vmatpush1.msra.mxu0 0.0
      %2643 = vmatprep.subr.mxu0 0.0
      %2644 = vmatpush1.msra.mxu0 0.0
      %2645 = vmatprep.subr.mxu0 0.0
      %2646 = vmatpush1.msra.mxu0 0.0
      %2647 = vmatprep.subr.mxu0 0.0
      %2648 = vmatpush1.msra.mxu0 0.0
      %2649 = vmatprep.subr.mxu0 0.0
      %2650 = vmatpush1.msra.mxu0 0.0
      %2651 = vmatprep.subr.mxu0 0.0
      %2652 = vmatpush1.msra.mxu0 0.0
      %2653 = vmatprep.mubr.f32.mxu0 0.0
      %2654 = vmatmul.mubr.f32.gmra.mrb[0].mxu0 %v1200
      %v2655 = vpop.f32.mrb[0].mxu0
      %v2656 = vadd.f32 0.0, %v2655
      %v2657 = vpop.f32.mrb[0].mxu0
      %2658 = vdwg.mxu0
      %2660 = vset.pattern.permute.xlu0 0
      %2661 = vperm.xlu0 %2660, %v2278
      %v2662 = vpop.permute.xlu0 %2661
      %2665 = vset.pattern.permute.xlu0 0
      %2666 = vperm.xlu0 %2665, %v2283
      %v2667 = vpop.permute.xlu0 %2666
      %v2669 = vadd.f32 %v2662, %v2372
      %v2670 = vadd.f32 %v2667, %v2372
      %v2671 = vsel %vm1290, %v2377, %v2382
      %v2672 = vsel %vm1291, %v2377, %v2382
      %2675 = vrot.lane.b32.xlu0 %v2671, 16
      %v2676 = vpop.permute.xlu0 %2675
      %2677 = vrot.lane.b32.xlu0 %v2672, 16
      %v2678 = vpop.permute.xlu0 %2677
      %v2681 = vadd.f32 %v2669, %v2676
      %v2682 = vadd.f32 %v2670, %v2678
      %vm2683 = vcmp.gt.f32.partialorder %v2681, 0.0
      %vm2684 = vcmp.gt.f32.partialorder %v2682, 0.0
      %v2685 = vmul.f32 %v2681, 0.1
      %v2686 = vmul.f32 %v2682, 0.1
      %v2687 = vsel %vm2683, %v2681, %v2685
      %v2688 = vsel %vm2684, %v2682, %v2686
      %2691 = vrot.lane.b32.xlu0 %v2687, 112
      %v2692 = vpop.permute.xlu0 %2691
      %2693 = vrot.lane.b32.xlu0 %v2688, 112
      %v2694 = vpop.permute.xlu0 %2693
      %v2697 = vsel %vm1310, %v2692, -9e+15
      %v2698 = vsel %vm1311, %v2694, -9e+15
      %v2699 = vsel %vm989, %v2697, -inf
      %2700 = vmax.xlane.f32.xlu0 %v2699
      %v2701 = vpop.xlane.xlu0 %2700
      %v2702 = vsel %vm989, %v2698, -inf
      %2703 = vmax.xlane.f32.xlu0 %v2702
      %v2704 = vpop.xlane.xlu0 %2703
      %v2705 = vsub.f32 %v2697, %v2701
      %v2706 = vsub.f32 %v2698, %v2704
      %v2707 = vmul.f32 %v2705, 1.442695
      %v2708 = vpow.pop %v2707
      %v2709 = vmul.f32 %v2706, 1.442695
      %v2710 = vpow.pop %v2709
      %v2711 = vsel %vm989, %v2708, 0.0
      %2712 = vadd.xlane.f32.xlu0 %v2711
      %v2713 = vpop.xlane.xlu0 %2712
      %v2714 = vsel %vm989, %v2710, 0.0
      %2715 = vadd.xlane.f32.xlu0 %v2714
      %v2716 = vpop.xlane.xlu0 %2715
      %v2717 = vrcp.pop %v2713
      %v2718 = vrcp.pop %v2716
      %v2719 = vmul.f32 %v2708, %v2717
      %v2720 = vmul.f32 %v2710, %v2718
      %v2722 = vsel %vm989, %v2719, 0
      %v2725 = vsel %vm989, %v2720, 0
      %2727 = vmatprep.subr.mxu0 0.0
      %2728 = vmatpush1.msra.mxu0 %v2193
      %2729 = vmatprep.subr.mxu0 0.0
      %2730 = vmatpush1.msra.mxu0 %v2198
      %2731 = vmatprep.subr.mxu0 0.0
      %2732 = vmatpush1.msra.mxu0 0.0
      %2733 = vmatprep.subr.mxu0 0.0
      %2734 = vmatpush1.msra.mxu0 0.0
      %2735 = vmatprep.subr.mxu0 0.0
      %2736 = vmatpush1.msra.mxu0 0.0
      %2737 = vmatprep.subr.mxu0 0.0
      %2738 = vmatpush1.msra.mxu0 0.0
      %2739 = vmatprep.subr.mxu0 0.0
      %2740 = vmatpush1.msra.mxu0 0.0
      %2741 = vmatprep.subr.mxu0 0.0
      %2742 = vmatpush1.msra.mxu0 0.0
      %2743 = vmatprep.subr.mxu0 0.0
      %2744 = vmatpush1.msra.mxu0 0.0
      %2745 = vmatprep.subr.mxu0 0.0
      %2746 = vmatpush1.msra.mxu0 0.0
      %2747 = vmatprep.subr.mxu0 0.0
      %2748 = vmatpush1.msra.mxu0 0.0
      %2749 = vmatprep.subr.mxu0 0.0
      %2750 = vmatpush1.msra.mxu0 0.0
      %2751 = vmatprep.subr.mxu0 0.0
      %2752 = vmatpush1.msra.mxu0 0.0
      %2753 = vmatprep.subr.mxu0 0.0
      %2754 = vmatpush1.msra.mxu0 0.0
      %2755 = vmatprep.subr.mxu0 0.0
      %2756 = vmatpush1.msra.mxu0 0.0
      %2757 = vmatprep.subr.mxu0 0.0
      %2758 = vmatpush1.msra.mxu0 0.0
      %2759 = vmatprep.subr.mxu0 0.0
      %2760 = vmatpush1.msra.mxu0 0.0
      %2761 = vmatprep.subr.mxu0 0.0
      %2762 = vmatpush1.msra.mxu0 0.0
      %2763 = vmatprep.subr.mxu0 0.0
      %2764 = vmatpush1.msra.mxu0 0.0
      %2765 = vmatprep.subr.mxu0 0.0
      %2766 = vmatpush1.msra.mxu0 0.0
      %2767 = vmatprep.subr.mxu0 0.0
      %2768 = vmatpush1.msra.mxu0 0.0
      %2769 = vmatprep.subr.mxu0 0.0
      %2770 = vmatpush1.msra.mxu0 0.0
      %2771 = vmatprep.subr.mxu0 0.0
      %2772 = vmatpush1.msra.mxu0 0.0
      %2773 = vmatprep.subr.mxu0 0.0
      %2774 = vmatpush1.msra.mxu0 0.0
      %2775 = vmatprep.subr.mxu0 0.0
      %2776 = vmatpush1.msra.mxu0 0.0
      %2777 = vmatprep.subr.mxu0 0.0
      %2778 = vmatpush1.msra.mxu0 0.0
      %2779 = vmatprep.subr.mxu0 0.0
      %2780 = vmatpush1.msra.mxu0 0.0
      %2781 = vmatprep.subr.mxu0 0.0
      %2782 = vmatpush1.msra.mxu0 0.0
      %2783 = vmatprep.subr.mxu0 0.0
      %2784 = vmatpush1.msra.mxu0 0.0
      %2785 = vmatprep.subr.mxu0 0.0
      %2786 = vmatpush1.msra.mxu0 0.0
      %2787 = vmatprep.subr.mxu0 0.0
      %2788 = vmatpush1.msra.mxu0 0.0
      %2789 = vmatprep.subr.mxu0 0.0
      %2790 = vmatpush1.msra.mxu0 0.0
      %2791 = vmatprep.mubr.f32.mxu0 0.0
      %2792 = vmatmul.mubr.f32.gmra.mrb[0].mxu0 %v2722
      %v2793 = vpop.f32.mrb[0].mxu0
      %v2794 = vadd.f32 0.0, %v2793
      %v2795 = vpop.f32.mrb[0].mxu0
      %2796 = vmatprep.mubr.f32.mxu0 0.0
      %2797 = vmatmul.mubr.f32.gmra.mrb[0].mxu0 %v2725
      %v2798 = vpop.f32.mrb[0].mxu0
      %v2799 = vadd.f32 0.0, %v2798
      %v2800 = vpop.f32.mrb[0].mxu0
      %2801 = vdwg.mxu0
      %vm2802 = vcmp.gt.f32.partialorder %v2794, 0.0
      %vm2803 = vcmp.gt.f32.partialorder %v2799, 0.0
      %v2804 = vmin.f32 %v2794, 0.0
      %v2805 = vmin.f32 %v2799, 0.0
      %v2806 = vmul.f32 %v2804, 1.442695
      %v2807 = vpow.pop %v2806
      %v2808 = vmul.f32 %v2805, 1.442695
      %v2809 = vpow.pop %v2808
      %v2810 = vsub.f32 %v2807, 1.0
      %v2811 = vsub.f32 %v2809, 1.0
      %v2812 = vsel %vm2802, %v2794, %v2810
      %v2813 = vsel %vm2803, %v2799, %v2811
      %v2814 = vrot.slane %v2072, 4
      %v2815 = vsel %vm1111, %v2814, 0
      %2817 = vmatprep.subr.mxu0 0.0
      %2818 = vmatpush1.msra.mxu0 %v2815
      %2819 = vmatprep.subr.mxu0 0.0
      %2820 = vmatpush1.msra.mxu0 0.0
      %2821 = vmatprep.subr.mxu0 0.0
      %2822 = vmatpush1.msra.mxu0 0.0
      %2823 = vmatprep.subr.mxu0 0.0
      %2824 = vmatpush1.msra.mxu0 0.0
      %2825 = vmatprep.subr.mxu0 0.0
      %2826 = vmatpush1.msra.mxu0 0.0
      %2827 = vmatprep.subr.mxu0 0.0
      %2828 = vmatpush1.msra.mxu0 0.0
      %2829 = vmatprep.subr.mxu0 0.0
      %2830 = vmatpush1.msra.mxu0 0.0
      %2831 = vmatprep.subr.mxu0 0.0
      %2832 = vmatpush1.msra.mxu0 0.0
      %2833 = vmatprep.subr.mxu0 0.0
      %2834 = vmatpush1.msra.mxu0 0.0
      %2835 = vmatprep.subr.mxu0 0.0
      %2836 = vmatpush1.msra.mxu0 0.0
      %2837 = vmatprep.subr.mxu0 0.0
      %2838 = vmatpush1.msra.mxu0 0.0
      %2839 = vmatprep.subr.mxu0 0.0
      %2840 = vmatpush1.msra.mxu0 0.0
      %2841 = vmatprep.subr.mxu0 0.0
      %2842 = vmatpush1.msra.mxu0 0.0
      %2843 = vmatprep.subr.mxu0 0.0
      %2844 = vmatpush1.msra.mxu0 0.0
      %2845 = vmatprep.subr.mxu0 0.0
      %2846 = vmatpush1.msra.mxu0 0.0
      %2847 = vmatprep.subr.mxu0 0.0
      %2848 = vmatpush1.msra.mxu0 0.0
      %2849 = vmatprep.subr.mxu0 0.0
      %2850 = vmatpush1.msra.mxu0 0.0
      %2851 = vmatprep.subr.mxu0 0.0
      %2852 = vmatpush1.msra.mxu0 0.0
      %2853 = vmatprep.subr.mxu0 0.0
      %2854 = vmatpush1.msra.mxu0 0.0
      %2855 = vmatprep.subr.mxu0 0.0
      %2856 = vmatpush1.msra.mxu0 0.0
      %2857 = vmatprep.subr.mxu0 0.0
      %2858 = vmatpush1.msra.mxu0 0.0
      %2859 = vmatprep.subr.mxu0 0.0
      %2860 = vmatpush1.msra.mxu0 0.0
      %2861 = vmatprep.subr.mxu0 0.0
      %2862 = vmatpush1.msra.mxu0 0.0
      %2863 = vmatprep.subr.mxu0 0.0
      %2864 = vmatpush1.msra.mxu0 0.0
      %2865 = vmatprep.subr.mxu0 0.0
      %2866 = vmatpush1.msra.mxu0 0.0
      %2867 = vmatprep.subr.mxu0 0.0
      %2868 = vmatpush1.msra.mxu0 0.0
      %2869 = vmatprep.subr.mxu0 0.0
      %2870 = vmatpush1.msra.mxu0 0.0
      %2871 = vmatprep.subr.mxu0 0.0
      %2872 = vmatpush1.msra.mxu0 0.0
      %2873 = vmatprep.subr.mxu0 0.0
      %2874 = vmatpush1.msra.mxu0 0.0
      %2875 = vmatprep.subr.mxu0 0.0
      %2876 = vmatpush1.msra.mxu0 0.0
      %2877 = vmatprep.subr.mxu0 0.0
      %2878 = vmatpush1.msra.mxu0 0.0
      %2879 = vmatprep.subr.mxu0 0.0
      %2880 = vmatpush1.msra.mxu0 0.0
      %2881 = vmatprep.mubr.f32.mxu0 0.0
      %2882 = vmatmul.mubr.f32.gmra.mrb[0].mxu0 %v1450
      %v2883 = vpop.f32.mrb[0].mxu0
      %v2884 = vadd.f32 0.0, %v2883
      %v2885 = vpop.f32.mrb[0].mxu0
      %2886 = vmatprep.mubr.f32.mxu0 0.0
      %2887 = vmatmul.mubr.f32.gmra.mrb[0].mxu0 %v1452
      %v2888 = vpop.f32.mrb[0].mxu0
      %v2889 = vadd.f32 0.0, %v2888
      %v2890 = vpop.f32.mrb[0].mxu0
      %2891 = vdwg.mxu0
      %2892 = vmatprep.subr.mxu0 0.0
      %2893 = vmatpush1.msra.mxu0 %v1900
      %2894 = vmatprep.subr.mxu0 0.0
      %2895 = vmatpush1.msra.mxu0 %v1901
      %2896 = vmatprep.subr.mxu0 0.0
      %2897 = vmatpush1.msra.mxu0 0.0
      %2898 = vmatprep.subr.mxu0 0.0
      %2899 = vmatpush1.msra.mxu0 0.0
      %2900 = vmatprep.subr.mxu0 0.0
      %2901 = vmatpush1.msra.mxu0 0.0
      %2902 = vmatprep.subr.mxu0 0.0
      %2903 = vmatpush1.msra.mxu0 0.0
      %2904 = vmatprep.subr.mxu0 0.0
      %2905 = vmatpush1.msra.mxu0 0.0
      %2906 = vmatprep.subr.mxu0 0.0
      %2907 = vmatpush1.msra.mxu0 0.0
      %2908 = vmatprep.subr.mxu0 0.0
      %2909 = vmatpush1.msra.mxu0 0.0
      %2910 = vmatprep.subr.mxu0 0.0
      %2911 = vmatpush1.msra.mxu0 0.0
      %2912 = vmatprep.subr.mxu0 0.0
      %2913 = vmatpush1.msra.mxu0 0.0
      %2914 = vmatprep.subr.mxu0 0.0
      %2915 = vmatpush1.msra.mxu0 0.0
      %2916 = vmatprep.subr.mxu0 0.0
      %2917 = vmatpush1.msra.mxu0 0.0
      %2918 = vmatprep.subr.mxu0 0.0
      %2919 = vmatpush1.msra.mxu0 0.0
      %2920 = vmatprep.subr.mxu0 0.0
      %2921 = vmatpush1.msra.mxu0 0.0
      %2922 = vmatprep.subr.mxu0 0.0
      %2923 = vmatpush1.msra.mxu0 0.0
      %2924 = vmatprep.subr.mxu0 0.0
      %2925 = vmatpush1.msra.mxu0 0.0
      %2926 = vmatprep.subr.mxu0 0.0
      %2927 = vmatpush1.msra.mxu0 0.0
      %2928 = vmatprep.subr.mxu0 0.0
      %2929 = vmatpush1.msra.mxu0 0.0
      %2930 = vmatprep.subr.mxu0 0.0
      %2931 = vmatpush1.msra.mxu0 0.0
      %2932 = vmatprep.subr.mxu0 0.0
      %2933 = vmatpush1.msra.mxu0 0.0
      %2934 = vmatprep.subr.mxu0 0.0
      %2935 = vmatpush1.msra.mxu0 0.0
      %2936 = vmatprep.subr.mxu0 0.0
      %2937 = vmatpush1.msra.mxu0 0.0
      %2938 = vmatprep.subr.mxu0 0.0
      %2939 = vmatpush1.msra.mxu0 0.0
      %2940 = vmatprep.subr.mxu0 0.0
      %2941 = vmatpush1.msra.mxu0 0.0
      %2942 = vmatprep.subr.mxu0 0.0
      %2943 = vmatpush1.msra.mxu0 0.0
      %2944 = vmatprep.subr.mxu0 0.0
      %2945 = vmatpush1.msra.mxu0 0.0
      %2946 = vmatprep.subr.mxu0 0.0
      %2947 = vmatpush1.msra.mxu0 0.0
      %2948 = vmatprep.subr.mxu0 0.0
      %2949 = vmatpush1.msra.mxu0 0.0
      %2950 = vmatprep.subr.mxu0 0.0
      %2951 = vmatpush1.msra.mxu0 0.0
      %2952 = vmatprep.subr.mxu0 0.0
      %2953 = vmatpush1.msra.mxu0 0.0
      %2954 = vmatprep.subr.mxu0 0.0
      %2955 = vmatpush1.msra.mxu0 0.0
      %2956 = vmatprep.mubr.f32.mxu0 0.0
      %2957 = vmatmul.mubr.f32.gmra.mrb[0].mxu0 %v1531
      %v2958 = vpop.f32.mrb[0].mxu0
      %v2959 = vadd.f32 0.0, %v2958
      %v2960 = vpop.f32.mrb[0].mxu0
      %2961 = vdwg.mxu0
      %v2963 = vrot.slane %v2959, 4
      %v2965 = vsel %vm1111, %v2656, %v2963
      %v2967 = vsel %vm688, %v2581, 0
      %v2970 = vsel %vm688, %v2586, 0
      %v2973 = vsel %vm688, %v2884, 0
      %v2976 = vsel %vm688, %v2889, 0
      %2978 = vmatprep.subr.mxu0 0.0
      %2979 = vmatpush1.msra.mxu0 %v2082
      %2980 = vmatprep.subr.mxu0 0.0
      %2981 = vmatpush1.msra.mxu0 %v2083
      %2982 = vmatprep.subr.mxu0 0.0
      %2983 = vmatpush1.msra.mxu0 %v2084
      %2984 = vmatprep.subr.mxu0 0.0
      %2985 = vmatpush1.msra.mxu0 %v2085
      %2986 = vmatprep.subr.mxu0 0.0
      %2987 = vmatpush1.msra.mxu0 0.0
      %2988 = vmatprep.subr.mxu0 0.0
      %2989 = vmatpush1.msra.mxu0 0.0
      %2990 = vmatprep.subr.mxu0 0.0
      %2991 = vmatpush1.msra.mxu0 0.0
      %2992 = vmatprep.subr.mxu0 0.0
      %2993 = vmatpush1.msra.mxu0 0.0
      %2994 = vmatprep.subr.mxu0 0.0
      %2995 = vmatpush1.msra.mxu0 0.0
      %2996 = vmatprep.subr.mxu0 0.0
      %2997 = vmatpush1.msra.mxu0 0.0
      %2998 = vmatprep.subr.mxu0 0.0
      %2999 = vmatpush1.msra.mxu0 0.0
      %3000 = vmatprep.subr.mxu0 0.0
      %3001 = vmatpush1.msra.mxu0 0.0
      %3002 = vmatprep.subr.mxu0 0.0
      %3003 = vmatpush1.msra.mxu0 0.0
      %3004 = vmatprep.subr.mxu0 0.0
      %3005 = vmatpush1.msra.mxu0 0.0
      %3006 = vmatprep.subr.mxu0 0.0
      %3007 = vmatpush1.msra.mxu0 0.0
      %3008 = vmatprep.subr.mxu0 0.0
      %3009 = vmatpush1.msra.mxu0 0.0
      %3010 = vmatprep.subr.mxu0 0.0
      %3011 = vmatpush1.msra.mxu0 0.0
      %3012 = vmatprep.subr.mxu0 0.0
      %3013 = vmatpush1.msra.mxu0 0.0
      %3014 = vmatprep.subr.mxu0 0.0
      %3015 = vmatpush1.msra.mxu0 0.0
      %3016 = vmatprep.subr.mxu0 0.0
      %3017 = vmatpush1.msra.mxu0 0.0
      %3018 = vmatprep.subr.mxu0 0.0
      %3019 = vmatpush1.msra.mxu0 0.0
      %3020 = vmatprep.subr.mxu0 0.0
      %3021 = vmatpush1.msra.mxu0 0.0
      %3022 = vmatprep.subr.mxu0 0.0
      %3023 = vmatpush1.msra.mxu0 0.0
      %3024 = vmatprep.subr.mxu0 0.0
      %3025 = vmatpush1.msra.mxu0 0.0
      %3026 = vmatprep.subr.mxu0 0.0
      %3027 = vmatpush1.msra.mxu0 0.0
      %3028 = vmatprep.subr.mxu0 0.0
      %3029 = vmatpush1.msra.mxu0 0.0
      %3030 = vmatprep.subr.mxu0 0.0
      %3031 = vmatpush1.msra.mxu0 0.0
      %3032 = vmatprep.subr.mxu0 0.0
      %3033 = vmatpush1.msra.mxu0 0.0
      %3034 = vmatprep.subr.mxu0 0.0
      %3035 = vmatpush1.msra.mxu0 0.0
      %3036 = vmatprep.subr.mxu0 0.0
      %3037 = vmatpush1.msra.mxu0 0.0
      %3038 = vmatprep.subr.mxu0 0.0
      %3039 = vmatpush1.msra.mxu0 0.0
      %3040 = vmatprep.subr.mxu0 0.0
      %3041 = vmatpush1.msra.mxu0 0.0
      %3042 = vmatprep.mubr.f32.mxu0 0.0
      %3043 = vmatmul.mubr.f32.gmra.mrb[0].mxu0 %v2967
      %v3044 = vpop.f32.mrb[0].mxu0
      %v3045 = vadd.f32 0.0, %v3044
      %v3046 = vpop.f32.mrb[0].mxu0
      %3047 = vmatprep.mubr.f32.mxu0 0.0
      %3048 = vmatmul.mubr.f32.gmra.mrb[0].mxu0 %v2970
      %v3049 = vpop.f32.mrb[0].mxu0
      %v3050 = vadd.f32 0.0, %v3049
      %v3051 = vpop.f32.mrb[0].mxu0
      %3052 = vmatprep.mubr.f32.mxu0 0.0
      %3053 = vmatmul.mubr.f32.gmra.mrb[0].mxu0 %v2973
      %v3054 = vpop.f32.mrb[0].mxu0
      %v3055 = vadd.f32 0.0, %v3054
      %v3056 = vpop.f32.mrb[0].mxu0
      %3057 = vmatprep.mubr.f32.mxu0 0.0
      %3058 = vmatmul.mubr.f32.gmra.mrb[0].mxu0 %v2976
      %v3059 = vpop.f32.mrb[0].mxu0
      %v3060 = vadd.f32 0.0, %v3059
      %v3061 = vpop.f32.mrb[0].mxu0
      %3062 = vdwg.mxu0
      %3063 = vmatprep.subr.mxu0 0.0
      %3064 = vmatpush1.msra.mxu0 %v2078
      %3065 = vmatprep.subr.mxu0 0.0
      %3066 = vmatpush1.msra.mxu0 %v2079
      %3067 = vmatprep.subr.mxu0 0.0
      %3068 = vmatpush1.msra.mxu0 %v2080
      %3069 = vmatprep.subr.mxu0 0.0
      %3070 = vmatpush1.msra.mxu0 %v2081
      %3071 = vmatprep.subr.mxu0 0.0
      %3072 = vmatpush1.msra.mxu0 0.0
      %3073 = vmatprep.subr.mxu0 0.0
      %3074 = vmatpush1.msra.mxu0 0.0
      %3075 = vmatprep.subr.mxu0 0.0
      %3076 = vmatpush1.msra.mxu0 0.0
      %3077 = vmatprep.subr.mxu0 0.0
      %3078 = vmatpush1.msra.mxu0 0.0
      %3079 = vmatprep.subr.mxu0 0.0
      %3080 = vmatpush1.msra.mxu0 0.0
      %3081 = vmatprep.subr.mxu0 0.0
      %3082 = vmatpush1.msra.mxu0 0.0
      %3083 = vmatprep.subr.mxu0 0.0
      %3084 = vmatpush1.msra.mxu0 0.0
      %3085 = vmatprep.subr.mxu0 0.0
      %3086 = vmatpush1.msra.mxu0 0.0
      %3087 = vmatprep.subr.mxu0 0.0
      %3088 = vmatpush1.msra.mxu0 0.0
      %3089 = vmatprep.subr.mxu0 0.0
      %3090 = vmatpush1.msra.mxu0 0.0
      %3091 = vmatprep.subr.mxu0 0.0
      %3092 = vmatpush1.msra.mxu0 0.0
      %3093 = vmatprep.subr.mxu0 0.0
      %3094 = vmatpush1.msra.mxu0 0.0
      %3095 = vmatprep.subr.mxu0 0.0
      %3096 = vmatpush1.msra.mxu0 0.0
      %3097 = vmatprep.subr.mxu0 0.0
      %3098 = vmatpush1.msra.mxu0 0.0
      %3099 = vmatprep.subr.mxu0 0.0
      %3100 = vmatpush1.msra.mxu0 0.0
      %3101 = vmatprep.subr.mxu0 0.0
      %3102 = vmatpush1.msra.mxu0 0.0
      %3103 = vmatprep.subr.mxu0 0.0
      %3104 = vmatpush1.msra.mxu0 0.0
      %3105 = vmatprep.subr.mxu0 0.0
      %3106 = vmatpush1.msra.mxu0 0.0
      %3107 = vmatprep.subr.mxu0 0.0
      %3108 = vmatpush1.msra.mxu0 0.0
      %3109 = vmatprep.subr.mxu0 0.0
      %3110 = vmatpush1.msra.mxu0 0.0
      %3111 = vmatprep.subr.mxu0 0.0
      %3112 = vmatpush1.msra.mxu0 0.0
      %3113 = vmatprep.subr.mxu0 0.0
      %3114 = vmatpush1.msra.mxu0 0.0
      %3115 = vmatprep.subr.mxu0 0.0
      %3116 = vmatpush1.msra.mxu0 0.0
      %3117 = vmatprep.subr.mxu0 0.0
      %3118 = vmatpush1.msra.mxu0 0.0
      %3119 = vmatprep.subr.mxu0 0.0
      %3120 = vmatpush1.msra.mxu0 0.0
      %3121 = vmatprep.subr.mxu0 0.0
      %3122 = vmatpush1.msra.mxu0 0.0
      %3123 = vmatprep.subr.mxu0 0.0
      %3124 = vmatpush1.msra.mxu0 0.0
      %3125 = vmatprep.subr.mxu0 0.0
      %3126 = vmatpush1.msra.mxu0 0.0
      %3127 = vmatprep.mubr.f32.mxu0 0.0
      %3128 = vmatmul.mubr.f32.gmra.mrb[0].mxu0 %v2105
      %v3129 = vpop.f32.mrb[0].mxu0
      %v3130 = vadd.f32 %v3045, %v3129
      %v3131 = vpop.f32.mrb[0].mxu0
      %3132 = vmatprep.mubr.f32.mxu0 0.0
      %3133 = vmatmul.mubr.f32.gmra.mrb[0].mxu0 %v2108
      %v3134 = vpop.f32.mrb[0].mxu0
      %v3135 = vadd.f32 %v3050, %v3134
      %v3136 = vpop.f32.mrb[0].mxu0
      %3137 = vmatprep.mubr.f32.mxu0 0.0
      %3138 = vmatmul.mubr.f32.gmra.mrb[0].mxu0 %v2111
      %v3139 = vpop.f32.mrb[0].mxu0
      %v3140 = vadd.f32 %v3055, %v3139
      %v3141 = vpop.f32.mrb[0].mxu0
      %3142 = vmatprep.mubr.f32.mxu0 0.0
      %3143 = vmatmul.mubr.f32.gmra.mrb[0].mxu0 %v2114
      %v3144 = vpop.f32.mrb[0].mxu0
      %v3145 = vadd.f32 %v3060, %v3144
      %v3146 = vpop.f32.mrb[0].mxu0
      %3147 = vdwg.mxu0
      %v3149 = vsel %vm688, %v2509, 0
      %v3152 = vsel %vm688, %v2510, 0
      %v3155 = vsel %vm688, %v2812, 0
      %v3158 = vsel %vm688, %v2813, 0
      %3160 = vmatprep.subr.mxu0 0.0
      %3161 = vmatpush1.msra.mxu0 %v2086
      %3162 = vmatprep.subr.mxu0 0.0
      %3163 = vmatpush1.msra.mxu0 %v2087
      %3164 = vmatprep.subr.mxu0 0.0
      %3165 = vmatpush1.msra.mxu0 %v2088
      %3166 = vmatprep.subr.mxu0 0.0
      %3167 = vmatpush1.msra.mxu0 %v2089
      %3168 = vmatprep.subr.mxu0 0.0
      %3169 = vmatpush1.msra.mxu0 0.0
      %3170 = vmatprep.subr.mxu0 0.0
      %3171 = vmatpush1.msra.mxu0 0.0
      %3172 = vmatprep.subr.mxu0 0.0
      %3173 = vmatpush1.msra.mxu0 0.0
      %3174 = vmatprep.subr.mxu0 0.0
      %3175 = vmatpush1.msra.mxu0 0.0
      %3176 = vmatprep.subr.mxu0 0.0
      %3177 = vmatpush1.msra.mxu0 0.0
      %3178 = vmatprep.subr.mxu0 0.0
      %3179 = vmatpush1.msra.mxu0 0.0
      %3180 = vmatprep.subr.mxu0 0.0
      %3181 = vmatpush1.msra.mxu0 0.0
      %3182 = vmatprep.subr.mxu0 0.0
      %3183 = vmatpush1.msra.mxu0 0.0
      %3184 = vmatprep.subr.mxu0 0.0
      %3185 = vmatpush1.msra.mxu0 0.0
      %3186 = vmatprep.subr.mxu0 0.0
      %3187 = vmatpush1.msra.mxu0 0.0
      %3188 = vmatprep.subr.mxu0 0.0
      %3189 = vmatpush1.msra.mxu0 0.0
      %3190 = vmatprep.subr.mxu0 0.0
      %3191 = vmatpush1.msra.mxu0 0.0
      %3192 = vmatprep.subr.mxu0 0.0
      %3193 = vmatpush1.msra.mxu0 0.0
      %3194 = vmatprep.subr.mxu0 0.0
      %3195 = vmatpush1.msra.mxu0 0.0
      %3196 = vmatprep.subr.mxu0 0.0
      %3197 = vmatpush1.msra.mxu0 0.0
      %3198 = vmatprep.subr.mxu0 0.0
      %3199 = vmatpush1.msra.mxu0 0.0
      %3200 = vmatprep.subr.mxu0 0.0
      %3201 = vmatpush1.msra.mxu0 0.0
      %3202 = vmatprep.subr.mxu0 0.0
      %3203 = vmatpush1.msra.mxu0 0.0
      %3204 = vmatprep.subr.mxu0 0.0
      %3205 = vmatpush1.msra.mxu0 0.0
      %3206 = vmatprep.subr.mxu0 0.0
      %3207 = vmatpush1.msra.mxu0 0.0
      %3208 = vmatprep.subr.mxu0 0.0
      %3209 = vmatpush1.msra.mxu0 0.0
      %3210 = vmatprep.subr.mxu0 0.0
      %3211 = vmatpush1.msra.mxu0 0.0
      %3212 = vmatprep.subr.mxu0 0.0
      %3213 = vmatpush1.msra.mxu0 0.0
      %3214 = vmatprep.subr.mxu0 0.0
      %3215 = vmatpush1.msra.mxu0 0.0
      %3216 = vmatprep.subr.mxu0 0.0
      %3217 = vmatpush1.msra.mxu0 0.0
      %3218 = vmatprep.subr.mxu0 0.0
      %3219 = vmatpush1.msra.mxu0 0.0
      %3220 = vmatprep.subr.mxu0 0.0
      %3221 = vmatpush1.msra.mxu0 0.0
      %3222 = vmatprep.subr.mxu0 0.0
      %3223 = vmatpush1.msra.mxu0 0.0
      %3224 = vmatprep.mubr.f32.mxu0 0.0
      %3225 = vmatmul.mubr.f32.gmra.mrb[0].mxu0 %v3149
      %v3226 = vpop.f32.mrb[0].mxu0
      %v3227 = vadd.f32 0.0, %v3226
      %v3228 = vpop.f32.mrb[0].mxu0
      %3229 = vmatprep.mubr.f32.mxu0 0.0
      %3230 = vmatmul.mubr.f32.gmra.mrb[0].mxu0 %v3152
      %v3231 = vpop.f32.mrb[0].mxu0
      %v3232 = vadd.f32 0.0, %v3231
      %v3233 = vpop.f32.mrb[0].mxu0
      %3234 = vmatprep.mubr.f32.mxu0 0.0
      %3235 = vmatmul.mubr.f32.gmra.mrb[0].mxu0 %v3155
      %v3236 = vpop.f32.mrb[0].mxu0
      %v3237 = vadd.f32 0.0, %v3236
      %v3238 = vpop.f32.mrb[0].mxu0
      %3239 = vmatprep.mubr.f32.mxu0 0.0
      %3240 = vmatmul.mubr.f32.gmra.mrb[0].mxu0 %v3158
      %v3241 = vpop.f32.mrb[0].mxu0
      %v3242 = vadd.f32 0.0, %v3241
      %v3243 = vpop.f32.mrb[0].mxu0
      %3244 = vdwg.mxu0
      %v3245 = vadd.f32 %v3130, %v3227
      %v3246 = vadd.f32 %v3135, %v3232
      %v3247 = vadd.f32 %v3140, %v3237
      %v3248 = vadd.f32 %v3145, %v3242
      %v3249 = vlaneseq
      %v3250 = vshrl.u32 %v3249, 7
      %v3251 = vsub.s32 1, %v3250
      %v3252 = vrot.slane %v2094, %v3251
      %v3253 = vadd.f32 %v3245, %v3252
      %v3254 = vadd.f32 %v3246, %v3252
      %v3255 = vadd.f32 %v3247, %v3252
      %v3256 = vadd.f32 %v3248, %v3252
      %v3257 = vmax.f32 %v3253, 0.0
      %v3258 = vmax.f32 %v3254, 0.0
      %v3259 = vmax.f32 %v3255, 0.0
      %v3260 = vmax.f32 %v3256, 0.0
      %v3261 = vsel %vm688, %v2072, 0
      %3263 = vmatprep.subr.mxu0 0.0
      %3264 = vmatpush1.msra.mxu0 %v2096
      %3265 = vmatprep.subr.mxu0 0.0
      %3266 = vmatpush1.msra.mxu0 %v2097
      %3267 = vmatprep.subr.mxu0 0.0
      %3268 = vmatpush1.msra.mxu0 %v2098
      %3269 = vmatprep.subr.mxu0 0.0
      %3270 = vmatpush1.msra.mxu0 %v2099
      %3271 = vmatprep.subr.mxu0 0.0
      %3272 = vmatpush1.msra.mxu0 0.0
      %3273 = vmatprep.subr.mxu0 0.0
      %3274 = vmatpush1.msra.mxu0 0.0
      %3275 = vmatprep.subr.mxu0 0.0
      %3276 = vmatpush1.msra.mxu0 0.0
      %3277 = vmatprep.subr.mxu0 0.0
      %3278 = vmatpush1.msra.mxu0 0.0
      %3279 = vmatprep.subr.mxu0 0.0
      %3280 = vmatpush1.msra.mxu0 0.0
      %3281 = vmatprep.subr.mxu0 0.0
      %3282 = vmatpush1.msra.mxu0 0.0
      %3283 = vmatprep.subr.mxu0 0.0
      %3284 = vmatpush1.msra.mxu0 0.0
      %3285 = vmatprep.subr.mxu0 0.0
      %3286 = vmatpush1.msra.mxu0 0.0
      %3287 = vmatprep.subr.mxu0 0.0
      %3288 = vmatpush1.msra.mxu0 0.0
      %3289 = vmatprep.subr.mxu0 0.0
      %3290 = vmatpush1.msra.mxu0 0.0
      %3291 = vmatprep.subr.mxu0 0.0
      %3292 = vmatpush1.msra.mxu0 0.0
      %3293 = vmatprep.subr.mxu0 0.0
      %3294 = vmatpush1.msra.mxu0 0.0
      %3295 = vmatprep.subr.mxu0 0.0
      %3296 = vmatpush1.msra.mxu0 0.0
      %3297 = vmatprep.subr.mxu0 0.0
      %3298 = vmatpush1.msra.mxu0 0.0
      %3299 = vmatprep.subr.mxu0 0.0
      %3300 = vmatpush1.msra.mxu0 0.0
      %3301 = vmatprep.subr.mxu0 0.0
      %3302 = vmatpush1.msra.mxu0 0.0
      %3303 = vmatprep.subr.mxu0 0.0
      %3304 = vmatpush1.msra.mxu0 0.0
      %3305 = vmatprep.subr.mxu0 0.0
      %3306 = vmatpush1.msra.mxu0 0.0
      %3307 = vmatprep.subr.mxu0 0.0
      %3308 = vmatpush1.msra.mxu0 0.0
      %3309 = vmatprep.subr.mxu0 0.0
      %3310 = vmatpush1.msra.mxu0 0.0
      %3311 = vmatprep.subr.mxu0 0.0
      %3312 = vmatpush1.msra.mxu0 0.0
      %3313 = vmatprep.subr.mxu0 0.0
      %3314 = vmatpush1.msra.mxu0 0.0
      %3315 = vmatprep.subr.mxu0 0.0
      %3316 = vmatpush1.msra.mxu0 0.0
      %3317 = vmatprep.subr.mxu0 0.0
      %3318 = vmatpush1.msra.mxu0 0.0
      %3319 = vmatprep.subr.mxu0 0.0
      %3320 = vmatpush1.msra.mxu0 0.0
      %3321 = vmatprep.subr.mxu0 0.0
      %3322 = vmatpush1.msra.mxu0 0.0
      %3323 = vmatprep.subr.mxu0 0.0
      %3324 = vmatpush1.msra.mxu0 0.0
      %3325 = vmatprep.subr.mxu0 0.0
      %3326 = vmatpush1.msra.mxu0 0.0
      %3327 = vmatprep.mubr.f32.mxu0 0.0
      %3328 = vmatmul.mubr.f32.gmra.mrb[0].mxu0 %v3261
      %v3329 = vpop.f32.mrb[0].mxu0
      %v3330 = vadd.f32 0.0, %v3329
      %v3331 = vpop.f32.mrb[0].mxu0
      %3332 = vdwg.mxu0
      %v3334 = vsel %vm688, %v2965, 0
      %3336 = vmatprep.subr.mxu0 0.0
      %3337 = vmatpush1.msra.mxu0 %v2100
      %3338 = vmatprep.subr.mxu0 0.0
      %3339 = vmatpush1.msra.mxu0 %v2101
      %3340 = vmatprep.subr.mxu0 0.0
      %3341 = vmatpush1.msra.mxu0 %v2102
      %3342 = vmatprep.subr.mxu0 0.0
      %3343 = vmatpush1.msra.mxu0 %v2103
      %3344 = vmatprep.subr.mxu0 0.0
      %3345 = vmatpush1.msra.mxu0 0.0
      %3346 = vmatprep.subr.mxu0 0.0
      %3347 = vmatpush1.msra.mxu0 0.0
      %3348 = vmatprep.subr.mxu0 0.0
      %3349 = vmatpush1.msra.mxu0 0.0
      %3350 = vmatprep.subr.mxu0 0.0
      %3351 = vmatpush1.msra.mxu0 0.0
      %3352 = vmatprep.subr.mxu0 0.0
      %3353 = vmatpush1.msra.mxu0 0.0
      %3354 = vmatprep.subr.mxu0 0.0
      %3355 = vmatpush1.msra.mxu0 0.0
      %3356 = vmatprep.subr.mxu0 0.0
      %3357 = vmatpush1.msra.mxu0 0.0
      %3358 = vmatprep.subr.mxu0 0.0
      %3359 = vmatpush1.msra.mxu0 0.0
      %3360 = vmatprep.subr.mxu0 0.0
      %3361 = vmatpush1.msra.mxu0 0.0
      %3362 = vmatprep.subr.mxu0 0.0
      %3363 = vmatpush1.msra.mxu0 0.0
      %3364 = vmatprep.subr.mxu0 0.0
      %3365 = vmatpush1.msra.mxu0 0.0
      %3366 = vmatprep.subr.mxu0 0.0
      %3367 = vmatpush1.msra.mxu0 0.0
      %3368 = vmatprep.subr.mxu0 0.0
      %3369 = vmatpush1.msra.mxu0 0.0
      %3370 = vmatprep.subr.mxu0 0.0
      %3371 = vmatpush1.msra.mxu0 0.0
      %3372 = vmatprep.subr.mxu0 0.0
      %3373 = vmatpush1.msra.mxu0 0.0
      %3374 = vmatprep.subr.mxu0 0.0
      %3375 = vmatpush1.msra.mxu0 0.0
      %3376 = vmatprep.subr.mxu0 0.0
      %3377 = vmatpush1.msra.mxu0 0.0
      %3378 = vmatprep.subr.mxu0 0.0
      %3379 = vmatpush1.msra.mxu0 0.0
      %3380 = vmatprep.subr.mxu0 0.0
      %3381 = vmatpush1.msra.mxu0 0.0
      %3382 = vmatprep.subr.mxu0 0.0
      %3383 = vmatpush1.msra.mxu0 0.0
      %3384 = vmatprep.subr.mxu0 0.0
      %3385 = vmatpush1.msra.mxu0 0.0
      %3386 = vmatprep.subr.mxu0 0.0
      %3387 = vmatpush1.msra.mxu0 0.0
      %3388 = vmatprep.subr.mxu0 0.0
      %3389 = vmatpush1.msra.mxu0 0.0
      %3390 = vmatprep.subr.mxu0 0.0
      %3391 = vmatpush1.msra.mxu0 0.0
      %3392 = vmatprep.subr.mxu0 0.0
      %3393 = vmatpush1.msra.mxu0 0.0
      %3394 = vmatprep.subr.mxu0 0.0
      %3395 = vmatpush1.msra.mxu0 0.0
      %3396 = vmatprep.subr.mxu0 0.0
      %3397 = vmatpush1.msra.mxu0 0.0
      %3398 = vmatprep.subr.mxu0 0.0
      %3399 = vmatpush1.msra.mxu0 0.0
      %3400 = vmatprep.mubr.f32.mxu0 0.0
      %3401 = vmatmul.mubr.f32.gmra.mrb[0].mxu0 %v3334
      %v3402 = vpop.f32.mrb[0].mxu0
      %v3403 = vadd.f32 0.0, %v3402
      %v3404 = vpop.f32.mrb[0].mxu0
      %3405 = vdwg.mxu0
      %v3406 = vadd.f32 %v3330, %v3403
      %v3407 = vxor.u32 %v3406, 2147483648
      %v3408 = vmul.f32 %v3407, 1.442695
      %v3409 = vpow.pop %v3408
      %v3410 = vadd.f32 %v3409, 1.0
      %v3411 = vrcp.pop %v3410
      %v3412 = vmul.f32 1.0, %v3411
      %3414 = vrot.lane.b32.xlu0 %v3403, 96
      %v3415 = vpop.permute.xlu0 %3414
      %v3417 = vmul.f32 %v3412, %v3415
      %3419 = vrot.lane.b32.xlu0 %v3417, 32
      %v3420 = vpop.permute.xlu0 %3419
      %v3422 = vadd.f32 %v3330, %v3420
      %v3423 = vtanh.pop %v3422
      %v3424 = vsub.f32 1.0, %v3412
      %v3425 = vmul.f32 %v3424, %v2072
      %3427 = vrot.lane.b32.xlu0 %v3423, 64
      %v3428 = vpop.permute.xlu0 %3427
      %v3430 = vmul.f32 %v3412, %v3428
      %v3431 = vadd.f32 %v3425, %v3430
      %v3432 = vlaneseq
      %v3433 = vshrl.u32 %v3432, 7
      %v3434 = vsub.s32 2, %v3433
      %v3435 = vrot.slane %v466, %v3434
      %v3437 = vsel %vm688, %v3257, 0
      %v3440 = vsel %vm688, %v3258, 0
      %v3443 = vsel %vm688, %v3259, 0
      %v3446 = vsel %vm688, %v3260, 0
      %3448 = vmatprep.subr.mxu0 0.0
      %3449 = vmatpush1.msra.mxu0 %v462
      %3450 = vmatprep.subr.mxu0 0.0
      %3451 = vmatpush1.msra.mxu0 %v463
      %3452 = vmatprep.subr.mxu0 0.0
      %3453 = vmatpush1.msra.mxu0 %v464
      %3454 = vmatprep.subr.mxu0 0.0
      %3455 = vmatpush1.msra.mxu0 %v465
      %3456 = vmatprep.subr.mxu0 0.0
      %3457 = vmatpush1.msra.mxu0 0.0
      %3458 = vmatprep.subr.mxu0 0.0
      %3459 = vmatpush1.msra.mxu0 0.0
      %3460 = vmatprep.subr.mxu0 0.0
      %3461 = vmatpush1.msra.mxu0 0.0
      %3462 = vmatprep.subr.mxu0 0.0
      %3463 = vmatpush1.msra.mxu0 0.0
      %3464 = vmatprep.subr.mxu0 0.0
      %3465 = vmatpush1.msra.mxu0 0.0
      %3466 = vmatprep.subr.mxu0 0.0
      %3467 = vmatpush1.msra.mxu0 0.0
      %3468 = vmatprep.subr.mxu0 0.0
      %3469 = vmatpush1.msra.mxu0 0.0
      %3470 = vmatprep.subr.mxu0 0.0
      %3471 = vmatpush1.msra.mxu0 0.0
      %3472 = vmatprep.subr.mxu0 0.0
      %3473 = vmatpush1.msra.mxu0 0.0
      %3474 = vmatprep.subr.mxu0 0.0
      %3475 = vmatpush1.msra.mxu0 0.0
      %3476 = vmatprep.subr.mxu0 0.0
      %3477 = vmatpush1.msra.mxu0 0.0
      %3478 = vmatprep.subr.mxu0 0.0
      %3479 = vmatpush1.msra.mxu0 0.0
      %3480 = vmatprep.subr.mxu0 0.0
      %3481 = vmatpush1.msra.mxu0 0.0
      %3482 = vmatprep.subr.mxu0 0.0
      %3483 = vmatpush1.msra.mxu0 0.0
      %3484 = vmatprep.subr.mxu0 0.0
      %3485 = vmatpush1.msra.mxu0 0.0
      %3486 = vmatprep.subr.mxu0 0.0
      %3487 = vmatpush1.msra.mxu0 0.0
      %3488 = vmatprep.subr.mxu0 0.0
      %3489 = vmatpush1.msra.mxu0 0.0
      %3490 = vmatprep.subr.mxu0 0.0
      %3491 = vmatpush1.msra.mxu0 0.0
      %3492 = vmatprep.subr.mxu0 0.0
      %3493 = vmatpush1.msra.mxu0 0.0
      %3494 = vmatprep.subr.mxu0 0.0
      %3495 = vmatpush1.msra.mxu0 0.0
      %3496 = vmatprep.subr.mxu0 0.0
      %3497 = vmatpush1.msra.mxu0 0.0
      %3498 = vmatprep.subr.mxu0 0.0
      %3499 = vmatpush1.msra.mxu0 0.0
      %3500 = vmatprep.subr.mxu0 0.0
      %3501 = vmatpush1.msra.mxu0 0.0
      %3502 = vmatprep.subr.mxu0 0.0
      %3503 = vmatpush1.msra.mxu0 0.0
      %3504 = vmatprep.subr.mxu0 0.0
      %3505 = vmatpush1.msra.mxu0 0.0
      %3506 = vmatprep.subr.mxu0 0.0
      %3507 = vmatpush1.msra.mxu0 0.0
      %3508 = vmatprep.subr.mxu0 0.0
      %3509 = vmatpush1.msra.mxu0 0.0
      %3510 = vmatprep.subr.mxu0 0.0
      %3511 = vmatpush1.msra.mxu0 0.0
      %3512 = vmatprep.mubr.f32.mxu0 0.0
      %3513 = vmatmul.mubr.f32.gmra.mrb[0].mxu0 %v3437
      %v3514 = vpop.f32.mrb[0].mxu0
      %v3515 = vadd.f32 %v3435, %v3514
      %v3516 = vpop.f32.mrb[0].mxu0
      %3517 = vmatprep.mubr.f32.mxu0 0.0
      %3518 = vmatmul.mubr.f32.gmra.mrb[0].mxu0 %v3440
      %v3519 = vpop.f32.mrb[0].mxu0
      %v3520 = vadd.f32 %v3435, %v3519
      %v3521 = vpop.f32.mrb[0].mxu0
      %3522 = vmatprep.mubr.f32.mxu0 0.0
      %3523 = vmatmul.mubr.f32.gmra.mrb[0].mxu0 %v3443
      %v3524 = vpop.f32.mrb[0].mxu0
      %v3525 = vadd.f32 %v3435, %v3524
      %v3526 = vpop.f32.mrb[0].mxu0
      %3527 = vmatprep.mubr.f32.mxu0 0.0
      %3528 = vmatmul.mubr.f32.gmra.mrb[0].mxu0 %v3446
      %v3529 = vpop.f32.mrb[0].mxu0
      %v3530 = vadd.f32 %v3435, %v3529
      %v3531 = vpop.f32.mrb[0].mxu0
      %3532 = vdwg.mxu0
      %3533 = vst.msk [vmem:[%s443] sm:$0xff] %vm1117, %v3515
      %3534 = vst.msk [vmem:[%s443 + $0x8] sm:$0xff] %vm1117, %v3520
      %s3535 = scalar_lea.vmem %s443, 16
      %3536 = vst.msk [vmem:[%s3535] sm:$0xff] %vm1117, %v3525
      %3537 = vst.msk [vmem:[%s3535 + $0x8] sm:$0xff] %vm1117, %v3530
      %vm3538 = vcmask 257024
      %v3539 = vsel %vm3538, %v3431, 0.0
      %v3540 = vrot.slane %v3539, 4
      %v3541 = vadd.f32 %v3539, %v3540
      %v3542 = vrot.slane %v3541, 2
      %v3543 = vadd.f32 %v3541, %v3542
      %v3544 = vrot.slane %v3543, 1
      %v3545 = vadd.f32 %v3543, %v3544
      %v3546 = vmul.f32 %v3545, %v3545
      %v3547 = vsel %vm688, %v3546, 0.0
      %3548 = vadd.xlane.f32.xlu0 %v3547
      %v3549 = vpop.xlane.xlu0 %3548
      %v3550 = vmul.f32 %v3431, %v3431
      %v3551 = vsel %vm3538, %v3550, 0.0
      %3552 = vadd.xlane.f32.xlu0 %v3551
      %v3553 = vpop.xlane.xlu0 %3552
      %v3554 = vsel %vm1111, %v3553, 0.0
      %v3555 = vrot.slane %v3554, 4
      %v3556 = vadd.f32 %v3554, %v3555
      %v3557 = vrot.slane %v3556, 2
      %v3558 = vadd.f32 %v3556, %v3557
      %v3559 = vrot.slane %v3558, 1
      %v3560 = vadd.f32 %v3558, %v3559
      %v3561 = vsub.f32 %v3549, %v3560
      %v3562 = vmul.f32 %v3561, 0.0625
      %vm3563 = vcmask 0
      %3564 = vst.msk [vmem:[%s448] sm:$0x1] %vm3563, %v3562
      %v3566 = vrot.slane %v3431, 4
      %v3568 = vsel %vm3538, %v3566, 0.0
      %v3569 = vrot.slane %v3568, 4
      %v3570 = vadd.f32 %v3568, %v3569
      %v3571 = vrot.slane %v3570, 2
      %v3572 = vadd.f32 %v3570, %v3571
      %v3573 = vrot.slane %v3572, 1
      %v3574 = vadd.f32 %v3572, %v3573
      %v3575 = vmul.f32 %v3574, %v3574
      %v3576 = vsel %vm688, %v3575, 0.0
      %3577 = vadd.xlane.f32.xlu0 %v3576
      %v3578 = vpop.xlane.xlu0 %3577
      %vm3579 = vcmask 261124
      %v3580 = vsel %vm3579, %v3550, 0.0
      %3581 = vadd.xlane.f32.xlu0 %v3580
      %v3582 = vpop.xlane.xlu0 %3581
      %v3584 = vrot.slane %v3582, 4
      %v3586 = vsel %vm1111, %v3584, 0.0
      %v3587 = vrot.slane %v3586, 4
      %v3588 = vadd.f32 %v3586, %v3587
      %v3589 = vrot.slane %v3588, 2
      %v3590 = vadd.f32 %v3588, %v3589
      %v3591 = vrot.slane %v3590, 1
      %v3592 = vadd.f32 %v3590, %v3591
      %v3593 = vsub.f32 %v3578, %v3592
      %v3594 = vmul.f32 %v3593, 0.0625
      %s3595 = scalar_lea.vmem %s448, 1
      %3596 = vst.msk [vmem:[%s3595] sm:$0x1] %vm3563, %v3594
      %s3597 = smul.u32 2, %s21
      %p3598 = scmp.lt.s32.totalorder %s3597, 3
      %s3599 = scalar_select %p3598, %s3597, 3
      %s3600 = smul.addr %s3599, 2
      %s3601 = smul.addr %s3600, 8
      %s3602 = scalar_lea.vmem %s8, %s3601
      %s3603 = smul.u32 2, %s21
      %p3604 = scmp.lt.s32.totalorder %s3603, 3
      %s3605 = scalar_select %p3604, %s3603, 3
      %s3606 = scalar_lea.vmem %s9, %s3605
      // Predicated region
      $region53: #{perc_forward.1} parent=51 // pred_check
        %p3607 = pneg %p232
      $region54: #{perc_forward.1} parent=51 // pred_check_branch
        %3609 = sbr.rel (%p3607) target = $region56
      $region55: #{perc_forward.1} parent=51 // pred_region
        %s3610 = smul.u32 2, %s21
      $region56: #{perc_forward.1} parent=51 // pred_fallthru
        _
      // Predicated region
      $region57: #{perc_forward.1} parent=51 // pred_check
        %p3611 = pneg %p258
      $region58: #{perc_forward.1} parent=51 // pred_check_branch
        %3613 = sbr.rel (%p3611) target = $region60
      $region59: #{perc_forward.1} parent=51 // pred_region
        %s3614 = smul.u32 2, %s21
      $region60: #{perc_forward.1} parent=51 // pred_fallthru
        _
    $region52: #{perc_forward.1} parent=5 // pred_fallthru
      _
    %p3615 = scmp.le.s32.totalorder 2, %s16
    // Predicated region
    $region61: #{perc_forward.1} parent=5 // pred_check
      %p3616 = pneg %p3615
    $region62: #{perc_forward.1} parent=5 // pred_check_branch
      %3618 = sbr.rel (%p3616) target = $region64
    $region63: #{perc_forward.1} parent=5 // pred_region
      %s3619 = ssub.s32 %s16, 2
      // Predicated region
      $region65: #{perc_forward.1} parent=63 // pred_check
        %p3620 = pneg %p238
      $region66: #{perc_forward.1} parent=63 // pred_check_branch
        %3622 = sbr.rel (%p3620) target = $region68
      $region67: #{perc_forward.1} parent=63 // pred_region
        %s3623 = smul.u32 2, %s22
        %p3624 = scmp.lt.s32.totalorder %s3623, 3
        %s3625 = scalar_select %p3624, %s3623, 3
        %s3626 = smul.addr %s3625, 2
        %s3627 = smul.addr %s3626, 8
        %s3628 = scalar_lea.vmem %s8, %s3627
      $region68: #{perc_forward.1} parent=63 // pred_fallthru
        _
      // Predicated region
      $region69: #{perc_forward.1} parent=63 // pred_check
        %p3629 = pneg %p264
      $region70: #{perc_forward.1} parent=63 // pred_check_branch
        %3631 = sbr.rel (%p3629) target = $region72
      $region71: #{perc_forward.1} parent=63 // pred_region
        %s3632 = smul.u32 2, %s22
        %p3633 = scmp.lt.s32.totalorder %s3632, 3
        %s3634 = scalar_select %p3633, %s3632, 3
        %s3635 = scalar_lea.vmem %s9, %s3634
      $region72: #{perc_forward.1} parent=63 // pred_fallthru
        _
    $region64: #{perc_forward.1} parent=5 // pred_fallthru
      _
  $region6: #{perc_forward.1} parent=0 // loop_footer
    %s20 = sadd.s32 1, %s16
  $region7: #{perc_forward.1} parent=0 // loop_footer_branch
    %15 = sbr.rel target = $region3
  $region8: #{perc_forward.1} parent=0 // loop_exit
    _

</llo_original>
